<compile_context>
chip_gen: v7x
topology: tpu7x:2x2x1
jax: 0.10.0
libtpu: 0.0.40
codegen_flags: <defaults>
</compile_context>

<pallas_src>
import functools
import math

import jax
import jax.numpy as jnp
from jax.experimental import pallas as pl
from jax.experimental.pallas import tpu as pltpu


# ---------------------------------------------------------------------------
# helpers
# ---------------------------------------------------------------------------
def _choose_tile(dim, target, align):
    """Largest divisor of `dim` that is <= target and a multiple of `align`,
    else the full dimension (full-extent blocks always satisfy the (8,128) rule)."""
    if dim <= target:
        return dim
    t = (min(target, dim) // align) * align
    while t >= align:
        if dim % t == 0:
            return t
        t -= align
    return dim


def _vmem_limit(block_bytes):
    # ~double-buffered pipeline blocks + slack, clamped to a range that is safe
    # on every generation (v7x physical VMEM is 64 MiB).
    return int(min(max(2 * block_bytes + (2 << 20), 32 << 20), 64 << 20))


def _gemm_tile_defaults():
    try:
        kind = jax.devices()[0].device_kind.lower()
    except Exception:
        kind = ""
    if "v5 lite" in kind or "v5e" in kind or "v5litepod" in kind:
        return 256, 256, 256          # v5e: smallest scoped VMEM, 1 vst slot
    if "v6" in kind:
        return 256, 512, 1024         # v6e: 128 MiB VMEM -> deeper K tiles
    return 256, 512, 512              # v7x (64 MiB) and default


# ---------------------------------------------------------------------------
# Kernel 1: fused LayerNorm (eps=1e-5, biased variance) + GEMM (+ optional relu)
#   grid = (M/tm, Dout/tn), output-tile axis j innermost.
#   LN of the row tile is computed once (j == 0) into a VMEM scratch in the MXU
#   operand dtype; every j only runs the GEMM from the scratch.
# ---------------------------------------------------------------------------
def _ln_gemm_kernel(x_ref, g_ref, b_ref, w_ref, bias_ref, o_ref, xn_ref, *, relu):
    @pl.when(pl.program_id(1) == 0)
    def _():
        x = x_ref[...].astype(jnp.float32)
        mean = jnp.mean(x, axis=-1, keepdims=True)
        var = jnp.mean((x - mean) ** 2, axis=-1, keepdims=True)
        xn = (x - mean) * jax.lax.rsqrt(var + 1e-5)
        xn = xn * g_ref[...].astype(jnp.float32) + b_ref[...].astype(jnp.float32)
        xn_ref[...] = xn.astype(xn_ref.dtype)

    y = jnp.dot(xn_ref[...], w_ref[...], preferred_element_type=jnp.float32)
    y = y + bias_ref[...].astype(jnp.float32)
    if relu:
        y = jnp.maximum(y, 0.0)
    o_ref[...] = y.astype(o_ref.dtype)


def ln_gemm(x2d, gamma, beta, w, bias, *, relu=False, out_dtype=None, tm=None, tn=None):
    N, Din = x2d.shape
    Dout = w.shape[1]
    d_tm, d_tn, _ = _gemm_tile_defaults()
    tm = _choose_tile(N, tm or d_tm, 8)
    tn = _choose_tile(Dout, tn or d_tn, 128)
    out_dtype = out_dtype or x2d.dtype

    blk = (tm * Din * x2d.dtype.itemsize + 2 * Din * 4
           + Din * tn * w.dtype.itemsize + tn * 4
           + tm * tn * jnp.dtype(out_dtype).itemsize
           + tm * Din * w.dtype.itemsize)

    kernel = functools.partial(_ln_gemm_kernel, relu=relu)
    return pl.pallas_call(
        kernel,
        out_shape=jax.ShapeDtypeStruct((N, Dout), out_dtype),
        grid=(N // tm, Dout // tn),
        in_specs=[
            pl.BlockSpec((tm, Din), lambda i, j: (i, 0)),
            pl.BlockSpec((1, Din), lambda i, j: (0, 0)),
            pl.BlockSpec((1, Din), lambda i, j: (0, 0)),
            pl.BlockSpec((Din, tn), lambda i, j: (0, j)),
            pl.BlockSpec((1, tn), lambda i, j: (0, j)),
        ],
        out_specs=pl.BlockSpec((tm, tn), lambda i, j: (i, j)),
        scratch_shapes=[pltpu.VMEM((tm, Din), w.dtype)],
        compiler_params=pltpu.CompilerParams(
            dimension_semantics=("parallel", "arbitrary"),
            vmem_limit_bytes=_vmem_limit(blk)),
    )(x2d, gamma.reshape(1, Din), beta.reshape(1, Din), w, bias.reshape(1, Dout))


# ---------------------------------------------------------------------------
# Kernel 2: tiled GEMM  y = x @ W + b  (+ optional relu, + optional residual)
#   grid = (M/tm, Dout/tn, Din/tk) with a f32 VMEM accumulator over the K axis.
# ---------------------------------------------------------------------------
def _make_gemm_kernel(relu, has_residual):
    def kernel(*refs):
        if has_residual:
            x_ref, w_ref, b_ref, r_ref, o_ref, acc_ref = refs
        else:
            x_ref, w_ref, b_ref, o_ref, acc_ref = refs

        @pl.when(pl.program_id(2) == 0)
        def _():
            acc_ref[...] = jnp.zeros_like(acc_ref)

        acc_ref[...] += jnp.dot(x_ref[...], w_ref[...],
                                preferred_element_type=jnp.float32)

        @pl.when(pl.program_id(2) == pl.num_programs(2) - 1)
        def _():
            y = acc_ref[...] + b_ref[...].astype(jnp.float32)
            if relu:
                y = jnp.maximum(y, 0.0)
            if has_residual:
                y = y + r_ref[...].astype(jnp.float32)
            o_ref[...] = y.astype(o_ref.dtype)

    return kernel


def gemm(x2d, w, bias, *, residual=None, relu=False, out_dtype=None,
         tm=None, tn=None, tk=None):
    N, Din = x2d.shape
    Dout = w.shape[1]
    d_tm, d_tn, d_tk = _gemm_tile_defaults()
    tm = _choose_tile(N, tm or d_tm, 8)
    tn = _choose_tile(Dout, tn or d_tn, 128)
    tk = _choose_tile(Din, tk or d_tk, 128)
    out_dtype = out_dtype or x2d.dtype

    kernel = _make_gemm_kernel(relu, residual is not None)
    args = [x2d, w, bias.reshape(1, Dout)]
    in_specs = [
        pl.BlockSpec((tm, tk), lambda i, j, k: (i, k)),
        pl.BlockSpec((tk, tn), lambda i, j, k: (k, j)),
        pl.BlockSpec((1, tn), lambda i, j, k: (0, j)),
    ]
    blk = (tm * tk * x2d.dtype.itemsize + tk * tn * w.dtype.itemsize + tn * 4
           + tm * tn * jnp.dtype(out_dtype).itemsize + tm * tn * 4)
    if residual is not None:
        args.append(residual)
        in_specs.append(pl.BlockSpec((tm, tn), lambda i, j, k: (i, j)))
        blk += tm * tn * residual.dtype.itemsize

    return pl.pallas_call(
        kernel,
        out_shape=jax.ShapeDtypeStruct((N, Dout), out_dtype),
        grid=(N // tm, Dout // tn, Din // tk),
        in_specs=in_specs,
        out_specs=pl.BlockSpec((tm, tn), lambda i, j, k: (i, j)),
        scratch_shapes=[pltpu.VMEM((tm, tn), jnp.float32)],
        compiler_params=pltpu.CompilerParams(
            dimension_semantics=("parallel", "parallel", "arbitrary"),
            vmem_limit_bytes=_vmem_limit(blk)),
    )(*args)


# ---------------------------------------------------------------------------
# Kernel 3: multi-head attention core.
#   grid = (B, S//tq): one query tile per step, ALL heads batched in one einsum.
#   qkv is delivered as three block views of the same (B, S, 3, H, dk) array
#   (component selected by the index_map), so there is no HBM transpose and no
#   in-kernel lane-sparse per-head slicing.  Mask is an additive f32 bias.
# ---------------------------------------------------------------------------
def _attention_kernel(q_ref, k_ref, v_ref, bias_ref, o_ref, *, scale):
    q = q_ref[0, :, 0]                 # (tq, H, dk), compute dtype
    k = k_ref[0, :, 0]                 # (S,  H, dk)
    v = v_ref[0, :, 0]                 # (S,  H, dk)
    bias = bias_ref[0]                 # (1, S) f32 additive key-padding bias

    # heads batched in one dot (batch axis H, contraction dk) -> f32 scores
    s = jnp.einsum("qhd,khd->hqk", q, k,
                   preferred_element_type=jnp.float32) * scale
    s = s + bias[None]                 # (H, tq, S) + (1, 1, S)
    s = s - jnp.max(s, axis=-1, keepdims=True)
    p = jnp.exp(s)
    inv = pl.reciprocal(jnp.sum(p, axis=-1, keepdims=True), approx=True)
    p = (p * inv).astype(v.dtype)
    ctx = jnp.einsum("hqk,khd->qhd", p, v, preferred_element_type=jnp.float32)
    o_ref[0] = ctx.astype(o_ref.dtype)
    # TODO(synk): for very long sequence lengths this should become a flash-style
    # online-softmax loop over kv tiles instead of holding full-length K/V per step.


def attention(qkv5, mask_bias, *, num_heads, tq=None):
    B, S, _, H, dk = qkv5.shape
    assert H == num_heads
    scale = 1.0 / math.sqrt(dk)
    # bound the per-step f32 score block (H, tq, S) so VMEM stays modest
    budget = 8 << 20
    max_tq = max(8, (budget // max(1, H * S * 4)) // 8 * 8)
    tq = _choose_tile(S, min(tq or 512, max_tq), 8)

    it = qkv5.dtype.itemsize
    blk = (2 * tq * H * dk * it + 2 * S * H * dk * it + S * 4
           + 2 * H * tq * S * 4)

    kernel = functools.partial(_attention_kernel, scale=scale)
    return pl.pallas_call(
        kernel,
        out_shape=jax.ShapeDtypeStruct((B, S, H, dk), qkv5.dtype),
        grid=(B, S // tq),
        in_specs=[
            pl.BlockSpec((1, tq, 1, H, dk), lambda b, qi: (b, qi, 0, 0, 0)),  # Q tile
            pl.BlockSpec((1, S, 1, H, dk), lambda b, qi: (b, 0, 1, 0, 0)),    # K (full)
            pl.BlockSpec((1, S, 1, H, dk), lambda b, qi: (b, 0, 2, 0, 0)),    # V (full)
            pl.BlockSpec((1, 1, S), lambda b, qi: (b, 0, 0)),                 # mask bias
        ],
        out_specs=pl.BlockSpec((1, tq, H, dk), lambda b, qi: (b, qi, 0, 0)),
        compiler_params=pltpu.CompilerParams(
            dimension_semantics=("parallel", "parallel"),
            vmem_limit_bytes=_vmem_limit(blk)),
    )(qkv5, qkv5, qkv5, mask_bias)


# ---------------------------------------------------------------------------
# one-time parameter preprocessing + EncodeLayer forward
# ---------------------------------------------------------------------------
def prepare_params(p, compute_dtype=jnp.bfloat16):
    """Hoisted out of the forward: fused QKV concat + bf16 weight casts."""
    cd, f32 = compute_dtype, jnp.float32
    return {
        "ln1_g": p["ln1_g"].astype(f32), "ln1_b": p["ln1_b"].astype(f32),
        "ln2_g": p["ln2_g"].astype(f32), "ln2_b": p["ln2_b"].astype(f32),
        "wqkv": jnp.concatenate([p["wq"], p["wk"], p["wv"]], axis=1).astype(cd),
        "bqkv": jnp.concatenate([p["bq"], p["bk"], p["bv"]], axis=0).astype(f32),
        "wo": p["wo"].astype(cd), "bo": p["bo"].astype(f32),
        "w1": p["w1"].astype(cd), "b1": p["b1"].astype(f32),
        "w2": p["w2"].astype(cd), "b2": p["b2"].astype(f32),
    }


def encode_layer_forward(x, mask, p, *, num_heads):
    B, S, D = x.shape
    dk = D // num_heads
    cd = p["wqkv"].dtype
    x2 = x.reshape(B * S, D)
    # additive key-padding bias: 0 where valid, -1e9 where masked (f32)
    mask_bias = (mask.astype(jnp.float32) - 1.0) * 1e9             # (B, 1, S)

    # ---- sublayer[0]: x + W_o( attn( LN1(x) ) ) ----
    qkv = ln_gemm(x2, p["ln1_g"], p["ln1_b"], p["wqkv"], p["bqkv"], out_dtype=cd)
    qkv5 = qkv.reshape(B, S, 3, num_heads, dk)                     # free reshape
    ctx = attention(qkv5, mask_bias, num_heads=num_heads)          # (B, S, H, dk)
    x1 = gemm(ctx.reshape(B * S, D), p["wo"], p["bo"],
              residual=x2, out_dtype=x.dtype)

    # ---- sublayer[1]: x1 + W_2( relu( W_1( LN2(x1) ) ) ) ----
    h = ln_gemm(x1, p["ln2_g"], p["ln2_b"], p["w1"], p["b1"],
                relu=True, out_dtype=cd)
    out = gemm(h, p["w2"], p["b2"], residual=x1, out_dtype=x.dtype)
    return out.reshape(B, S, D)
    # TODO(synk): nn.Dropout is identity at inference; training-mode dropout
    # (PRNG + mask) is not implemented.


# ---------------------------------------------------------------------------
# Pure-JAX f32 reference (mirrors the PyTorch semantics) for a correctness check
# ---------------------------------------------------------------------------
def reference_forward(x, mask, p, *, num_heads):
    B, S, D = x.shape
    Dk = D // num_heads

    def ln(y, g, b):
        mean = y.mean(-1, keepdims=True)
        var = ((y - mean) ** 2).mean(-1, keepdims=True)
        return (y - mean) / jnp.sqrt(var + 1e-5) * g + b

    def lin(y, w, b):
        return y @ w + b

    xn = ln(x, p["ln1_g"], p["ln1_b"])
    q = lin(xn, p["wq"], p["bq"]).reshape(B, S, num_heads, Dk).transpose(0, 2, 1, 3)
    k = lin(xn, p["wk"], p["bk"]).reshape(B, S, num_heads, Dk).transpose(0, 2, 1, 3)
    v = lin(xn, p["wv"], p["bv"]).reshape(B, S, num_heads, Dk).transpose(0, 2, 1, 3)
    scores = jnp.einsum("bhqd,bhkd->bhqk", q, k) / math.sqrt(Dk)
    scores = jnp.where(mask[:, None, :, :] == 0, -1e9, scores)
    pattn = jax.nn.softmax(scores, axis=-1)
    ctx = jnp.einsum("bhqk,bhkd->bhqd", pattn, v).transpose(0, 2, 1, 3).reshape(B, S, D)
    x1 = x + lin(ctx, p["wo"], p["bo"])
    xn2 = ln(x1, p["ln2_g"], p["ln2_b"])
    return x1 + lin(jnp.maximum(lin(xn2, p["w1"], p["b1"]), 0.0), p["w2"], p["b2"])


# ---------------------------------------------------------------------------
if __name__ == "__main__":
    B, S, D, H, DFF = 2, 8, 32, 4, 64

    key = jax.random.PRNGKey(0)
    keys = jax.random.split(key, 16)

    def w(k, shape, scale=0.05):
        return (scale * jax.random.normal(k, shape)).astype(jnp.float32)

    params = {
        "ln1_g": jnp.ones((D,), jnp.float32), "ln1_b": jnp.zeros((D,), jnp.float32),
        "ln2_g": jnp.ones((D,), jnp.float32), "ln2_b": jnp.zeros((D,), jnp.float32),
        "wq": w(keys[0], (D, D)), "bq": w(keys[1], (D,)),
        "wk": w(keys[2], (D, D)), "bk": w(keys[3], (D,)),
        "wv": w(keys[4], (D, D)), "bv": w(keys[5], (D,)),
        "wo": w(keys[6], (D, D)), "bo": w(keys[7], (D,)),
        "w1": w(keys[8], (D, DFF)), "b1": w(keys[9], (DFF,)),
        "w2": w(keys[10], (DFF, D)), "b2": w(keys[11], (D,)),
    }

    x = jax.random.normal(keys[12], (B, S, D), dtype=jnp.float32)
    # key-padding mask (B, 1, S): batch 0 full length, batch 1 last 2 tokens masked
    lengths = jnp.array([S, S - 2])
    mask = (jnp.arange(S)[None, None, :] < lengths[:, None, None]).astype(jnp.float32)

    prepped = prepare_params(params, compute_dtype=jnp.bfloat16)   # one-time preprocessing
    fwd = jax.jit(functools.partial(encode_layer_forward, num_heads=H))
    out = jax.block_until_ready(fwd(x, mask, prepped))

    ref = reference_forward(x, mask, params, num_heads=H)
    assert out.shape == (B, S, D)
    # tolerance accounts for bf16 MXU operands + approx softmax reciprocal
    # (the f32 reference mirrors exact PyTorch semantics)
    err = float(jnp.max(jnp.abs(out - ref)))
    assert jnp.allclose(out, ref, atol=5e-2, rtol=5e-2), err

    print("KERNEL_OK")
</pallas_src>

<mosaic_0001>
module attributes {stable_mosaic.version = 11 : i64} {
  func.func @_ln_gemm_kernel(%arg0: i32, %arg1: i32, %arg2: memref<16x32xf32, #tpu.memory_space<vmem>>, %arg3: memref<1x32xf32, #tpu.memory_space<vmem>>, %arg4: memref<1x32xf32, #tpu.memory_space<vmem>>, %arg5: memref<32x96xbf16, #tpu.memory_space<vmem>>, %arg6: memref<1x96xf32, #tpu.memory_space<vmem>>, %arg7: memref<16x96xbf16, #tpu.memory_space<vmem>>, %arg8: memref<16x32xbf16, #tpu.memory_space<vmem>>) attributes {dimension_semantics = [#tpu.dimension_semantics<parallel>, #tpu.dimension_semantics<arbitrary>], iteration_bounds = array<i64: 1, 1>, scalar_prefetch = 0 : i64, scratch_operands = 1 : i64, tpu.core_type = #tpu.core_type<tc>, window_params = [{transform_indices = @transform_0, window_bounds = array<i64: 16, 32>}, {pipeline_mode = #tpu.pipeline_mode<synchronous>, transform_indices = @transform_1, window_bounds = array<i64: 1, 32>}, {pipeline_mode = #tpu.pipeline_mode<synchronous>, transform_indices = @transform_2, window_bounds = array<i64: 1, 32>}, {transform_indices = @transform_3, window_bounds = array<i64: 32, 96>}, {transform_indices = @transform_4, window_bounds = array<i64: 1, 96>}, {transform_indices = @transform_5, window_bounds = array<i64: 16, 96>}]} {
    %c0_i32 = arith.constant 0 : i32
    %0 = arith.cmpi eq, %arg1, %c0_i32 : i32
    %1 = arith.extui %0 : i1 to i32
    %c0_i32_0 = arith.constant 0 : i32
    %2 = arith.cmpi ne, %1, %c0_i32_0 : i32
    scf.if %2 {
      %c0_8 = arith.constant 0 : index
      %c0_9 = arith.constant 0 : index
      %11 = vector.load %arg2[%c0_8, %c0_9] : memref<16x32xf32, #tpu.memory_space<vmem>>, vector<16x32xf32>
      %cst_10 = arith.constant dense<0.000000e+00> : vector<16xf32>
      %12 = vector.multi_reduction <add>, %11, %cst_10 [1] : vector<16x32xf32> to vector<16xf32>
      %13 = vector.shape_cast %12 : vector<16xf32> to vector<16x1xf32>
      %cst_11 = arith.constant 3.200000e+01 : f32
      %14 = vector.broadcast %cst_11 : f32 to vector<16x1xf32>
      %15 = arith.divf %13, %14 : vector<16x1xf32>
      %16 = vector.broadcast %15 : vector<16x1xf32> to vector<16x32xf32>
      %17 = arith.subf %11, %16 : vector<16x32xf32>
      %18 = arith.mulf %17, %17 : vector<16x32xf32>
      %cst_12 = arith.constant dense<0.000000e+00> : vector<16xf32>
      %19 = vector.multi_reduction <add>, %18, %cst_12 [1] : vector<16x32xf32> to vector<16xf32>
      %20 = vector.shape_cast %19 : vector<16xf32> to vector<16x1xf32>
      %cst_13 = arith.constant 3.200000e+01 : f32
      %21 = vector.broadcast %cst_13 : f32 to vector<16x1xf32>
      %22 = arith.divf %20, %21 : vector<16x1xf32>
      %23 = vector.broadcast %15 : vector<16x1xf32> to vector<16x32xf32>
      %24 = arith.subf %11, %23 : vector<16x32xf32>
      %cst_14 = arith.constant 9.99999974E-6 : f32
      %25 = vector.broadcast %cst_14 : f32 to vector<16x1xf32>
      %26 = arith.addf %22, %25 : vector<16x1xf32>
      %27 = math.rsqrt %26 : vector<16x1xf32>
      %28 = vector.broadcast %27 : vector<16x1xf32> to vector<16x32xf32>
      %29 = arith.mulf %24, %28 : vector<16x32xf32>
      %c0_15 = arith.constant 0 : index
      %c0_16 = arith.constant 0 : index
      %30 = vector.load %arg3[%c0_15, %c0_16] : memref<1x32xf32, #tpu.memory_space<vmem>>, vector<1x32xf32>
      %31 = vector.broadcast %30 : vector<1x32xf32> to vector<16x32xf32>
      %32 = arith.mulf %29, %31 : vector<16x32xf32>
      %c0_17 = arith.constant 0 : index
      %c0_18 = arith.constant 0 : index
      %33 = vector.load %arg4[%c0_17, %c0_18] : memref<1x32xf32, #tpu.memory_space<vmem>>, vector<1x32xf32>
      %34 = vector.broadcast %33 : vector<1x32xf32> to vector<16x32xf32>
      %35 = arith.addf %32, %34 : vector<16x32xf32>
      %36 = arith.truncf %35 : vector<16x32xf32> to vector<16x32xbf16>
      %c0_19 = arith.constant 0 : index
      %c0_20 = arith.constant 0 : index
      %37 = vector.load %arg8[%c0_19, %c0_20] : memref<16x32xbf16, #tpu.memory_space<vmem>>, vector<16x32xbf16>
      tpu.vector_store %arg8[%c0_19, %c0_20], %36 {strides = array<i32>} : memref<16x32xbf16, #tpu.memory_space<vmem>>, vector<16x32xbf16>,
    } else {
    }
    %c0 = arith.constant 0 : index
    %c0_1 = arith.constant 0 : index
    %3 = vector.load %arg8[%c0, %c0_1] : memref<16x32xbf16, #tpu.memory_space<vmem>>, vector<16x32xbf16>
    %c0_2 = arith.constant 0 : index
    %c0_3 = arith.constant 0 : index
    %4 = vector.load %arg5[%c0_2, %c0_3] : memref<32x96xbf16, #tpu.memory_space<vmem>>, vector<32x96xbf16>
    %cst = arith.constant dense<0.000000e+00> : vector<16x96xf32>
    %5 = tpu.matmul %3, %4, %cst {dimension_numbers = #tpu.dot_dimension_numbers<[1], [0], [0], [1], [0, 0, 1, 1], [], []>} : vector<16x32xbf16>, vector<32x96xbf16>, vector<16x96xf32> -> vector<16x96xf32>
    %c0_4 = arith.constant 0 : index
    %c0_5 = arith.constant 0 : index
    %6 = vector.load %arg6[%c0_4, %c0_5] : memref<1x96xf32, #tpu.memory_space<vmem>>, vector<1x96xf32>
    %7 = vector.broadcast %6 : vector<1x96xf32> to vector<16x96xf32>
    %8 = arith.addf %5, %7 : vector<16x96xf32>
    %9 = arith.truncf %8 : vector<16x96xf32> to vector<16x96xbf16>
    %c0_6 = arith.constant 0 : index
    %c0_7 = arith.constant 0 : index
    %10 = vector.load %arg7[%c0_6, %c0_7] : memref<16x96xbf16, #tpu.memory_space<vmem>>, vector<16x96xbf16>
    tpu.vector_store %arg7[%c0_6, %c0_7], %9 {strides = array<i32>} : memref<16x96xbf16, #tpu.memory_space<vmem>>, vector<16x96xbf16>,
    return
  }
  func.func @transform_0(%arg0: i32, %arg1: i32) -> (i32, i32) {
    %c0_i32 = arith.constant 0 : i32
    %c0_i32_0 = arith.constant 0 : i32
    return %arg0, %c0_i32 : i32, i32
  }
  func.func @transform_1(%arg0: i32, %arg1: i32) -> (i32, i32) {
    %c0_i32 = arith.constant 0 : i32
    %c0_i32_0 = arith.constant 0 : i32
    %c0_i32_1 = arith.constant 0 : i32
    return %c0_i32, %c0_i32_0 : i32, i32
  }
  func.func @transform_2(%arg0: i32, %arg1: i32) -> (i32, i32) {
    %c0_i32 = arith.constant 0 : i32
    %c0_i32_0 = arith.constant 0 : i32
    %c0_i32_1 = arith.constant 0 : i32
    return %c0_i32, %c0_i32_0 : i32, i32
  }
  func.func @transform_3(%arg0: i32, %arg1: i32) -> (i32, i32) {
    %c0_i32 = arith.constant 0 : i32
    %c0_i32_0 = arith.constant 0 : i32
    return %c0_i32, %arg1 : i32, i32
  }
  func.func @transform_4(%arg0: i32, %arg1: i32) -> (i32, i32) {
    %c0_i32 = arith.constant 0 : i32
    %c0_i32_0 = arith.constant 0 : i32
    return %c0_i32, %arg1 : i32, i32
  }
  func.func @transform_5(%arg0: i32, %arg1: i32) -> (i32, i32) {
    %c0_i32 = arith.constant 0 : i32
    return %arg0, %arg1 : i32, i32
  }
}

module attributes {stable_mosaic.version = 11 : i64} {
  func.func @_attention_kernel(%arg0: i32, %arg1: i32, %arg2: memref<1x8x1x4x8xbf16, #tpu.memory_space<vmem>>, %arg3: memref<1x8x1x4x8xbf16, #tpu.memory_space<vmem>>, %arg4: memref<1x8x1x4x8xbf16, #tpu.memory_space<vmem>>, %arg5: memref<1x1x8xf32, #tpu.memory_space<vmem>>, %arg6: memref<1x8x4x8xbf16, #tpu.memory_space<vmem>>) attributes {dimension_semantics = [#tpu.dimension_semantics<parallel>, #tpu.dimension_semantics<parallel>], iteration_bounds = array<i64: 2, 1>, scalar_prefetch = 0 : i64, scratch_operands = 0 : i64, tpu.core_type = #tpu.core_type<tc>, window_params = [{transform_indices = @transform_0, window_bounds = array<i64: 1, 8, 1, 4, 8>}, {transform_indices = @transform_1, window_bounds = array<i64: 1, 8, 1, 4, 8>}, {transform_indices = @transform_2, window_bounds = array<i64: 1, 8, 1, 4, 8>}, {transform_indices = @transform_3, window_bounds = array<i64: 1, 1, 8>}, {transform_indices = @transform_4, window_bounds = array<i64: 1, 8, 4, 8>}]} {
    %c0 = arith.constant 0 : index
    %c0_0 = arith.constant 0 : index
    %c0_1 = arith.constant 0 : index
    %c0_2 = arith.constant 0 : index
    %c0_3 = arith.constant 0 : index
    %0 = vector.load %arg2[%c0, %c0_0, %c0_1, %c0_2, %c0_3] : memref<1x8x1x4x8xbf16, #tpu.memory_space<vmem>>, vector<1x8x1x4x8xbf16>
    %1 = vector.shape_cast %0 : vector<1x8x1x4x8xbf16> to vector<8x4x8xbf16>
    %c0_4 = arith.constant 0 : index
    %c0_5 = arith.constant 0 : index
    %c0_6 = arith.constant 0 : index
    %c0_7 = arith.constant 0 : index
    %c0_8 = arith.constant 0 : index
    %2 = vector.load %arg3[%c0_4, %c0_5, %c0_6, %c0_7, %c0_8] : memref<1x8x1x4x8xbf16, #tpu.memory_space<vmem>>, vector<1x8x1x4x8xbf16>
    %3 = vector.shape_cast %2 : vector<1x8x1x4x8xbf16> to vector<8x4x8xbf16>
    %c0_9 = arith.constant 0 : index
    %c0_10 = arith.constant 0 : index
    %c0_11 = arith.constant 0 : index
    %c0_12 = arith.constant 0 : index
    %c0_13 = arith.constant 0 : index
    %4 = vector.load %arg4[%c0_9, %c0_10, %c0_11, %c0_12, %c0_13] : memref<1x8x1x4x8xbf16, #tpu.memory_space<vmem>>, vector<1x8x1x4x8xbf16>
    %5 = vector.shape_cast %4 : vector<1x8x1x4x8xbf16> to vector<8x4x8xbf16>
    %c0_14 = arith.constant 0 : index
    %c0_15 = arith.constant 0 : index
    %c0_16 = arith.constant 0 : index
    %6 = vector.load %arg5[%c0_14, %c0_15, %c0_16] : memref<1x1x8xf32, #tpu.memory_space<vmem>>, vector<1x1x8xf32>
    %7 = vector.shape_cast %6 : vector<1x1x8xf32> to vector<1x8xf32>
    "tpu.trace_start"() <{level = 10 : i32, message = "qhd,khd->hqk"}> : () -> ()
    %cst = arith.constant dense<0.000000e+00> : vector<4x8x8xf32>
    %8 = tpu.matmul %1, %3, %cst {dimension_numbers = #tpu.dot_dimension_numbers<[2], [2], [0], [0], [0, 1, 0, 0, 1, 0], [1], [1]>} : vector<8x4x8xbf16>, vector<8x4x8xbf16>, vector<4x8x8xf32> -> vector<4x8x8xf32>
    "tpu.trace_stop"() : () -> ()
    %cst_17 = arith.constant 0.353553385 : f32
    %9 = vector.broadcast %cst_17 : f32 to vector<4x8x8xf32>
    %10 = arith.mulf %8, %9 : vector<4x8x8xf32>
    %11 = vector.shape_cast %7 : vector<1x8xf32> to vector<1x1x8xf32>
    %12 = vector.broadcast %11 : vector<1x1x8xf32> to vector<4x8x8xf32>
    %13 = arith.addf %10, %12 : vector<4x8x8xf32>
    %cst_18 = arith.constant dense<0xFF800000> : vector<4x8xf32>
    %14 = vector.multi_reduction <maximumf>, %13, %cst_18 [2] : vector<4x8x8xf32> to vector<4x8xf32>
    %15 = vector.shape_cast %14 : vector<4x8xf32> to vector<4x8x1xf32>
    %16 = vector.broadcast %15 : vector<4x8x1xf32> to vector<4x8x8xf32>
    %17 = arith.subf %13, %16 : vector<4x8x8xf32>
    %18 = math.exp %17 : vector<4x8x8xf32>
    %cst_19 = arith.constant dense<0.000000e+00> : vector<4x8xf32>
    %19 = vector.multi_reduction <add>, %18, %cst_19 [2] : vector<4x8x8xf32> to vector<4x8xf32>
    %20 = vector.shape_cast %19 : vector<4x8xf32> to vector<4x8x1xf32>
    %21 = tpu.reciprocal %20 {approx = true} : vector<4x8x1xf32> -> vector<4x8x1xf32>
    %22 = vector.broadcast %21 : vector<4x8x1xf32> to vector<4x8x8xf32>
    %23 = arith.mulf %18, %22 : vector<4x8x8xf32>
    %24 = arith.truncf %23 : vector<4x8x8xf32> to vector<4x8x8xbf16>
    "tpu.trace_start"() <{level = 10 : i32, message = "hqk,khd->qhd"}> : () -> ()
    %cst_20 = arith.constant dense<0.000000e+00> : vector<4x8x8xf32>
    %25 = tpu.matmul %5, %24, %cst_20 {dimension_numbers = #tpu.dot_dimension_numbers<[0], [2], [2], [1], [0, 1, 0, 2, 1, 1], [1], [0]>} : vector<8x4x8xbf16>, vector<4x8x8xbf16>, vector<4x8x8xf32> -> vector<4x8x8xf32>
    %26 = tpu.transpose %25, [2, 0, 1] : vector<4x8x8xf32> -> vector<8x4x8xf32>
    "tpu.trace_stop"() : () -> ()
    %27 = arith.truncf %26 : vector<8x4x8xf32> to vector<8x4x8xbf16>
    %c0_21 = arith.constant 0 : index
    %c0_22 = arith.constant 0 : index
    %c0_23 = arith.constant 0 : index
    %c0_24 = arith.constant 0 : index
    %28 = vector.load %arg6[%c0_21, %c0_22, %c0_23, %c0_24] : memref<1x8x4x8xbf16, #tpu.memory_space<vmem>>, vector<1x8x4x8xbf16>
    %29 = vector.shape_cast %28 : vector<1x8x4x8xbf16> to vector<8x4x8xbf16>
    %30 = vector.shape_cast %27 : vector<8x4x8xbf16> to vector<1x8x4x8xbf16>
    tpu.vector_store %arg6[%c0_21, %c0_22, %c0_23, %c0_24], %30 {strides = array<i32>} : memref<1x8x4x8xbf16, #tpu.memory_space<vmem>>, vector<1x8x4x8xbf16>,
    return
  }
  func.func @transform_0(%arg0: i32, %arg1: i32) -> (i32, i32, i32, i32, i32) {
    %c0_i32 = arith.constant 0 : i32
    %c0_i32_0 = arith.constant 0 : i32
    %c0_i32_1 = arith.constant 0 : i32
    %c0_i32_2 = arith.constant 0 : i32
    return %arg0, %arg1, %c0_i32, %c0_i32_0, %c0_i32_1 : i32, i32, i32, i32, i32
  }
  func.func @transform_1(%arg0: i32, %arg1: i32) -> (i32, i32, i32, i32, i32) {
    %c0_i32 = arith.constant 0 : i32
    %c1_i32 = arith.constant 1 : i32
    %c0_i32_0 = arith.constant 0 : i32
    %c0_i32_1 = arith.constant 0 : i32
    %c0_i32_2 = arith.constant 0 : i32
    return %arg0, %c0_i32, %c1_i32, %c0_i32_0, %c0_i32_1 : i32, i32, i32, i32, i32
  }
  func.func @transform_2(%arg0: i32, %arg1: i32) -> (i32, i32, i32, i32, i32) {
    %c0_i32 = arith.constant 0 : i32
    %c2_i32 = arith.constant 2 : i32
    %c0_i32_0 = arith.constant 0 : i32
    %c0_i32_1 = arith.constant 0 : i32
    %c0_i32_2 = arith.constant 0 : i32
    return %arg0, %c0_i32, %c2_i32, %c0_i32_0, %c0_i32_1 : i32, i32, i32, i32, i32
  }
  func.func @transform_3(%arg0: i32, %arg1: i32) -> (i32, i32, i32) {
    %c0_i32 = arith.constant 0 : i32
    %c0_i32_0 = arith.constant 0 : i32
    %c0_i32_1 = arith.constant 0 : i32
    return %arg0, %c0_i32, %c0_i32_0 : i32, i32, i32
  }
  func.func @transform_4(%arg0: i32, %arg1: i32) -> (i32, i32, i32, i32) {
    %c0_i32 = arith.constant 0 : i32
    %c0_i32_0 = arith.constant 0 : i32
    %c0_i32_1 = arith.constant 0 : i32
    return %arg0, %arg1, %c0_i32, %c0_i32_0 : i32, i32, i32, i32
  }
}

module attributes {stable_mosaic.version = 11 : i64} {
  func.func @kernel(%arg0: i32, %arg1: i32, %arg2: i32, %arg3: memref<16x32xbf16, #tpu.memory_space<vmem>>, %arg4: memref<32x32xbf16, #tpu.memory_space<vmem>>, %arg5: memref<1x32xf32, #tpu.memory_space<vmem>>, %arg6: memref<16x32xf32, #tpu.memory_space<vmem>>, %arg7: memref<16x32xf32, #tpu.memory_space<vmem>>, %arg8: memref<16x32xf32, #tpu.memory_space<vmem>>) attributes {dimension_semantics = [#tpu.dimension_semantics<parallel>, #tpu.dimension_semantics<parallel>, #tpu.dimension_semantics<arbitrary>], iteration_bounds = array<i64: 1, 1, 1>, scalar_prefetch = 0 : i64, scratch_operands = 1 : i64, tpu.core_type = #tpu.core_type<tc>, window_params = [{transform_indices = @transform_0, window_bounds = array<i64: 16, 32>}, {transform_indices = @transform_1, window_bounds = array<i64: 32, 32>}, {transform_indices = @transform_2, window_bounds = array<i64: 1, 32>}, {transform_indices = @transform_3, window_bounds = array<i64: 16, 32>}, {transform_indices = @transform_4, window_bounds = array<i64: 16, 32>}]} {
    %c0_i32 = arith.constant 0 : i32
    %0 = arith.cmpi eq, %arg2, %c0_i32 : i32
    %1 = arith.extui %0 : i1 to i32
    %c0_i32_0 = arith.constant 0 : i32
    %2 = arith.cmpi ne, %1, %c0_i32_0 : i32
    scf.if %2 {
      %cst_10 = arith.constant 0.000000e+00 : f32
      %12 = vector.broadcast %cst_10 : f32 to vector<16x32xf32>
      %c0_11 = arith.constant 0 : index
      %c0_12 = arith.constant 0 : index
      %13 = vector.load %arg8[%c0_11, %c0_12] : memref<16x32xf32, #tpu.memory_space<vmem>>, vector<16x32xf32>
      tpu.vector_store %arg8[%c0_11, %c0_12], %12 {strides = array<i32>} : memref<16x32xf32, #tpu.memory_space<vmem>>, vector<16x32xf32>,
    } else {
    }
    %c0 = arith.constant 0 : index
    %c0_1 = arith.constant 0 : index
    %3 = vector.load %arg8[%c0, %c0_1] : memref<16x32xf32, #tpu.memory_space<vmem>>, vector<16x32xf32>
    %c0_2 = arith.constant 0 : index
    %c0_3 = arith.constant 0 : index
    %4 = vector.load %arg3[%c0_2, %c0_3] : memref<16x32xbf16, #tpu.memory_space<vmem>>, vector<16x32xbf16>
    %c0_4 = arith.constant 0 : index
    %c0_5 = arith.constant 0 : index
    %5 = vector.load %arg4[%c0_4, %c0_5] : memref<32x32xbf16, #tpu.memory_space<vmem>>, vector<32x32xbf16>
    %cst = arith.constant dense<0.000000e+00> : vector<16x32xf32>
    %6 = tpu.matmul %4, %5, %cst {dimension_numbers = #tpu.dot_dimension_numbers<[1], [0], [0], [1], [0, 0, 1, 1], [], []>} : vector<16x32xbf16>, vector<32x32xbf16>, vector<16x32xf32> -> vector<16x32xf32>
    %7 = arith.addf %3, %6 : vector<16x32xf32>
    %c0_6 = arith.constant 0 : index
    %c0_7 = arith.constant 0 : index
    %8 = vector.load %arg8[%c0_6, %c0_7] : memref<16x32xf32, #tpu.memory_space<vmem>>, vector<16x32xf32>
    tpu.vector_store %arg8[%c0_6, %c0_7], %7 {strides = array<i32>} : memref<16x32xf32, #tpu.memory_space<vmem>>, vector<16x32xf32>,
    %c0_i32_8 = arith.constant 0 : i32
    %9 = arith.cmpi eq, %arg2, %c0_i32_8 : i32
    %10 = arith.extui %9 : i1 to i32
    %c0_i32_9 = arith.constant 0 : i32
    %11 = arith.cmpi ne, %10, %c0_i32_9 : i32
    scf.if %11 {
      %c0_10 = arith.constant 0 : index
      %c0_11 = arith.constant 0 : index
      %12 = vector.load %arg8[%c0_10, %c0_11] : memref<16x32xf32, #tpu.memory_space<vmem>>, vector<16x32xf32>
      %c0_12 = arith.constant 0 : index
      %c0_13 = arith.constant 0 : index
      %13 = vector.load %arg5[%c0_12, %c0_13] : memref<1x32xf32, #tpu.memory_space<vmem>>, vector<1x32xf32>
      %14 = vector.broadcast %13 : vector<1x32xf32> to vector<16x32xf32>
      %15 = arith.addf %12, %14 : vector<16x32xf32>
      %c0_14 = arith.constant 0 : index
      %c0_15 = arith.constant 0 : index
      %16 = vector.load %arg6[%c0_14, %c0_15] : memref<16x32xf32, #tpu.memory_space<vmem>>, vector<16x32xf32>
      %17 = arith.addf %15, %16 : vector<16x32xf32>
      %c0_16 = arith.constant 0 : index
      %c0_17 = arith.constant 0 : index
      %18 = vector.load %arg7[%c0_16, %c0_17] : memref<16x32xf32, #tpu.memory_space<vmem>>, vector<16x32xf32>
      tpu.vector_store %arg7[%c0_16, %c0_17], %17 {strides = array<i32>} : memref<16x32xf32, #tpu.memory_space<vmem>>, vector<16x32xf32>,
    } else {
    }
    return
  }
  func.func @transform_0(%arg0: i32, %arg1: i32, %arg2: i32) -> (i32, i32) {
    %c0_i32 = arith.constant 0 : i32
    return %arg0, %arg2 : i32, i32
  }
  func.func @transform_1(%arg0: i32, %arg1: i32, %arg2: i32) -> (i32, i32) {
    %c0_i32 = arith.constant 0 : i32
    return %arg2, %arg1 : i32, i32
  }
  func.func @transform_2(%arg0: i32, %arg1: i32, %arg2: i32) -> (i32, i32) {
    %c0_i32 = arith.constant 0 : i32
    %c0_i32_0 = arith.constant 0 : i32
    return %c0_i32, %arg1 : i32, i32
  }
  func.func @transform_3(%arg0: i32, %arg1: i32, %arg2: i32) -> (i32, i32) {
    %c0_i32 = arith.constant 0 : i32
    return %arg0, %arg1 : i32, i32
  }
  func.func @transform_4(%arg0: i32, %arg1: i32, %arg2: i32) -> (i32, i32) {
    %c0_i32 = arith.constant 0 : i32
    return %arg0, %arg1 : i32, i32
  }
}

module attributes {stable_mosaic.version = 11 : i64} {
  func.func @_ln_gemm_kernel(%arg0: i32, %arg1: i32, %arg2: memref<16x32xf32, #tpu.memory_space<vmem>>, %arg3: memref<1x32xf32, #tpu.memory_space<vmem>>, %arg4: memref<1x32xf32, #tpu.memory_space<vmem>>, %arg5: memref<32x64xbf16, #tpu.memory_space<vmem>>, %arg6: memref<1x64xf32, #tpu.memory_space<vmem>>, %arg7: memref<16x64xbf16, #tpu.memory_space<vmem>>, %arg8: memref<16x32xbf16, #tpu.memory_space<vmem>>) attributes {dimension_semantics = [#tpu.dimension_semantics<parallel>, #tpu.dimension_semantics<arbitrary>], iteration_bounds = array<i64: 1, 1>, scalar_prefetch = 0 : i64, scratch_operands = 1 : i64, tpu.core_type = #tpu.core_type<tc>, window_params = [{transform_indices = @transform_0, window_bounds = array<i64: 16, 32>}, {pipeline_mode = #tpu.pipeline_mode<synchronous>, transform_indices = @transform_1, window_bounds = array<i64: 1, 32>}, {pipeline_mode = #tpu.pipeline_mode<synchronous>, transform_indices = @transform_2, window_bounds = array<i64: 1, 32>}, {transform_indices = @transform_3, window_bounds = array<i64: 32, 64>}, {transform_indices = @transform_4, window_bounds = array<i64: 1, 64>}, {transform_indices = @transform_5, window_bounds = array<i64: 16, 64>}]} {
    %c0_i32 = arith.constant 0 : i32
    %0 = arith.cmpi eq, %arg1, %c0_i32 : i32
    %1 = arith.extui %0 : i1 to i32
    %c0_i32_0 = arith.constant 0 : i32
    %2 = arith.cmpi ne, %1, %c0_i32_0 : i32
    scf.if %2 {
      %c0_9 = arith.constant 0 : index
      %c0_10 = arith.constant 0 : index
      %13 = vector.load %arg2[%c0_9, %c0_10] : memref<16x32xf32, #tpu.memory_space<vmem>>, vector<16x32xf32>
      %cst_11 = arith.constant dense<0.000000e+00> : vector<16xf32>
      %14 = vector.multi_reduction <add>, %13, %cst_11 [1] : vector<16x32xf32> to vector<16xf32>
      %15 = vector.shape_cast %14 : vector<16xf32> to vector<16x1xf32>
      %cst_12 = arith.constant 3.200000e+01 : f32
      %16 = vector.broadcast %cst_12 : f32 to vector<16x1xf32>
      %17 = arith.divf %15, %16 : vector<16x1xf32>
      %18 = vector.broadcast %17 : vector<16x1xf32> to vector<16x32xf32>
      %19 = arith.subf %13, %18 : vector<16x32xf32>
      %20 = arith.mulf %19, %19 : vector<16x32xf32>
      %cst_13 = arith.constant dense<0.000000e+00> : vector<16xf32>
      %21 = vector.multi_reduction <add>, %20, %cst_13 [1] : vector<16x32xf32> to vector<16xf32>
      %22 = vector.shape_cast %21 : vector<16xf32> to vector<16x1xf32>
      %cst_14 = arith.constant 3.200000e+01 : f32
      %23 = vector.broadcast %cst_14 : f32 to vector<16x1xf32>
      %24 = arith.divf %22, %23 : vector<16x1xf32>
      %25 = vector.broadcast %17 : vector<16x1xf32> to vector<16x32xf32>
      %26 = arith.subf %13, %25 : vector<16x32xf32>
      %cst_15 = arith.constant 9.99999974E-6 : f32
      %27 = vector.broadcast %cst_15 : f32 to vector<16x1xf32>
      %28 = arith.addf %24, %27 : vector<16x1xf32>
      %29 = math.rsqrt %28 : vector<16x1xf32>
      %30 = vector.broadcast %29 : vector<16x1xf32> to vector<16x32xf32>
      %31 = arith.mulf %26, %30 : vector<16x32xf32>
      %c0_16 = arith.constant 0 : index
      %c0_17 = arith.constant 0 : index
      %32 = vector.load %arg3[%c0_16, %c0_17] : memref<1x32xf32, #tpu.memory_space<vmem>>, vector<1x32xf32>
      %33 = vector.broadcast %32 : vector<1x32xf32> to vector<16x32xf32>
      %34 = arith.mulf %31, %33 : vector<16x32xf32>
      %c0_18 = arith.constant 0 : index
      %c0_19 = arith.constant 0 : index
      %35 = vector.load %arg4[%c0_18, %c0_19] : memref<1x32xf32, #tpu.memory_space<vmem>>, vector<1x32xf32>
      %36 = vector.broadcast %35 : vector<1x32xf32> to vector<16x32xf32>
      %37 = arith.addf %34, %36 : vector<16x32xf32>
      %38 = arith.truncf %37 : vector<16x32xf32> to vector<16x32xbf16>
      %c0_20 = arith.constant 0 : index
      %c0_21 = arith.constant 0 : index
      %39 = vector.load %arg8[%c0_20, %c0_21] : memref<16x32xbf16, #tpu.memory_space<vmem>>, vector<16x32xbf16>
      tpu.vector_store %arg8[%c0_20, %c0_21], %38 {strides = array<i32>} : memref<16x32xbf16, #tpu.memory_space<vmem>>, vector<16x32xbf16>,
    } else {
    }
    %c0 = arith.constant 0 : index
    %c0_1 = arith.constant 0 : index
    %3 = vector.load %arg8[%c0, %c0_1] : memref<16x32xbf16, #tpu.memory_space<vmem>>, vector<16x32xbf16>
    %c0_2 = arith.constant 0 : index
    %c0_3 = arith.constant 0 : index
    %4 = vector.load %arg5[%c0_2, %c0_3] : memref<32x64xbf16, #tpu.memory_space<vmem>>, vector<32x64xbf16>
    %cst = arith.constant dense<0.000000e+00> : vector<16x64xf32>
    %5 = tpu.matmul %3, %4, %cst {dimension_numbers = #tpu.dot_dimension_numbers<[1], [0], [0], [1], [0, 0, 1, 1], [], []>} : vector<16x32xbf16>, vector<32x64xbf16>, vector<16x64xf32> -> vector<16x64xf32>
    %c0_4 = arith.constant 0 : index
    %c0_5 = arith.constant 0 : index
    %6 = vector.load %arg6[%c0_4, %c0_5] : memref<1x64xf32, #tpu.memory_space<vmem>>, vector<1x64xf32>
    %7 = vector.broadcast %6 : vector<1x64xf32> to vector<16x64xf32>
    %8 = arith.addf %5, %7 : vector<16x64xf32>
    %cst_6 = arith.constant 0.000000e+00 : f32
    %9 = vector.broadcast %cst_6 : f32 to vector<16x64xf32>
    %10 = arith.maximumf %8, %9 : vector<16x64xf32>
    %11 = arith.truncf %10 : vector<16x64xf32> to vector<16x64xbf16>
    %c0_7 = arith.constant 0 : index
    %c0_8 = arith.constant 0 : index
    %12 = vector.load %arg7[%c0_7, %c0_8] : memref<16x64xbf16, #tpu.memory_space<vmem>>, vector<16x64xbf16>
    tpu.vector_store %arg7[%c0_7, %c0_8], %11 {strides = array<i32>} : memref<16x64xbf16, #tpu.memory_space<vmem>>, vector<16x64xbf16>,
    return
  }
  func.func @transform_0(%arg0: i32, %arg1: i32) -> (i32, i32) {
    %c0_i32 = arith.constant 0 : i32
    %c0_i32_0 = arith.constant 0 : i32
    return %arg0, %c0_i32 : i32, i32
  }
  func.func @transform_1(%arg0: i32, %arg1: i32) -> (i32, i32) {
    %c0_i32 = arith.constant 0 : i32
    %c0_i32_0 = arith.constant 0 : i32
    %c0_i32_1 = arith.constant 0 : i32
    return %c0_i32, %c0_i32_0 : i32, i32
  }
  func.func @transform_2(%arg0: i32, %arg1: i32) -> (i32, i32) {
    %c0_i32 = arith.constant 0 : i32
    %c0_i32_0 = arith.constant 0 : i32
    %c0_i32_1 = arith.constant 0 : i32
    return %c0_i32, %c0_i32_0 : i32, i32
  }
  func.func @transform_3(%arg0: i32, %arg1: i32) -> (i32, i32) {
    %c0_i32 = arith.constant 0 : i32
    %c0_i32_0 = arith.constant 0 : i32
    return %c0_i32, %arg1 : i32, i32
  }
  func.func @transform_4(%arg0: i32, %arg1: i32) -> (i32, i32) {
    %c0_i32 = arith.constant 0 : i32
    %c0_i32_0 = arith.constant 0 : i32
    return %c0_i32, %arg1 : i32, i32
  }
  func.func @transform_5(%arg0: i32, %arg1: i32) -> (i32, i32) {
    %c0_i32 = arith.constant 0 : i32
    return %arg0, %arg1 : i32, i32
  }
}

module attributes {stable_mosaic.version = 11 : i64} {
  func.func @kernel(%arg0: i32, %arg1: i32, %arg2: i32, %arg3: memref<16x64xbf16, #tpu.memory_space<vmem>>, %arg4: memref<64x32xbf16, #tpu.memory_space<vmem>>, %arg5: memref<1x32xf32, #tpu.memory_space<vmem>>, %arg6: memref<16x32xf32, #tpu.memory_space<vmem>>, %arg7: memref<16x32xf32, #tpu.memory_space<vmem>>, %arg8: memref<16x32xf32, #tpu.memory_space<vmem>>) attributes {dimension_semantics = [#tpu.dimension_semantics<parallel>, #tpu.dimension_semantics<parallel>, #tpu.dimension_semantics<arbitrary>], iteration_bounds = array<i64: 1, 1, 1>, scalar_prefetch = 0 : i64, scratch_operands = 1 : i64, tpu.core_type = #tpu.core_type<tc>, window_params = [{transform_indices = @transform_0, window_bounds = array<i64: 16, 64>}, {transform_indices = @transform_1, window_bounds = array<i64: 64, 32>}, {transform_indices = @transform_2, window_bounds = array<i64: 1, 32>}, {transform_indices = @transform_3, window_bounds = array<i64: 16, 32>}, {transform_indices = @transform_4, window_bounds = array<i64: 16, 32>}]} {
    %c0_i32 = arith.constant 0 : i32
    %0 = arith.cmpi eq, %arg2, %c0_i32 : i32
    %1 = arith.extui %0 : i1 to i32
    %c0_i32_0 = arith.constant 0 : i32
    %2 = arith.cmpi ne, %1, %c0_i32_0 : i32
    scf.if %2 {
      %cst_10 = arith.constant 0.000000e+00 : f32
      %12 = vector.broadcast %cst_10 : f32 to vector<16x32xf32>
      %c0_11 = arith.constant 0 : index
      %c0_12 = arith.constant 0 : index
      %13 = vector.load %arg8[%c0_11, %c0_12] : memref<16x32xf32, #tpu.memory_space<vmem>>, vector<16x32xf32>
      tpu.vector_store %arg8[%c0_11, %c0_12], %12 {strides = array<i32>} : memref<16x32xf32, #tpu.memory_space<vmem>>, vector<16x32xf32>,
    } else {
    }
    %c0 = arith.constant 0 : index
    %c0_1 = arith.constant 0 : index
    %3 = vector.load %arg8[%c0, %c0_1] : memref<16x32xf32, #tpu.memory_space<vmem>>, vector<16x32xf32>
    %c0_2 = arith.constant 0 : index
    %c0_3 = arith.constant 0 : index
    %4 = vector.load %arg3[%c0_2, %c0_3] : memref<16x64xbf16, #tpu.memory_space<vmem>>, vector<16x64xbf16>
    %c0_4 = arith.constant 0 : index
    %c0_5 = arith.constant 0 : index
    %5 = vector.load %arg4[%c0_4, %c0_5] : memref<64x32xbf16, #tpu.memory_space<vmem>>, vector<64x32xbf16>
    %cst = arith.constant dense<0.000000e+00> : vector<16x32xf32>
    %6 = tpu.matmul %4, %5, %cst {dimension_numbers = #tpu.dot_dimension_numbers<[1], [0], [0], [1], [0, 0, 1, 1], [], []>} : vector<16x64xbf16>, vector<64x32xbf16>, vector<16x32xf32> -> vector<16x32xf32>
    %7 = arith.addf %3, %6 : vector<16x32xf32>
    %c0_6 = arith.constant 0 : index
    %c0_7 = arith.constant 0 : index
    %8 = vector.load %arg8[%c0_6, %c0_7] : memref<16x32xf32, #tpu.memory_space<vmem>>, vector<16x32xf32>
    tpu.vector_store %arg8[%c0_6, %c0_7], %7 {strides = array<i32>} : memref<16x32xf32, #tpu.memory_space<vmem>>, vector<16x32xf32>,
    %c0_i32_8 = arith.constant 0 : i32
    %9 = arith.cmpi eq, %arg2, %c0_i32_8 : i32
    %10 = arith.extui %9 : i1 to i32
    %c0_i32_9 = arith.constant 0 : i32
    %11 = arith.cmpi ne, %10, %c0_i32_9 : i32
    scf.if %11 {
      %c0_10 = arith.constant 0 : index
      %c0_11 = arith.constant 0 : index
      %12 = vector.load %arg8[%c0_10, %c0_11] : memref<16x32xf32, #tpu.memory_space<vmem>>, vector<16x32xf32>
      %c0_12 = arith.constant 0 : index
      %c0_13 = arith.constant 0 : index
      %13 = vector.load %arg5[%c0_12, %c0_13] : memref<1x32xf32, #tpu.memory_space<vmem>>, vector<1x32xf32>
      %14 = vector.broadcast %13 : vector<1x32xf32> to vector<16x32xf32>
      %15 = arith.addf %12, %14 : vector<16x32xf32>
      %c0_14 = arith.constant 0 : index
      %c0_15 = arith.constant 0 : index
      %16 = vector.load %arg6[%c0_14, %c0_15] : memref<16x32xf32, #tpu.memory_space<vmem>>, vector<16x32xf32>
      %17 = arith.addf %15, %16 : vector<16x32xf32>
      %c0_16 = arith.constant 0 : index
      %c0_17 = arith.constant 0 : index
      %18 = vector.load %arg7[%c0_16, %c0_17] : memref<16x32xf32, #tpu.memory_space<vmem>>, vector<16x32xf32>
      tpu.vector_store %arg7[%c0_16, %c0_17], %17 {strides = array<i32>} : memref<16x32xf32, #tpu.memory_space<vmem>>, vector<16x32xf32>,
    } else {
    }
    return
  }
  func.func @transform_0(%arg0: i32, %arg1: i32, %arg2: i32) -> (i32, i32) {
    %c0_i32 = arith.constant 0 : i32
    return %arg0, %arg2 : i32, i32
  }
  func.func @transform_1(%arg0: i32, %arg1: i32, %arg2: i32) -> (i32, i32) {
    %c0_i32 = arith.constant 0 : i32
    return %arg2, %arg1 : i32, i32
  }
  func.func @transform_2(%arg0: i32, %arg1: i32, %arg2: i32) -> (i32, i32) {
    %c0_i32 = arith.constant 0 : i32
    %c0_i32_0 = arith.constant 0 : i32
    return %c0_i32, %arg1 : i32, i32
  }
  func.func @transform_3(%arg0: i32, %arg1: i32, %arg2: i32) -> (i32, i32) {
    %c0_i32 = arith.constant 0 : i32
    return %arg0, %arg1 : i32, i32
  }
  func.func @transform_4(%arg0: i32, %arg1: i32, %arg2: i32) -> (i32, i32) {
    %c0_i32 = arith.constant 0 : i32
    return %arg0, %arg1 : i32, i32
  }
}

</mosaic_0001>

<llo_original>
// kernel: encode_layer_forward.5
$region0: #{encode_layer_forward.5}
  #allocation0 [shape = 'u32[]', space=smem, size = 0x4, offset = 0x4, fixed_abs, tag = 'smem constant byte address 0x4 - core index']
  #allocation1 [shape = 'u32[144,128]{1,0:T(1,128)}', space=vmem, size = 0x12000, scoped, tag = 'internal scratch']
  #allocation2 [shape = 'bf16[16,32]{1,0:T(16,128)(2,1)}', space=vmem, size = 0x1000, scoped, tag = 'scratch operand']
  %s0 = inlined_call_operand.vmem [shape: f32[16,32], index: 0, kind: input, shape index: {}]
  %s1 = inlined_call_operand.vmem [shape: f32[1,32], index: 1, kind: input, shape index: {}]
  %s2 = inlined_call_operand.vmem [shape: f32[1,32], index: 2, kind: input, shape index: {}]
  %s3 = inlined_call_operand.vmem [shape: bf16[32,96], index: 3, kind: input, shape index: {}]
  %s4 = inlined_call_operand.vmem [shape: f32[1,96], index: 4, kind: input, shape index: {}]
  %s5 = inlined_call_operand.vmem [shape: bf16[16,96], index: 5, kind: output, shape index: {}]
  %s6 = sld [smem:[#allocation0]]
  $region34: #{encode_layer_forward.5} parent=0
    _
  %s8 = ssub.s32 1, %s6
  %s9 = scalar_select 0, %s8, %s6
  // Predicated region
  $region2: #{encode_layer_forward.5} parent=0 // pred_check
    _
  $region3: #{encode_layer_forward.5} parent=0 // pred_check_branch
    %11 = sbr.rel (0) target = $region5
  $region4: #{encode_layer_forward.5} parent=0 // pred_region
    _
  $region5: #{encode_layer_forward.5} parent=0 // pred_fallthru
    _
  // Predicated region
  $region6: #{encode_layer_forward.5} parent=0 // pred_check
    _
  $region7: #{encode_layer_forward.5} parent=0 // pred_check_branch
    %13 = sbr.rel (0) target = $region9
  $region8: #{encode_layer_forward.5} parent=0 // pred_region
    _
  $region9: #{encode_layer_forward.5} parent=0 // pred_fallthru
    _
  // Predicated region
  $region10: #{encode_layer_forward.5} parent=0 // pred_check
    _
  $region11: #{encode_layer_forward.5} parent=0 // pred_check_branch
    %15 = sbr.rel (0) target = $region13
  $region12: #{encode_layer_forward.5} parent=0 // pred_region
    _
  $region13: #{encode_layer_forward.5} parent=0 // pred_fallthru
    _
  // Predicated region
  $region14: #{encode_layer_forward.5} parent=0 // pred_check
    _
  $region15: #{encode_layer_forward.5} parent=0 // pred_check_branch
    %17 = sbr.rel (0) target = $region17
  $region16: #{encode_layer_forward.5} parent=0 // pred_region
    _
  $region17: #{encode_layer_forward.5} parent=0 // pred_fallthru
    _
  // Predicated region
  $region18: #{encode_layer_forward.5} parent=0 // pred_check
    _
  $region19: #{encode_layer_forward.5} parent=0 // pred_check_branch
    %19 = sbr.rel (0) target = $region21
  $region20: #{encode_layer_forward.5} parent=0 // pred_region
    _
  $region21: #{encode_layer_forward.5} parent=0 // pred_fallthru
    _
  %p21 = scmp.eq.s32.totalorder 0, 0
  // Predicated region
  $region22: #{encode_layer_forward.5} parent=0 // pred_check
    %p22 = pneg %p21
  $region23: #{encode_layer_forward.5} parent=0 // pred_check_branch
    %24 = sbr.rel (%p22) target = $region25
  $region24: #{encode_layer_forward.5} parent=0 // pred_region
    %v25 = vld [vmem:[%s0] sm:$0xff]
    %v26 = vld [vmem:[%s0 + $0x8] sm:$0xff]
    %vm27 = vcmask 261120
    %v28 = vsel %vm27, %v25, 0.0
    %29 = vadd.xlane.f32.xlu0 %v28
    %v30 = vpop.xlane.xlu0 %29
    %v31 = vsel %vm27, %v26, 0.0
    %32 = vadd.xlane.f32.xlu0 %v31
    %v33 = vpop.xlane.xlu0 %32
    %v34 = vrcp.pop 32.0
    %v35 = vmul.f32 %v30, %v34
    %v36 = vmul.f32 %v33, %v34
    %v37 = vsub.f32 %v25, %v35
    %v38 = vsub.f32 %v26, %v36
    %v39 = vmul.f32 %v37, %v37
    %v40 = vmul.f32 %v38, %v38
    %v41 = vsel %vm27, %v39, 0.0
    %42 = vadd.xlane.f32.xlu0 %v41
    %v43 = vpop.xlane.xlu0 %42
    %v44 = vsel %vm27, %v40, 0.0
    %45 = vadd.xlane.f32.xlu0 %v44
    %v46 = vpop.xlane.xlu0 %45
    %v47 = vmul.f32 %v43, %v34
    %v48 = vmul.f32 %v46, %v34
    %v49 = vadd.f32 %v47, 1e-05
    %v50 = vadd.f32 %v48, 1e-05
    %v51 = vrsqrt.pop %v49
    %v52 = vrsqrt.pop %v50
    %v53 = vmul.f32 %v37, %v51
    %v54 = vmul.f32 %v38, %v52
    %v55 = vld [vmem:[%s1] sm:$0x1]
    %v57 = vlaneseq
    %v58 = vshrl.u32 %v57, 7
    %v59 = vsub.s32 0, %v58
    %v60 = vrot.slane %v55, %v59
    %v62 = vmul.f32 %v53, %v60
    %v63 = vmul.f32 %v54, %v60
    %v64 = vld [vmem:[%s2] sm:$0x1]
    %v66 = vlaneseq
    %v67 = vshrl.u32 %v66, 7
    %v68 = vsub.s32 0, %v67
    %v69 = vrot.slane %v64, %v68
    %v71 = vadd.f32 %v62, %v69
    %v72 = vadd.f32 %v63, %v69
    %v73 = vpack.c.bf16 %v72, %v71
    %74 = vst.msk [vmem:[#allocation2] sm:$0xff] %vm27, %v73
  $region25: #{encode_layer_forward.5} parent=0 // pred_fallthru
    _
  %v75 = vld [vmem:[#allocation2] sm:$0xff]
  %v76 = vld [vmem:[%s3] sm:$0xf]
  %v77 = vld [vmem:[%s3 + $0x4] sm:$0xf]
  %v78 = vld [vmem:[%s3 + $0x8] sm:$0xf]
  %v79 = vld [vmem:[%s3 + $0xc] sm:$0xf]
  %v80 = vld [vmem:[%s4] sm:$0x1]
  %v82 = vlaneseq
  %v83 = vshrl.u32 %v82, 7
  %v84 = vsub.s32 0, %v83
  %v85 = vrot.slane %v80, %v84
  %v91 = vunpack.c.l.b16 %v76
  %v92 = vunpack.c.l.b16 %v77
  %v93 = vunpack.c.l.b16 %v78
  %v94 = vunpack.c.l.b16 %v79
  %v95 = vpack.c.b16 %v92, %v91
  %v96 = vpack.c.b16 %v94, %v93
  %vm99 = vcmask 261120
  %v101 = vsel %vm99, %v75, 0
  %103 = vmatprep.subr.bf16.mxu0 0
  %104 = vmatpush1.bf16.msra.mxu0 %v95
  %105 = vmatprep.subr.bf16.mxu0 0
  %106 = vmatpush1.bf16.msra.mxu0 %v96
  %107 = vmatprep.subr.bf16.mxu0 0
  %108 = vmatpush1.bf16.msra.mxu0 0
  %109 = vmatprep.subr.bf16.mxu0 0
  %110 = vmatpush1.bf16.msra.mxu0 0
  %111 = vmatprep.subr.bf16.mxu0 0
  %112 = vmatpush1.bf16.msra.mxu0 0
  %113 = vmatprep.subr.bf16.mxu0 0
  %114 = vmatpush1.bf16.msra.mxu0 0
  %115 = vmatprep.subr.bf16.mxu0 0
  %116 = vmatpush1.bf16.msra.mxu0 0
  %117 = vmatprep.subr.bf16.mxu0 0
  %118 = vmatpush1.bf16.msra.mxu0 0
  %119 = vmatprep.subr.bf16.mxu0 0
  %120 = vmatpush1.bf16.msra.mxu0 0
  %121 = vmatprep.subr.bf16.mxu0 0
  %122 = vmatpush1.bf16.msra.mxu0 0
  %123 = vmatprep.subr.bf16.mxu0 0
  %124 = vmatpush1.bf16.msra.mxu0 0
  %125 = vmatprep.subr.bf16.mxu0 0
  %126 = vmatpush1.bf16.msra.mxu0 0
  %127 = vmatprep.subr.bf16.mxu0 0
  %128 = vmatpush1.bf16.msra.mxu0 0
  %129 = vmatprep.subr.bf16.mxu0 0
  %130 = vmatpush1.bf16.msra.mxu0 0
  %131 = vmatprep.subr.bf16.mxu0 0
  %132 = vmatpush1.bf16.msra.mxu0 0
  %133 = vmatprep.subr.bf16.mxu0 0
  %134 = vmatpush1.bf16.msra.mxu0 0
  %135 = vmatprep.mubr.bf16.mxu0 0
  %136 = vmatmul.mubr.bf16.gmra.mrb[0].mxu0 %v101
  %v137 = vpop.f32.mrb[0].mxu0
  %v138 = vadd.f32 %v85, %v137
  %v139 = vpop.f32.mrb[0].mxu0
  %v140 = vpop.f32.mrb[0].mxu0
  %v141 = vadd.f32 %v85, %v140
  %v142 = vpop.f32.mrb[0].mxu0
  %143 = vdwg.mxu0
  %v144 = vpack.c.bf16 %v141, %v138
  %v146 = vunpack.c.l.b16 %v144
  %v147 = vunpack.c.h.b16 %v144
  %v148 = vpack.c.b16 %v146, %v146
  %v149 = vpack.c.b16 %v147, %v147
  %vm152 = vcmask 781312
  %153 = vst.msk [vmem:[%s5] sm:$0xf] %vm152, %v148
  %154 = vst.msk [vmem:[%s5 + $0x4] sm:$0xf] %vm152, %v149
  // Predicated region
  $region26: #{encode_layer_forward.5} parent=0 // pred_check
    _
  $region27: #{encode_layer_forward.5} parent=0 // pred_check_branch
    %156 = sbr.rel (0) target = $region29
  $region28: #{encode_layer_forward.5} parent=0 // pred_region
    _
  $region29: #{encode_layer_forward.5} parent=0 // pred_fallthru
    _
  // Predicated region
  $region30: #{encode_layer_forward.5} parent=0 // pred_check
    _
  $region31: #{encode_layer_forward.5} parent=0 // pred_check_branch
    %158 = sbr.rel (0) target = $region33
  $region32: #{encode_layer_forward.5} parent=0 // pred_region
    _
  $region33: #{encode_layer_forward.5} parent=0 // pred_fallthru
    _

// kernel: encode_layer_forward.7
$region0: #{encode_layer_forward.7}
  #allocation0 [shape = 'u32[]', space=smem, size = 0x4, offset = 0x4, fixed_abs, tag = 'smem constant byte address 0x4 - core index']
  #allocation1 [shape = 'u32[144,128]{1,0:T(1,128)}', space=vmem, size = 0x12000, scoped, tag = 'internal scratch']
  #allocation2 [shape = 'f32[16,32]{1,0:T(8,128)}', space=vmem, size = 0x2000, scoped, tag = 'scratch operand']
  %s0 = inlined_call_operand.vmem [shape: bf16[16,32], index: 0, kind: input, shape index: {}]
  %s1 = inlined_call_operand.vmem [shape: bf16[32,32], index: 1, kind: input, shape index: {}]
  %s2 = inlined_call_operand.vmem [shape: f32[1,32], index: 2, kind: input, shape index: {}]
  %s3 = inlined_call_operand.vmem [shape: f32[16,32], index: 3, kind: input, shape index: {}]
  %s4 = inlined_call_operand.vmem [shape: f32[16,32], index: 4, kind: output, shape index: {}]
  %s5 = sld [smem:[#allocation0]]
  $region34: #{encode_layer_forward.7} parent=0
    _
  %s7 = ssub.s32 1, %s5
  %s8 = scalar_select 0, %s7, %s5
  // Predicated region
  $region2: #{encode_layer_forward.7} parent=0 // pred_check
    _
  $region3: #{encode_layer_forward.7} parent=0 // pred_check_branch
    %10 = sbr.rel (0) target = $region5
  $region4: #{encode_layer_forward.7} parent=0 // pred_region
    _
  $region5: #{encode_layer_forward.7} parent=0 // pred_fallthru
    _
  // Predicated region
  $region6: #{encode_layer_forward.7} parent=0 // pred_check
    _
  $region7: #{encode_layer_forward.7} parent=0 // pred_check_branch
    %12 = sbr.rel (0) target = $region9
  $region8: #{encode_layer_forward.7} parent=0 // pred_region
    _
  $region9: #{encode_layer_forward.7} parent=0 // pred_fallthru
    _
  // Predicated region
  $region10: #{encode_layer_forward.7} parent=0 // pred_check
    _
  $region11: #{encode_layer_forward.7} parent=0 // pred_check_branch
    %14 = sbr.rel (0) target = $region13
  $region12: #{encode_layer_forward.7} parent=0 // pred_region
    _
  $region13: #{encode_layer_forward.7} parent=0 // pred_fallthru
    _
  // Predicated region
  $region14: #{encode_layer_forward.7} parent=0 // pred_check
    _
  $region15: #{encode_layer_forward.7} parent=0 // pred_check_branch
    %16 = sbr.rel (0) target = $region17
  $region16: #{encode_layer_forward.7} parent=0 // pred_region
    _
  $region17: #{encode_layer_forward.7} parent=0 // pred_fallthru
    _
  %p18 = scmp.eq.s32.totalorder 0, 0
  // Predicated region
  $region18: #{encode_layer_forward.7} parent=0 // pred_check
    %p19 = pneg %p18
  $region19: #{encode_layer_forward.7} parent=0 // pred_check_branch
    %21 = sbr.rel (%p19) target = $region21
  $region20: #{encode_layer_forward.7} parent=0 // pred_region
    %vm22 = vcmask 261120
    %23 = vst.msk [vmem:[#allocation2] sm:$0xff] %vm22, 0.0
    %24 = vst.msk [vmem:[#allocation2 + $0x8] sm:$0xff] %vm22, 0.0
  $region21: #{encode_layer_forward.7} parent=0 // pred_fallthru
    _
  %v25 = vld [vmem:[#allocation2] sm:$0xff]
  %v26 = vld [vmem:[#allocation2 + $0x8] sm:$0xff]
  %v27 = vld [vmem:[%s0] sm:$0xf]
  %v28 = vld [vmem:[%s0 + $0x4] sm:$0xf]
  %v29 = vld [vmem:[%s1] sm:$0xf]
  %v30 = vld [vmem:[%s1 + $0x4] sm:$0xf]
  %v31 = vld [vmem:[%s1 + $0x8] sm:$0xf]
  %v32 = vld [vmem:[%s1 + $0xc] sm:$0xf]
  %v35 = vunpack.c.l.b16 %v27
  %v36 = vunpack.c.l.b16 %v28
  %v37 = vpack.c.b16 %v36, %v35
  %v42 = vunpack.c.l.b16 %v29
  %v43 = vunpack.c.l.b16 %v30
  %v44 = vunpack.c.l.b16 %v31
  %v45 = vunpack.c.l.b16 %v32
  %v46 = vpack.c.b16 %v43, %v42
  %v47 = vpack.c.b16 %v45, %v44
  %vm50 = vcmask 261120
  %v52 = vsel %vm50, %v37, 0
  %54 = vmatprep.subr.bf16.mxu0 0
  %55 = vmatpush1.bf16.msra.mxu0 %v46
  %56 = vmatprep.subr.bf16.mxu0 0
  %57 = vmatpush1.bf16.msra.mxu0 %v47
  %58 = vmatprep.subr.bf16.mxu0 0
  %59 = vmatpush1.bf16.msra.mxu0 0
  %60 = vmatprep.subr.bf16.mxu0 0
  %61 = vmatpush1.bf16.msra.mxu0 0
  %62 = vmatprep.subr.bf16.mxu0 0
  %63 = vmatpush1.bf16.msra.mxu0 0
  %64 = vmatprep.subr.bf16.mxu0 0
  %65 = vmatpush1.bf16.msra.mxu0 0
  %66 = vmatprep.subr.bf16.mxu0 0
  %67 = vmatpush1.bf16.msra.mxu0 0
  %68 = vmatprep.subr.bf16.mxu0 0
  %69 = vmatpush1.bf16.msra.mxu0 0
  %70 = vmatprep.subr.bf16.mxu0 0
  %71 = vmatpush1.bf16.msra.mxu0 0
  %72 = vmatprep.subr.bf16.mxu0 0
  %73 = vmatpush1.bf16.msra.mxu0 0
  %74 = vmatprep.subr.bf16.mxu0 0
  %75 = vmatpush1.bf16.msra.mxu0 0
  %76 = vmatprep.subr.bf16.mxu0 0
  %77 = vmatpush1.bf16.msra.mxu0 0
  %78 = vmatprep.subr.bf16.mxu0 0
  %79 = vmatpush1.bf16.msra.mxu0 0
  %80 = vmatprep.subr.bf16.mxu0 0
  %81 = vmatpush1.bf16.msra.mxu0 0
  %82 = vmatprep.subr.bf16.mxu0 0
  %83 = vmatpush1.bf16.msra.mxu0 0
  %84 = vmatprep.subr.bf16.mxu0 0
  %85 = vmatpush1.bf16.msra.mxu0 0
  %86 = vmatprep.mubr.bf16.mxu0 0
  %87 = vmatmul.mubr.bf16.gmra.mrb[0].mxu0 %v52
  %v88 = vpop.f32.mrb[0].mxu0
  %v89 = vadd.f32 0.0, %v88
  %v90 = vpop.f32.mrb[0].mxu0
  %v91 = vpop.f32.mrb[0].mxu0
  %v92 = vadd.f32 0.0, %v91
  %v93 = vpop.f32.mrb[0].mxu0
  %94 = vdwg.mxu0
  %v95 = vadd.f32 %v25, %v89
  %v96 = vadd.f32 %v26, %v92
  %97 = vst.msk [vmem:[#allocation2] sm:$0xff] %vm50, %v95
  %98 = vst.msk [vmem:[#allocation2 + $0x8] sm:$0xff] %vm50, %v96
  // Predicated region
  $region22: #{encode_layer_forward.7} parent=0 // pred_check
    %p99 = pneg %p18
  $region23: #{encode_layer_forward.7} parent=0 // pred_check_branch
    %101 = sbr.rel (%p99) target = $region25
  $region24: #{encode_layer_forward.7} parent=0 // pred_region
    %v102 = vld [vmem:[#allocation2] sm:$0xff]
    %v103 = vld [vmem:[#allocation2 + $0x8] sm:$0xff]
    %v104 = vld [vmem:[%s2] sm:$0x1]
    %v106 = vlaneseq
    %v107 = vshrl.u32 %v106, 7
    %v108 = vsub.s32 0, %v107
    %v109 = vrot.slane %v104, %v108
    %v111 = vadd.f32 %v102, %v109
    %v112 = vadd.f32 %v103, %v109
    %v113 = vld [vmem:[%s3] sm:$0xff]
    %v114 = vld [vmem:[%s3 + $0x8] sm:$0xff]
    %v115 = vadd.f32 %v111, %v113
    %v116 = vadd.f32 %v112, %v114
    %117 = vst.msk [vmem:[%s4] sm:$0xff] %vm50, %v115
    %118 = vst.msk [vmem:[%s4 + $0x8] sm:$0xff] %vm50, %v116
  $region25: #{encode_layer_forward.7} parent=0 // pred_fallthru
    _
  // Predicated region
  $region26: #{encode_layer_forward.7} parent=0 // pred_check
    _
  $region27: #{encode_layer_forward.7} parent=0 // pred_check_branch
    %120 = sbr.rel (0) target = $region29
  $region28: #{encode_layer_forward.7} parent=0 // pred_region
    _
  $region29: #{encode_layer_forward.7} parent=0 // pred_fallthru
    _
  // Predicated region
  $region30: #{encode_layer_forward.7} parent=0 // pred_check
    _
  $region31: #{encode_layer_forward.7} parent=0 // pred_check_branch
    %122 = sbr.rel (0) target = $region33
  $region32: #{encode_layer_forward.7} parent=0 // pred_region
    _
  $region33: #{encode_layer_forward.7} parent=0 // pred_fallthru
    _

// kernel: encode_layer_forward.8
$region0: #{encode_layer_forward.8}
  #allocation0 [shape = 'u32[]', space=smem, size = 0x4, offset = 0x4, fixed_abs, tag = 'smem constant byte address 0x4 - core index']
  #allocation1 [shape = 'u32[144,128]{1,0:T(1,128)}', space=vmem, size = 0x12000, scoped, tag = 'internal scratch']
  #allocation2 [shape = 'bf16[16,32]{1,0:T(16,128)(2,1)}', space=vmem, size = 0x1000, scoped, tag = 'scratch operand']
  %s0 = inlined_call_operand.vmem [shape: f32[16,32], index: 0, kind: input, shape index: {}]
  %s1 = inlined_call_operand.vmem [shape: f32[1,32], index: 1, kind: input, shape index: {}]
  %s2 = inlined_call_operand.vmem [shape: f32[1,32], index: 2, kind: input, shape index: {}]
  %s3 = inlined_call_operand.vmem [shape: bf16[32,64], index: 3, kind: input, shape index: {}]
  %s4 = inlined_call_operand.vmem [shape: f32[1,64], index: 4, kind: input, shape index: {}]
  %s5 = inlined_call_operand.vmem [shape: bf16[16,64], index: 5, kind: output, shape index: {}]
  %s6 = sld [smem:[#allocation0]]
  $region34: #{encode_layer_forward.8} parent=0
    _
  %s8 = ssub.s32 1, %s6
  %s9 = scalar_select 0, %s8, %s6
  // Predicated region
  $region2: #{encode_layer_forward.8} parent=0 // pred_check
    _
  $region3: #{encode_layer_forward.8} parent=0 // pred_check_branch
    %11 = sbr.rel (0) target = $region5
  $region4: #{encode_layer_forward.8} parent=0 // pred_region
    _
  $region5: #{encode_layer_forward.8} parent=0 // pred_fallthru
    _
  // Predicated region
  $region6: #{encode_layer_forward.8} parent=0 // pred_check
    _
  $region7: #{encode_layer_forward.8} parent=0 // pred_check_branch
    %13 = sbr.rel (0) target = $region9
  $region8: #{encode_layer_forward.8} parent=0 // pred_region
    _
  $region9: #{encode_layer_forward.8} parent=0 // pred_fallthru
    _
  // Predicated region
  $region10: #{encode_layer_forward.8} parent=0 // pred_check
    _
  $region11: #{encode_layer_forward.8} parent=0 // pred_check_branch
    %15 = sbr.rel (0) target = $region13
  $region12: #{encode_layer_forward.8} parent=0 // pred_region
    _
  $region13: #{encode_layer_forward.8} parent=0 // pred_fallthru
    _
  // Predicated region
  $region14: #{encode_layer_forward.8} parent=0 // pred_check
    _
  $region15: #{encode_layer_forward.8} parent=0 // pred_check_branch
    %17 = sbr.rel (0) target = $region17
  $region16: #{encode_layer_forward.8} parent=0 // pred_region
    _
  $region17: #{encode_layer_forward.8} parent=0 // pred_fallthru
    _
  // Predicated region
  $region18: #{encode_layer_forward.8} parent=0 // pred_check
    _
  $region19: #{encode_layer_forward.8} parent=0 // pred_check_branch
    %19 = sbr.rel (0) target = $region21
  $region20: #{encode_layer_forward.8} parent=0 // pred_region
    _
  $region21: #{encode_layer_forward.8} parent=0 // pred_fallthru
    _
  %p21 = scmp.eq.s32.totalorder 0, 0
  // Predicated region
  $region22: #{encode_layer_forward.8} parent=0 // pred_check
    %p22 = pneg %p21
  $region23: #{encode_layer_forward.8} parent=0 // pred_check_branch
    %24 = sbr.rel (%p22) target = $region25
  $region24: #{encode_layer_forward.8} parent=0 // pred_region
    %v25 = vld [vmem:[%s0] sm:$0xff]
    %v26 = vld [vmem:[%s0 + $0x8] sm:$0xff]
    %vm27 = vcmask 261120
    %v28 = vsel %vm27, %v25, 0.0
    %29 = vadd.xlane.f32.xlu0 %v28
    %v30 = vpop.xlane.xlu0 %29
    %v31 = vsel %vm27, %v26, 0.0
    %32 = vadd.xlane.f32.xlu0 %v31
    %v33 = vpop.xlane.xlu0 %32
    %v34 = vrcp.pop 32.0
    %v35 = vmul.f32 %v30, %v34
    %v36 = vmul.f32 %v33, %v34
    %v37 = vsub.f32 %v25, %v35
    %v38 = vsub.f32 %v26, %v36
    %v39 = vmul.f32 %v37, %v37
    %v40 = vmul.f32 %v38, %v38
    %v41 = vsel %vm27, %v39, 0.0
    %42 = vadd.xlane.f32.xlu0 %v41
    %v43 = vpop.xlane.xlu0 %42
    %v44 = vsel %vm27, %v40, 0.0
    %45 = vadd.xlane.f32.xlu0 %v44
    %v46 = vpop.xlane.xlu0 %45
    %v47 = vmul.f32 %v43, %v34
    %v48 = vmul.f32 %v46, %v34
    %v49 = vadd.f32 %v47, 1e-05
    %v50 = vadd.f32 %v48, 1e-05
    %v51 = vrsqrt.pop %v49
    %v52 = vrsqrt.pop %v50
    %v53 = vmul.f32 %v37, %v51
    %v54 = vmul.f32 %v38, %v52
    %v55 = vld [vmem:[%s1] sm:$0x1]
    %v57 = vlaneseq
    %v58 = vshrl.u32 %v57, 7
    %v59 = vsub.s32 0, %v58
    %v60 = vrot.slane %v55, %v59
    %v62 = vmul.f32 %v53, %v60
    %v63 = vmul.f32 %v54, %v60
    %v64 = vld [vmem:[%s2] sm:$0x1]
    %v66 = vlaneseq
    %v67 = vshrl.u32 %v66, 7
    %v68 = vsub.s32 0, %v67
    %v69 = vrot.slane %v64, %v68
    %v71 = vadd.f32 %v62, %v69
    %v72 = vadd.f32 %v63, %v69
    %v73 = vpack.c.bf16 %v72, %v71
    %74 = vst.msk [vmem:[#allocation2] sm:$0xff] %vm27, %v73
  $region25: #{encode_layer_forward.8} parent=0 // pred_fallthru
    _
  %v75 = vld [vmem:[#allocation2] sm:$0xff]
  %v76 = vld [vmem:[%s3] sm:$0xf]
  %v77 = vld [vmem:[%s3 + $0x4] sm:$0xf]
  %v78 = vld [vmem:[%s3 + $0x8] sm:$0xf]
  %v79 = vld [vmem:[%s3 + $0xc] sm:$0xf]
  %v80 = vld [vmem:[%s4] sm:$0x1]
  %v82 = vlaneseq
  %v83 = vshrl.u32 %v82, 7
  %v84 = vsub.s32 0, %v83
  %v85 = vrot.slane %v80, %v84
  %v91 = vunpack.c.l.b16 %v76
  %v92 = vunpack.c.l.b16 %v77
  %v93 = vunpack.c.l.b16 %v78
  %v94 = vunpack.c.l.b16 %v79
  %v95 = vpack.c.b16 %v92, %v91
  %v96 = vpack.c.b16 %v94, %v93
  %vm99 = vcmask 261120
  %v101 = vsel %vm99, %v75, 0
  %103 = vmatprep.subr.bf16.mxu0 0
  %104 = vmatpush1.bf16.msra.mxu0 %v95
  %105 = vmatprep.subr.bf16.mxu0 0
  %106 = vmatpush1.bf16.msra.mxu0 %v96
  %107 = vmatprep.subr.bf16.mxu0 0
  %108 = vmatpush1.bf16.msra.mxu0 0
  %109 = vmatprep.subr.bf16.mxu0 0
  %110 = vmatpush1.bf16.msra.mxu0 0
  %111 = vmatprep.subr.bf16.mxu0 0
  %112 = vmatpush1.bf16.msra.mxu0 0
  %113 = vmatprep.subr.bf16.mxu0 0
  %114 = vmatpush1.bf16.msra.mxu0 0
  %115 = vmatprep.subr.bf16.mxu0 0
  %116 = vmatpush1.bf16.msra.mxu0 0
  %117 = vmatprep.subr.bf16.mxu0 0
  %118 = vmatpush1.bf16.msra.mxu0 0
  %119 = vmatprep.subr.bf16.mxu0 0
  %120 = vmatpush1.bf16.msra.mxu0 0
  %121 = vmatprep.subr.bf16.mxu0 0
  %122 = vmatpush1.bf16.msra.mxu0 0
  %123 = vmatprep.subr.bf16.mxu0 0
  %124 = vmatpush1.bf16.msra.mxu0 0
  %125 = vmatprep.subr.bf16.mxu0 0
  %126 = vmatpush1.bf16.msra.mxu0 0
  %127 = vmatprep.subr.bf16.mxu0 0
  %128 = vmatpush1.bf16.msra.mxu0 0
  %129 = vmatprep.subr.bf16.mxu0 0
  %130 = vmatpush1.bf16.msra.mxu0 0
  %131 = vmatprep.subr.bf16.mxu0 0
  %132 = vmatpush1.bf16.msra.mxu0 0
  %133 = vmatprep.subr.bf16.mxu0 0
  %134 = vmatpush1.bf16.msra.mxu0 0
  %135 = vmatprep.mubr.bf16.mxu0 0
  %136 = vmatmul.mubr.bf16.gmra.mrb[0].mxu0 %v101
  %v137 = vpop.f32.mrb[0].mxu0
  %v138 = vadd.f32 %v85, %v137
  %v139 = vpop.f32.mrb[0].mxu0
  %v140 = vpop.f32.mrb[0].mxu0
  %v141 = vadd.f32 %v85, %v140
  %v142 = vpop.f32.mrb[0].mxu0
  %143 = vdwg.mxu0
  %v144 = vmax.f32 %v138, 0.0
  %v145 = vmax.f32 %v141, 0.0
  %v146 = vpack.c.bf16 %v145, %v144
  %v148 = vunpack.c.l.b16 %v146
  %v149 = vunpack.c.h.b16 %v146
  %v150 = vpack.c.b16 %v148, %v148
  %v151 = vpack.c.b16 %v149, %v149
  %vm154 = vcmask 519168
  %155 = vst.msk [vmem:[%s5] sm:$0xf] %vm154, %v150
  %156 = vst.msk [vmem:[%s5 + $0x4] sm:$0xf] %vm154, %v151
  // Predicated region
  $region26: #{encode_layer_forward.8} parent=0 // pred_check
    _
  $region27: #{encode_layer_forward.8} parent=0 // pred_check_branch
    %158 = sbr.rel (0) target = $region29
  $region28: #{encode_layer_forward.8} parent=0 // pred_region
    _
  $region29: #{encode_layer_forward.8} parent=0 // pred_fallthru
    _
  // Predicated region
  $region30: #{encode_layer_forward.8} parent=0 // pred_check
    _
  $region31: #{encode_layer_forward.8} parent=0 // pred_check_branch
    %160 = sbr.rel (0) target = $region33
  $region32: #{encode_layer_forward.8} parent=0 // pred_region
    _
  $region33: #{encode_layer_forward.8} parent=0 // pred_fallthru
    _

// kernel: encode_layer_forward.6
$region0: #{encode_layer_forward.6}
  #allocation0 [shape = 'u32[]', space=smem, size = 0x4, offset = 0x4, fixed_abs, tag = 'smem constant byte address 0x4 - core index']
  #allocation1 [shape = 'u32[144,128]{1,0:T(1,128)}', space=vmem, size = 0x12000, scoped, tag = 'internal scratch']
  %s0 = inlined_call_operand.vmem [shape: bf16[2,8,3,4,8], index: 0, kind: input, shape index: {}, may-alias: {0,1,2}]
  %s1 = inlined_call_operand.vmem [shape: bf16[2,8,3,4,8], index: 1, kind: input, shape index: {}, may-alias: {0,1,2}]
  %s2 = inlined_call_operand.vmem [shape: bf16[2,8,3,4,8], index: 2, kind: input, shape index: {}, may-alias: {0,1,2}]
  %s3 = inlined_call_operand.vmem [shape: f32[2,1,8], index: 3, kind: input, shape index: {}]
  %s4 = inlined_call_operand.vmem [shape: bf16[2,8,4,8], index: 4, kind: output, shape index: {}]
  %s5 = sld [smem:[#allocation0]]
  $region172: #{encode_layer_forward.6} parent=0
    _
  %s7 = ssub.s32 1, %s5
  %s8 = scalar_select 0, %s7, %s5
  $region1: #{encode_layer_forward.6} parent=0
    #allocation2 [shape = 'u8[16384]{0}', space=vmem, size = 0x4000, scoped, tag = 'input window, operand 0']
    #allocation3 [shape = 'u8[16384]{0}', space=vmem, size = 0x4000, scoped, tag = 'input window, operand 1']
    #allocation4 [shape = 'u8[16384]{0}', space=vmem, size = 0x4000, scoped, tag = 'input window, operand 2']
    loop: start=0, step=1, limit=4
    $region2: #{encode_layer_forward.6} parent=1 // loop_pre_header
      _
    $region3: #{encode_layer_forward.6} parent=1 // loop_header
      %s10 = sphi 0, %s14
      %p11 = scmp.ge.s32.totalorder %s10, 4
      %s17 = sphi 0, %s29
      %s18 = sphi 0, %s25
      %s19 = sphi 0, %s17
      %s20 = sphi 0, %s18
      %s21 = sphi 0, %s19
      %s22 = sphi 0, %s20
      %s34 = sphi 0, %s36
      %s37 = sphi 0, %s34
      %s38 = sphi 0, %s37
      %s54 = sphi 0, %s38
      %s60 = sphi 0, %s62
      %s63 = sphi 0, %s60
      %s64 = sphi 0, %s63
      %s80 = sphi 0, %s64
      %s86 = sphi 0, %s88
      %s89 = sphi 0, %s86
      %s90 = sphi 0, %s89
      %s106 = sphi 0, %s90
      %s112 = sphi 0, %s114
      %s115 = sphi 0, %s112
      %s116 = sphi 0, %s115
      %s132 = sphi 0, %s116
      %s140 = sphi 0, %s142
      %s143 = sphi 0, %s140
      %s144 = sphi 0, %s143
      %s160 = sphi 0, %s144
    $region4: #{encode_layer_forward.6} parent=1 // loop_header_branch
      %13 = sbr.rel (%p11) target = $region8
    $region5: #{encode_layer_forward.6} parent=1 // loop_body
      %s15 = ssub.s32 %s10, 1
      %s16 = ssub.s32 %s10, 2
      %s23 = sadd.s32 1, %s18
      %p24 = scmp.ge.s32.totalorder %s23, 1
      %s25 = scalar_select %p24, 0, %s23
      %s26 = sadd.s32 1, %s17
      %s27 = scalar_select %p24, %s26, %s17
      %p28 = scmp.ge.s32.totalorder %s27, 2
      %s29 = scalar_select %p28, 0, %s27
      %s30 = ssub.s32 %s17, %s29
      %s31 = ssub.s32 %s18, %s25
      %s32 = sor.u32 %s30, %s31
      %p33 = scmp.eq.s32.totalorder %s32, 0
      %s35 = sadd.s32 %s34, 1
      %s36 = scalar_select %p33, %s34, %s35
      %p39 = pneg %p33
      %p40 = scmp.eq.s32.totalorder %s10, 1
      %p41 = por %p39, %p40
      %p42 = scmp.ne.s32.totalorder %s34, %s37
      %p43 = scmp.eq.s32.totalorder %s10, 0
      %p44 = por %p42, %p43
      %p45 = scmp.ne.s32.totalorder %s34, %s37
      %p46 = scmp.eq.s32.totalorder %s15, 1
      %p47 = por %p45, %p46
      %p48 = scmp.ne.s32.totalorder %s37, %s38
      %p49 = scmp.eq.s32.totalorder %s15, 0
      %p50 = por %p48, %p49
      %p51 = scmp.ne.s32.totalorder %s37, %s38
      %p52 = scmp.eq.s32.totalorder %s16, 1
      %p53 = por %p51, %p52
      %p55 = scmp.ne.s32.totalorder %s38, %s54
      %p56 = scmp.eq.s32.totalorder %s16, 0
      %p57 = por %p55, %p56
      %s58 = ssub.s32 %s17, %s29
      %p59 = scmp.eq.s32.totalorder %s58, 0
      %s61 = sadd.s32 %s60, 1
      %s62 = scalar_select %p59, %s60, %s61
      %p65 = pneg %p59
      %p66 = scmp.eq.s32.totalorder %s10, 1
      %p67 = por %p65, %p66
      %p68 = scmp.ne.s32.totalorder %s60, %s63
      %p69 = scmp.eq.s32.totalorder %s10, 0
      %p70 = por %p68, %p69
      %p71 = scmp.ne.s32.totalorder %s60, %s63
      %p72 = scmp.eq.s32.totalorder %s15, 1
      %p73 = por %p71, %p72
      %p74 = scmp.ne.s32.totalorder %s63, %s64
      %p75 = scmp.eq.s32.totalorder %s15, 0
      %p76 = por %p74, %p75
      %p77 = scmp.ne.s32.totalorder %s63, %s64
      %p78 = scmp.eq.s32.totalorder %s16, 1
      %p79 = por %p77, %p78
      %p81 = scmp.ne.s32.totalorder %s64, %s80
      %p82 = scmp.eq.s32.totalorder %s16, 0
      %p83 = por %p81, %p82
      %s84 = ssub.s32 %s17, %s29
      %p85 = scmp.eq.s32.totalorder %s84, 0
      %s87 = sadd.s32 %s86, 1
      %s88 = scalar_select %p85, %s86, %s87
      %p91 = pneg %p85
      %p92 = scmp.eq.s32.totalorder %s10, 1
      %p93 = por %p91, %p92
      %p94 = scmp.ne.s32.totalorder %s86, %s89
      %p95 = scmp.eq.s32.totalorder %s10, 0
      %p96 = por %p94, %p95
      %p97 = scmp.ne.s32.totalorder %s86, %s89
      %p98 = scmp.eq.s32.totalorder %s15, 1
      %p99 = por %p97, %p98
      %p100 = scmp.ne.s32.totalorder %s89, %s90
      %p101 = scmp.eq.s32.totalorder %s15, 0
      %p102 = por %p100, %p101
      %p103 = scmp.ne.s32.totalorder %s89, %s90
      %p104 = scmp.eq.s32.totalorder %s16, 1
      %p105 = por %p103, %p104
      %p107 = scmp.ne.s32.totalorder %s90, %s106
      %p108 = scmp.eq.s32.totalorder %s16, 0
      %p109 = por %p107, %p108
      %s110 = ssub.s32 %s17, %s29
      %p111 = scmp.eq.s32.totalorder %s110, 0
      %s113 = sadd.s32 %s112, 1
      %s114 = scalar_select %p111, %s112, %s113
      %p117 = pneg %p111
      %p118 = scmp.eq.s32.totalorder %s10, 1
      %p119 = por %p117, %p118
      %p120 = scmp.ne.s32.totalorder %s112, %s115
      %p121 = scmp.eq.s32.totalorder %s10, 0
      %p122 = por %p120, %p121
      %p123 = scmp.ne.s32.totalorder %s112, %s115
      %p124 = scmp.eq.s32.totalorder %s15, 1
      %p125 = por %p123, %p124
      %p126 = scmp.ne.s32.totalorder %s115, %s116
      %p127 = scmp.eq.s32.totalorder %s15, 0
      %p128 = por %p126, %p127
      %p129 = scmp.ne.s32.totalorder %s115, %s116
      %p130 = scmp.eq.s32.totalorder %s16, 1
      %p131 = por %p129, %p130
      %p133 = scmp.ne.s32.totalorder %s116, %s132
      %p134 = scmp.eq.s32.totalorder %s16, 0
      %p135 = por %p133, %p134
      %s136 = ssub.s32 %s17, %s29
      %s137 = ssub.s32 %s18, %s25
      %s138 = sor.u32 %s136, %s137
      %p139 = scmp.eq.s32.totalorder %s138, 0
      %s141 = sadd.s32 %s140, 1
      %s142 = scalar_select %p139, %s140, %s141
      %p145 = pneg %p139
      %p146 = scmp.eq.s32.totalorder %s10, 1
      %p147 = por %p145, %p146
      %p148 = scmp.ne.s32.totalorder %s140, %s143
      %p149 = scmp.eq.s32.totalorder %s10, 0
      %p150 = por %p148, %p149
      %p151 = scmp.ne.s32.totalorder %s140, %s143
      %p152 = scmp.eq.s32.totalorder %s15, 1
      %p153 = por %p151, %p152
      %p154 = scmp.ne.s32.totalorder %s143, %s144
      %p155 = scmp.eq.s32.totalorder %s15, 0
      %p156 = por %p154, %p155
      %p157 = scmp.ne.s32.totalorder %s143, %s144
      %p158 = scmp.eq.s32.totalorder %s16, 1
      %p159 = por %p157, %p158
      %p161 = scmp.ne.s32.totalorder %s144, %s160
      %p162 = scmp.eq.s32.totalorder %s16, 0
      %p163 = por %p161, %p162
      %p164 = scmp.le.s32.totalorder 1, %s10
      %p165 = scmp.lt.s32.totalorder %s10, 3
      %p166 = pnand %p164, %p165
      %p167 = pneg %p166
      // Predicated region
      $region9: #{encode_layer_forward.6} parent=5 // pred_check
        _
      $region10: #{encode_layer_forward.6} parent=5 // pred_check_branch
        %169 = sbr.rel (%p166) target = $region12
      $region11: #{encode_layer_forward.6} parent=5 // pred_region
        %s170 = ssub.s32 %s10, 1
      $region12: #{encode_layer_forward.6} parent=5 // pred_fallthru
        _
      %p171 = scmp.lt.s32.totalorder %s10, 2
      // Predicated region
      $region13: #{encode_layer_forward.6} parent=5 // pred_check
        %p172 = pneg %p171
      $region14: #{encode_layer_forward.6} parent=5 // pred_check_branch
        %174 = sbr.rel (%p172) target = $region16
      $region15: #{encode_layer_forward.6} parent=5 // pred_region
        // Predicated region
        $region17: #{encode_layer_forward.6} parent=15 // pred_check
          %p175 = pneg %p44
        $region18: #{encode_layer_forward.6} parent=15 // pred_check_branch
          %177 = sbr.rel (%p175) target = $region20
        $region19: #{encode_layer_forward.6} parent=15 // pred_region
          %s178 = sand.u32 %s34, 1
          %s179 = sand.u32 %s34, 1
          %s180 = smul.addr %s179, 16
          %s181 = scalar_lea.vmem [#allocation2], %s180
          %s182 = smul.u32 8, %s18
          %s183 = smul.addr %s182, 3
          %s184 = smul.addr %s17, 24
          %s185 = sadd.s32 %s183, %s184
          %s186 = smul.addr %s185, 2
          %s187 = scalar_lea.vmem %s0, %s186
          // Predicated region
          $region21: #{encode_layer_forward.6} parent=19 // pred_check
            _
          $region22: #{encode_layer_forward.6} parent=19 // pred_check_branch
            %189 = sbr.rel (0) target = $region24
          $region23: #{encode_layer_forward.6} parent=19 // pred_region
            // Predicated region
            $region25: #{encode_layer_forward.6} parent=23 // pred_check
              _
            $region26: #{encode_layer_forward.6} parent=23 // pred_check_branch
              %191 = sbr.rel target = $region28
            $region27: #{encode_layer_forward.6} parent=23 // pred_region
              // Predicated region
              $region40: #{encode_layer_forward.6} parent=27 // pred_check
                _
              $region41: #{encode_layer_forward.6} parent=27 // pred_check_branch
                %220 = sbr.rel (0) target = $region43
              $region42: #{encode_layer_forward.6} parent=27 // pred_region
                loop: start=0, step=1, limit=1
                $region44: #{encode_layer_forward.6} parent=42 // loop_pre_header
                  _
                $region45: #{encode_layer_forward.6} parent=42 // loop_header
                  %s222 = sphi 0, %s226
                  %p223 = scmp.ge.s32.totalorder %s222, 1
                  %s227 = sphi %s187, %s187
                  %s228 = sphi %s181, %s181
                $region46: #{encode_layer_forward.6} parent=42 // loop_header_branch
                  %225 = sbr.rel (%p223) target = $region50
                $region47: #{encode_layer_forward.6} parent=42 // loop_body
                  _
                $region48: #{encode_layer_forward.6} parent=42 // loop_footer
                  %s226 = sadd.s32 1, %s222
                $region49: #{encode_layer_forward.6} parent=42 // loop_footer_branch
                  %221 = sbr.rel target = $region45
                $region50: #{encode_layer_forward.6} parent=42 // loop_exit
                  _
                loop: start=0, step=1, limit=1
                $region51: #{encode_layer_forward.6} parent=42 // loop_pre_header
                  _
                $region52: #{encode_layer_forward.6} parent=42 // loop_header
                  %s231 = sphi 0, %s235
                  %p232 = scmp.ge.s32.totalorder %s231, 1
                  %s236 = sphi %s187, %s187
                  %s237 = sphi %s181, %s181
                $region53: #{encode_layer_forward.6} parent=42 // loop_header_branch
                  %234 = sbr.rel (%p232) target = $region57
                $region54: #{encode_layer_forward.6} parent=42 // loop_body
                  %v238 = vld [vmem:[%s236] sm:$0x3]
                  %239 = vst [vmem:[%s237] sm:$0x3] %v238
                  %v240 = vld [vmem:[%s236 + $0x6] sm:$0x3]
                  %241 = vst [vmem:[%s237 + $0x2] sm:$0x3] %v240
                  %v242 = vld [vmem:[%s236 + $0xc] sm:$0x3]
                  %243 = vst [vmem:[%s237 + $0x4] sm:$0x3] %v242
                  %v244 = vld [vmem:[%s236 + $0x12] sm:$0x3]
                  %245 = vst [vmem:[%s237 + $0x6] sm:$0x3] %v244
                  %v246 = vld [vmem:[%s236 + $0x18] sm:$0x3]
                  %247 = vst [vmem:[%s237 + $0x8] sm:$0x3] %v246
                  %v248 = vld [vmem:[%s236 + $0x1e] sm:$0x3]
                  %249 = vst [vmem:[%s237 + $0xa] sm:$0x3] %v248
                  %v250 = vld [vmem:[%s236 + $0x24] sm:$0x3]
                  %251 = vst [vmem:[%s237 + $0xc] sm:$0x3] %v250
                  %v252 = vld [vmem:[%s236 + $0x2a] sm:$0x3]
                  %253 = vst [vmem:[%s237 + $0xe] sm:$0x3] %v252
                $region55: #{encode_layer_forward.6} parent=42 // loop_footer
                  %s235 = sadd.s32 1, %s231
                $region56: #{encode_layer_forward.6} parent=42 // loop_footer_branch
                  %230 = sbr.rel target = $region52
                $region57: #{encode_layer_forward.6} parent=42 // loop_exit
                  _
              $region43: #{encode_layer_forward.6} parent=27 // pred_fallthru
                _
            $region28: #{encode_layer_forward.6} parent=23 // pred_fallthru
              _
            // Predicated region
            $region29: #{encode_layer_forward.6} parent=23 // pred_check
              _
            $region30: #{encode_layer_forward.6} parent=23 // pred_check_branch
              %193 = sbr.rel (0) target = $region32
            $region31: #{encode_layer_forward.6} parent=23 // pred_region
              loop: start=0, step=1, limit=1
              $region33: #{encode_layer_forward.6} parent=31 // loop_pre_header
                _
              $region34: #{encode_layer_forward.6} parent=31 // loop_header
                %s196 = sphi 0, %s200
                %p197 = scmp.ge.s32.totalorder %s196, 1
                %s201 = sphi %s187, %s187
                %s202 = sphi %s181, %s181
              $region35: #{encode_layer_forward.6} parent=31 // loop_header_branch
                %199 = sbr.rel (%p197) target = $region39
              $region36: #{encode_layer_forward.6} parent=31 // loop_body
                %v203 = vld [vmem:[%s201] sm:$0x3]
                %204 = vst [vmem:[%s202] sm:$0x3] %v203
                %v205 = vld [vmem:[%s201 + $0x6] sm:$0x3]
                %206 = vst [vmem:[%s202 + $0x2] sm:$0x3] %v205
                %v207 = vld [vmem:[%s201 + $0xc] sm:$0x3]
                %208 = vst [vmem:[%s202 + $0x4] sm:$0x3] %v207
                %v209 = vld [vmem:[%s201 + $0x12] sm:$0x3]
                %210 = vst [vmem:[%s202 + $0x6] sm:$0x3] %v209
                %v211 = vld [vmem:[%s201 + $0x18] sm:$0x3]
                %212 = vst [vmem:[%s202 + $0x8] sm:$0x3] %v211
                %v213 = vld [vmem:[%s201 + $0x1e] sm:$0x3]
                %214 = vst [vmem:[%s202 + $0xa] sm:$0x3] %v213
                %v215 = vld [vmem:[%s201 + $0x24] sm:$0x3]
                %216 = vst [vmem:[%s202 + $0xc] sm:$0x3] %v215
                %v217 = vld [vmem:[%s201 + $0x2a] sm:$0x3]
                %218 = vst [vmem:[%s202 + $0xe] sm:$0x3] %v217
              $region37: #{encode_layer_forward.6} parent=31 // loop_footer
                %s200 = sadd.s32 1, %s196
              $region38: #{encode_layer_forward.6} parent=31 // loop_footer_branch
                %195 = sbr.rel target = $region34
              $region39: #{encode_layer_forward.6} parent=31 // loop_exit
                _
            $region32: #{encode_layer_forward.6} parent=23 // pred_fallthru
              _
          $region24: #{encode_layer_forward.6} parent=19 // pred_fallthru
            _
          %254 = vnop
        $region20: #{encode_layer_forward.6} parent=15 // pred_fallthru
          _
        // Predicated region
        $region58: #{encode_layer_forward.6} parent=15 // pred_check
          %p255 = pneg %p70
        $region59: #{encode_layer_forward.6} parent=15 // pred_check_branch
          %257 = sbr.rel (%p255) target = $region61
        $region60: #{encode_layer_forward.6} parent=15 // pred_region
          %s258 = sand.u32 %s60, 1
          %s259 = sand.u32 %s60, 1
          %s260 = smul.addr %s259, 16
          %s261 = scalar_lea.vmem [#allocation3], %s260
          %s262 = smul.addr %s17, 24
          %s263 = sadd.s32 1, %s262
          %s264 = smul.addr %s263, 2
          %s265 = scalar_lea.vmem %s1, %s264
          // Predicated region
          $region62: #{encode_layer_forward.6} parent=60 // pred_check
            _
          $region63: #{encode_layer_forward.6} parent=60 // pred_check_branch
            %267 = sbr.rel (0) target = $region65
          $region64: #{encode_layer_forward.6} parent=60 // pred_region
            // Predicated region
            $region66: #{encode_layer_forward.6} parent=64 // pred_check
              _
            $region67: #{encode_layer_forward.6} parent=64 // pred_check_branch
              %269 = sbr.rel target = $region69
            $region68: #{encode_layer_forward.6} parent=64 // pred_region
              // Predicated region
              $region81: #{encode_layer_forward.6} parent=68 // pred_check
                _
              $region82: #{encode_layer_forward.6} parent=68 // pred_check_branch
                %298 = sbr.rel (0) target = $region84
              $region83: #{encode_layer_forward.6} parent=68 // pred_region
                loop: start=0, step=1, limit=1
                $region85: #{encode_layer_forward.6} parent=83 // loop_pre_header
                  _
                $region86: #{encode_layer_forward.6} parent=83 // loop_header
                  %s300 = sphi 0, %s304
                  %p301 = scmp.ge.s32.totalorder %s300, 1
                  %s305 = sphi %s265, %s265
                  %s306 = sphi %s261, %s261
                $region87: #{encode_layer_forward.6} parent=83 // loop_header_branch
                  %303 = sbr.rel (%p301) target = $region91
                $region88: #{encode_layer_forward.6} parent=83 // loop_body
                  _
                $region89: #{encode_layer_forward.6} parent=83 // loop_footer
                  %s304 = sadd.s32 1, %s300
                $region90: #{encode_layer_forward.6} parent=83 // loop_footer_branch
                  %299 = sbr.rel target = $region86
                $region91: #{encode_layer_forward.6} parent=83 // loop_exit
                  _
                loop: start=0, step=1, limit=1
                $region92: #{encode_layer_forward.6} parent=83 // loop_pre_header
                  _
                $region93: #{encode_layer_forward.6} parent=83 // loop_header
                  %s309 = sphi 0, %s313
                  %p310 = scmp.ge.s32.totalorder %s309, 1
                  %s314 = sphi %s265, %s265
                  %s315 = sphi %s261, %s261
                $region94: #{encode_layer_forward.6} parent=83 // loop_header_branch
                  %312 = sbr.rel (%p310) target = $region98
                $region95: #{encode_layer_forward.6} parent=83 // loop_body
                  %v316 = vld [vmem:[%s314] sm:$0x3]
                  %317 = vst [vmem:[%s315] sm:$0x3] %v316
                  %v318 = vld [vmem:[%s314 + $0x6] sm:$0x3]
                  %319 = vst [vmem:[%s315 + $0x2] sm:$0x3] %v318
                  %v320 = vld [vmem:[%s314 + $0xc] sm:$0x3]
                  %321 = vst [vmem:[%s315 + $0x4] sm:$0x3] %v320
                  %v322 = vld [vmem:[%s314 + $0x12] sm:$0x3]
                  %323 = vst [vmem:[%s315 + $0x6] sm:$0x3] %v322
                  %v324 = vld [vmem:[%s314 + $0x18] sm:$0x3]
                  %325 = vst [vmem:[%s315 + $0x8] sm:$0x3] %v324
                  %v326 = vld [vmem:[%s314 + $0x1e] sm:$0x3]
                  %327 = vst [vmem:[%s315 + $0xa] sm:$0x3] %v326
                  %v328 = vld [vmem:[%s314 + $0x24] sm:$0x3]
                  %329 = vst [vmem:[%s315 + $0xc] sm:$0x3] %v328
                  %v330 = vld [vmem:[%s314 + $0x2a] sm:$0x3]
                  %331 = vst [vmem:[%s315 + $0xe] sm:$0x3] %v330
                $region96: #{encode_layer_forward.6} parent=83 // loop_footer
                  %s313 = sadd.s32 1, %s309
                $region97: #{encode_layer_forward.6} parent=83 // loop_footer_branch
                  %308 = sbr.rel target = $region93
                $region98: #{encode_layer_forward.6} parent=83 // loop_exit
                  _
              $region84: #{encode_layer_forward.6} parent=68 // pred_fallthru
                _
            $region69: #{encode_layer_forward.6} parent=64 // pred_fallthru
              _
            // Predicated region
            $region70: #{encode_layer_forward.6} parent=64 // pred_check
              _
            $region71: #{encode_layer_forward.6} parent=64 // pred_check_branch
              %271 = sbr.rel (0) target = $region73
            $region72: #{encode_layer_forward.6} parent=64 // pred_region
              loop: start=0, step=1, limit=1
              $region74: #{encode_layer_forward.6} parent=72 // loop_pre_header
                _
              $region75: #{encode_layer_forward.6} parent=72 // loop_header
                %s274 = sphi 0, %s278
                %p275 = scmp.ge.s32.totalorder %s274, 1
                %s279 = sphi %s265, %s265
                %s280 = sphi %s261, %s261
              $region76: #{encode_layer_forward.6} parent=72 // loop_header_branch
                %277 = sbr.rel (%p275) target = $region80
              $region77: #{encode_layer_forward.6} parent=72 // loop_body
                %v281 = vld [vmem:[%s279] sm:$0x3]
                %282 = vst [vmem:[%s280] sm:$0x3] %v281
                %v283 = vld [vmem:[%s279 + $0x6] sm:$0x3]
                %284 = vst [vmem:[%s280 + $0x2] sm:$0x3] %v283
                %v285 = vld [vmem:[%s279 + $0xc] sm:$0x3]
                %286 = vst [vmem:[%s280 + $0x4] sm:$0x3] %v285
                %v287 = vld [vmem:[%s279 + $0x12] sm:$0x3]
                %288 = vst [vmem:[%s280 + $0x6] sm:$0x3] %v287
                %v289 = vld [vmem:[%s279 + $0x18] sm:$0x3]
                %290 = vst [vmem:[%s280 + $0x8] sm:$0x3] %v289
                %v291 = vld [vmem:[%s279 + $0x1e] sm:$0x3]
                %292 = vst [vmem:[%s280 + $0xa] sm:$0x3] %v291
                %v293 = vld [vmem:[%s279 + $0x24] sm:$0x3]
                %294 = vst [vmem:[%s280 + $0xc] sm:$0x3] %v293
                %v295 = vld [vmem:[%s279 + $0x2a] sm:$0x3]
                %296 = vst [vmem:[%s280 + $0xe] sm:$0x3] %v295
              $region78: #{encode_layer_forward.6} parent=72 // loop_footer
                %s278 = sadd.s32 1, %s274
              $region79: #{encode_layer_forward.6} parent=72 // loop_footer_branch
                %273 = sbr.rel target = $region75
              $region80: #{encode_layer_forward.6} parent=72 // loop_exit
                _
            $region73: #{encode_layer_forward.6} parent=64 // pred_fallthru
              _
          $region65: #{encode_layer_forward.6} parent=60 // pred_fallthru
            _
          %332 = vnop
        $region61: #{encode_layer_forward.6} parent=15 // pred_fallthru
          _
        // Predicated region
        $region99: #{encode_layer_forward.6} parent=15 // pred_check
          %p333 = pneg %p96
        $region100: #{encode_layer_forward.6} parent=15 // pred_check_branch
          %335 = sbr.rel (%p333) target = $region102
        $region101: #{encode_layer_forward.6} parent=15 // pred_region
          %s336 = sand.u32 %s86, 1
          %s337 = sand.u32 %s86, 1
          %s338 = smul.addr %s337, 16
          %s339 = scalar_lea.vmem [#allocation4], %s338
          %s340 = smul.addr %s17, 24
          %s341 = sadd.s32 2, %s340
          %s342 = smul.addr %s341, 2
          %s343 = scalar_lea.vmem %s2, %s342
          // Predicated region
          $region103: #{encode_layer_forward.6} parent=101 // pred_check
            _
          $region104: #{encode_layer_forward.6} parent=101 // pred_check_branch
            %345 = sbr.rel (0) target = $region106
          $region105: #{encode_layer_forward.6} parent=101 // pred_region
            // Predicated region
            $region107: #{encode_layer_forward.6} parent=105 // pred_check
              _
            $region108: #{encode_layer_forward.6} parent=105 // pred_check_branch
              %347 = sbr.rel target = $region110
            $region109: #{encode_layer_forward.6} parent=105 // pred_region
              // Predicated region
              $region122: #{encode_layer_forward.6} parent=109 // pred_check
                _
              $region123: #{encode_layer_forward.6} parent=109 // pred_check_branch
                %376 = sbr.rel (0) target = $region125
              $region124: #{encode_layer_forward.6} parent=109 // pred_region
                loop: start=0, step=1, limit=1
                $region126: #{encode_layer_forward.6} parent=124 // loop_pre_header
                  _
                $region127: #{encode_layer_forward.6} parent=124 // loop_header
                  %s378 = sphi 0, %s382
                  %p379 = scmp.ge.s32.totalorder %s378, 1
                  %s383 = sphi %s343, %s343
                  %s384 = sphi %s339, %s339
                $region128: #{encode_layer_forward.6} parent=124 // loop_header_branch
                  %381 = sbr.rel (%p379) target = $region132
                $region129: #{encode_layer_forward.6} parent=124 // loop_body
                  _
                $region130: #{encode_layer_forward.6} parent=124 // loop_footer
                  %s382 = sadd.s32 1, %s378
                $region131: #{encode_layer_forward.6} parent=124 // loop_footer_branch
                  %377 = sbr.rel target = $region127
                $region132: #{encode_layer_forward.6} parent=124 // loop_exit
                  _
                loop: start=0, step=1, limit=1
                $region133: #{encode_layer_forward.6} parent=124 // loop_pre_header
                  _
                $region134: #{encode_layer_forward.6} parent=124 // loop_header
                  %s387 = sphi 0, %s391
                  %p388 = scmp.ge.s32.totalorder %s387, 1
                  %s392 = sphi %s343, %s343
                  %s393 = sphi %s339, %s339
                $region135: #{encode_layer_forward.6} parent=124 // loop_header_branch
                  %390 = sbr.rel (%p388) target = $region139
                $region136: #{encode_layer_forward.6} parent=124 // loop_body
                  %v394 = vld [vmem:[%s392] sm:$0x3]
                  %395 = vst [vmem:[%s393] sm:$0x3] %v394
                  %v396 = vld [vmem:[%s392 + $0x6] sm:$0x3]
                  %397 = vst [vmem:[%s393 + $0x2] sm:$0x3] %v396
                  %v398 = vld [vmem:[%s392 + $0xc] sm:$0x3]
                  %399 = vst [vmem:[%s393 + $0x4] sm:$0x3] %v398
                  %v400 = vld [vmem:[%s392 + $0x12] sm:$0x3]
                  %401 = vst [vmem:[%s393 + $0x6] sm:$0x3] %v400
                  %v402 = vld [vmem:[%s392 + $0x18] sm:$0x3]
                  %403 = vst [vmem:[%s393 + $0x8] sm:$0x3] %v402
                  %v404 = vld [vmem:[%s392 + $0x1e] sm:$0x3]
                  %405 = vst [vmem:[%s393 + $0xa] sm:$0x3] %v404
                  %v406 = vld [vmem:[%s392 + $0x24] sm:$0x3]
                  %407 = vst [vmem:[%s393 + $0xc] sm:$0x3] %v406
                  %v408 = vld [vmem:[%s392 + $0x2a] sm:$0x3]
                  %409 = vst [vmem:[%s393 + $0xe] sm:$0x3] %v408
                $region137: #{encode_layer_forward.6} parent=124 // loop_footer
                  %s391 = sadd.s32 1, %s387
                $region138: #{encode_layer_forward.6} parent=124 // loop_footer_branch
                  %386 = sbr.rel target = $region134
                $region139: #{encode_layer_forward.6} parent=124 // loop_exit
                  _
              $region125: #{encode_layer_forward.6} parent=109 // pred_fallthru
                _
            $region110: #{encode_layer_forward.6} parent=105 // pred_fallthru
              _
            // Predicated region
            $region111: #{encode_layer_forward.6} parent=105 // pred_check
              _
            $region112: #{encode_layer_forward.6} parent=105 // pred_check_branch
              %349 = sbr.rel (0) target = $region114
            $region113: #{encode_layer_forward.6} parent=105 // pred_region
              loop: start=0, step=1, limit=1
              $region115: #{encode_layer_forward.6} parent=113 // loop_pre_header
                _
              $region116: #{encode_layer_forward.6} parent=113 // loop_header
                %s352 = sphi 0, %s356
                %p353 = scmp.ge.s32.totalorder %s352, 1
                %s357 = sphi %s343, %s343
                %s358 = sphi %s339, %s339
              $region117: #{encode_layer_forward.6} parent=113 // loop_header_branch
                %355 = sbr.rel (%p353) target = $region121
              $region118: #{encode_layer_forward.6} parent=113 // loop_body
                %v359 = vld [vmem:[%s357] sm:$0x3]
                %360 = vst [vmem:[%s358] sm:$0x3] %v359
                %v361 = vld [vmem:[%s357 + $0x6] sm:$0x3]
                %362 = vst [vmem:[%s358 + $0x2] sm:$0x3] %v361
                %v363 = vld [vmem:[%s357 + $0xc] sm:$0x3]
                %364 = vst [vmem:[%s358 + $0x4] sm:$0x3] %v363
                %v365 = vld [vmem:[%s357 + $0x12] sm:$0x3]
                %366 = vst [vmem:[%s358 + $0x6] sm:$0x3] %v365
                %v367 = vld [vmem:[%s357 + $0x18] sm:$0x3]
                %368 = vst [vmem:[%s358 + $0x8] sm:$0x3] %v367
                %v369 = vld [vmem:[%s357 + $0x1e] sm:$0x3]
                %370 = vst [vmem:[%s358 + $0xa] sm:$0x3] %v369
                %v371 = vld [vmem:[%s357 + $0x24] sm:$0x3]
                %372 = vst [vmem:[%s358 + $0xc] sm:$0x3] %v371
                %v373 = vld [vmem:[%s357 + $0x2a] sm:$0x3]
                %374 = vst [vmem:[%s358 + $0xe] sm:$0x3] %v373
              $region119: #{encode_layer_forward.6} parent=113 // loop_footer
                %s356 = sadd.s32 1, %s352
              $region120: #{encode_layer_forward.6} parent=113 // loop_footer_branch
                %351 = sbr.rel target = $region116
              $region121: #{encode_layer_forward.6} parent=113 // loop_exit
                _
            $region114: #{encode_layer_forward.6} parent=105 // pred_fallthru
              _
          $region106: #{encode_layer_forward.6} parent=101 // pred_fallthru
            _
          %410 = vnop
        $region102: #{encode_layer_forward.6} parent=15 // pred_fallthru
          _
        // Predicated region
        $region140: #{encode_layer_forward.6} parent=15 // pred_check
          %p411 = pneg %p122
        $region141: #{encode_layer_forward.6} parent=15 // pred_check_branch
          %413 = sbr.rel (%p411) target = $region143
        $region142: #{encode_layer_forward.6} parent=15 // pred_region
          %p414 = scmp.lt.s32.totalorder %s17, 1
          %s415 = scalar_select %p414, %s17, 1
          %s416 = scalar_lea.vmem %s3, %s415
        $region143: #{encode_layer_forward.6} parent=15 // pred_fallthru
          _
      $region16: #{encode_layer_forward.6} parent=5 // pred_fallthru
        _
      %p417 = scmp.le.s32.totalorder 1, %s10
      %p418 = scmp.lt.s32.totalorder %s10, 3
      %p419 = pnand %p417, %p418
      %p420 = pneg %p419
      // Predicated region
      $region144: #{encode_layer_forward.6} parent=5 // pred_check
        _
      $region145: #{encode_layer_forward.6} parent=5 // pred_check_branch
        %422 = sbr.rel (%p419) target = $region147
      $region146: #{encode_layer_forward.6} parent=5 // pred_region
        %s423 = ssub.s32 %s10, 1
        %s424 = sand.u32 %s37, 1
        %s425 = sand.u32 %s37, 1
        %s426 = smul.addr %s425, 16
        %s427 = scalar_lea.vmem [#allocation2], %s426
        // Predicated region
        $region148: #{encode_layer_forward.6} parent=146 // pred_check
          %p428 = pneg %p50
        $region149: #{encode_layer_forward.6} parent=146 // pred_check_branch
          %430 = sbr.rel (%p428) target = $region151
        $region150: #{encode_layer_forward.6} parent=146 // pred_region
          _
        $region151: #{encode_layer_forward.6} parent=146 // pred_fallthru
          _
        %s431 = sand.u32 %s63, 1
        %s432 = sand.u32 %s63, 1
        %s433 = smul.addr %s432, 16
        %s434 = scalar_lea.vmem [#allocation3], %s433
        // Predicated region
        $region152: #{encode_layer_forward.6} parent=146 // pred_check
          %p435 = pneg %p76
        $region153: #{encode_layer_forward.6} parent=146 // pred_check_branch
          %437 = sbr.rel (%p435) target = $region155
        $region154: #{encode_layer_forward.6} parent=146 // pred_region
          _
        $region155: #{encode_layer_forward.6} parent=146 // pred_fallthru
          _
        %s438 = sand.u32 %s89, 1
        %s439 = sand.u32 %s89, 1
        %s440 = smul.addr %s439, 16
        %s441 = scalar_lea.vmem [#allocation4], %s440
        // Predicated region
        $region156: #{encode_layer_forward.6} parent=146 // pred_check
          %p442 = pneg %p102
        $region157: #{encode_layer_forward.6} parent=146 // pred_check_branch
          %444 = sbr.rel (%p442) target = $region159
        $region158: #{encode_layer_forward.6} parent=146 // pred_region
          _
        $region159: #{encode_layer_forward.6} parent=146 // pred_fallthru
          _
        %s445 = sand.u32 %s37, 1
        %s446 = sand.u32 %s37, 1
        %s447 = smul.addr %s446, 16
        %s448 = scalar_lea.vmem [#allocation2], %s447
        %p449 = pneg %p50
        %p450 = pneg %p47
        %s451 = sand.u32 %s63, 1
        %s452 = sand.u32 %s63, 1
        %s453 = smul.addr %s452, 16
        %s454 = scalar_lea.vmem [#allocation3], %s453
        %p455 = pneg %p76
        %p456 = pneg %p73
        %s457 = sand.u32 %s89, 1
        %s458 = sand.u32 %s89, 1
        %s459 = smul.addr %s458, 16
        %s460 = scalar_lea.vmem [#allocation4], %s459
        %p461 = pneg %p102
        %p462 = pneg %p99
        %p463 = scmp.lt.s32.totalorder %s19, 1
        %s464 = scalar_select %p463, %s19, 1
        %s465 = scalar_lea.vmem %s3, %s464
        %p466 = pneg %p128
        %p467 = pneg %p125
        %p468 = pneg %p156
        %p469 = pneg %p153
        %s470 = smul.u32 8, %s20
        %p471 = scmp.lt.s32.totalorder %s19, 1
        %s472 = scalar_select %p471, %s19, 1
        %p473 = scmp.lt.s32.totalorder %s470, 7
        %s474 = scalar_select %p473, %s470, 7
        %s475 = smul.addr %s472, 8
        %s476 = sadd.s32 %s474, %s475
        %s477 = smul.addr %s476, 2
        %s478 = scalar_lea.vmem %s4, %s477
        %s479 = smul.u32 8, %s20
        %p480 = scmp.lt.s32.totalorder %s19, 1
        %s481 = scalar_select %p480, %s19, 1
        %s482 = scalar_lea.vmem %s3, %s481
        %s483 = smul.u32 8, %s20
        %p484 = scmp.lt.s32.totalorder %s19, 1
        %s485 = scalar_select %p484, %s19, 1
        %p486 = scmp.lt.s32.totalorder %s483, 7
        %s487 = scalar_select %p486, %s483, 7
        %s488 = smul.addr %s485, 8
        %s489 = sadd.s32 %s487, %s488
        %s490 = smul.addr %s489, 2
        %s491 = scalar_lea.vmem %s4, %s490
        %s492 = smul.u32 8, %s20
        %v494 = vld [vmem:[%s427] sm:$0x3]
        %v495 = vld [vmem:[%s427 + $0x2] sm:$0x3]
        %v496 = vld [vmem:[%s427 + $0x4] sm:$0x3]
        %v497 = vld [vmem:[%s427 + $0x6] sm:$0x3]
        %v498 = vld [vmem:[%s427 + $0x8] sm:$0x3]
        %v499 = vld [vmem:[%s427 + $0xa] sm:$0x3]
        %v500 = vld [vmem:[%s427 + $0xc] sm:$0x3]
        %v501 = vld [vmem:[%s427 + $0xe] sm:$0x3]
        %v502 = vld [vmem:[%s434] sm:$0x3]
        %v503 = vld [vmem:[%s434 + $0x2] sm:$0x3]
        %v504 = vld [vmem:[%s434 + $0x4] sm:$0x3]
        %v505 = vld [vmem:[%s434 + $0x6] sm:$0x3]
        %v506 = vld [vmem:[%s434 + $0x8] sm:$0x3]
        %v507 = vld [vmem:[%s434 + $0xa] sm:$0x3]
        %v508 = vld [vmem:[%s434 + $0xc] sm:$0x3]
        %v509 = vld [vmem:[%s434 + $0xe] sm:$0x3]
        %v510 = vld [vmem:[%s441] sm:$0x3]
        %v511 = vld [vmem:[%s441 + $0x2] sm:$0x3]
        %v512 = vld [vmem:[%s441 + $0x4] sm:$0x3]
        %v513 = vld [vmem:[%s441 + $0x6] sm:$0x3]
        %v514 = vld [vmem:[%s441 + $0x8] sm:$0x3]
        %v515 = vld [vmem:[%s441 + $0xa] sm:$0x3]
        %v516 = vld [vmem:[%s441 + $0xc] sm:$0x3]
        %v517 = vld [vmem:[%s441 + $0xe] sm:$0x3]
        %v518 = vld [vmem:[%s482] sm:$0x1]
        %v519 = vcombine.low %v494, %v496
        %v521 = vunpack.c.l.s4 1934713408
        %v522 = vunpack.c.0.s8 %v521
        %v523 = vlaneseq
        %v524 = vshrl.u32 %v523, 7
        %v525 = vsub.s32 %v522, %v524
        %v526 = vrot.slane %v519, %v525
        %v527 = vcombine.high %v526, 0
        %v528 = vcombine.low %v495, %v497
        %v530 = vunpack.c.l.s4 1934713408
        %v531 = vunpack.c.0.s8 %v530
        %v532 = vlaneseq
        %v533 = vshrl.u32 %v532, 7
        %v534 = vsub.s32 %v531, %v533
        %v535 = vrot.slane %v528, %v534
        %v536 = vcombine.high %v535, 0
        %v537 = vcombine.low %v498, %v500
        %v539 = vunpack.c.l.s4 1934713408
        %v540 = vunpack.c.0.s8 %v539
        %v541 = vlaneseq
        %v542 = vshrl.u32 %v541, 7
        %v543 = vsub.s32 %v540, %v542
        %v544 = vrot.slane %v537, %v543
        %v545 = vcombine.high %v544, 0
        %v546 = vcombine.low %v499, %v501
        %v548 = vunpack.c.l.s4 1934713408
        %v549 = vunpack.c.0.s8 %v548
        %v550 = vlaneseq
        %v551 = vshrl.u32 %v550, 7
        %v552 = vsub.s32 %v549, %v551
        %v553 = vrot.slane %v546, %v552
        %v554 = vcombine.high %v553, 0
        %v557 = vpack.i.b16 %v535, %v526
        %v558 = vshrl.u32 %v526, 16
        %v559 = vshrl.u32 %v535, 16
        %v560 = vpack.i.b16 %v559, %v558
        %v563 = vpack.i.b16 %v536, %v527
        %v564 = vshrl.u32 %v527, 16
        %v565 = vshrl.u32 %v536, 16
        %v566 = vpack.i.b16 %v565, %v564
        %v569 = vpack.i.b16 %v553, %v544
        %v570 = vshrl.u32 %v544, 16
        %v571 = vshrl.u32 %v553, 16
        %v572 = vpack.i.b16 %v571, %v570
        %v575 = vpack.i.b16 %v554, %v545
        %v576 = vshrl.u32 %v545, 16
        %v577 = vshrl.u32 %v554, 16
        %v578 = vpack.i.b16 %v577, %v576
        %579 = vxpose.xlu0.c.b16.start [1/8] %v502, 128
        %580 = vxpose.xlu0.c.b16.cont [2/8] 0, 128
        %581 = vxpose.xlu0.c.b16.cont [3/8] 0, 128
        %582 = vxpose.xlu0.c.b16.cont [4/8] 0, 128
        %583 = vxpose.xlu0.c.b16.cont [5/8] 0, 128
        %584 = vxpose.xlu0.c.b16.cont [6/8] 0, 128
        %585 = vxpose.xlu0.c.b16.cont [7/8] 0, 128
        %586 = vxpose.xlu0.c.b16.end [8/8] 0, 128
        %v587 = vpop.trf.xlu0
        %v588 = vpop.trf.xlu0
        %v589 = vpop.trf.xlu0
        %v590 = vpop.trf.xlu0
        %v591 = vpop.trf.xlu0
        %v592 = vpop.trf.xlu0
        %v593 = vpop.trf.xlu0
        %v594 = vpop.trf.xlu0
        %595 = vxpose.xlu0.c.b16.start [1/8] %v503, 128
        %596 = vxpose.xlu0.c.b16.cont [2/8] 0, 128
        %597 = vxpose.xlu0.c.b16.cont [3/8] 0, 128
        %598 = vxpose.xlu0.c.b16.cont [4/8] 0, 128
        %599 = vxpose.xlu0.c.b16.cont [5/8] 0, 128
        %600 = vxpose.xlu0.c.b16.cont [6/8] 0, 128
        %601 = vxpose.xlu0.c.b16.cont [7/8] 0, 128
        %602 = vxpose.xlu0.c.b16.end [8/8] 0, 128
        %v603 = vpop.trf.xlu0
        %v604 = vpop.trf.xlu0
        %v605 = vpop.trf.xlu0
        %v606 = vpop.trf.xlu0
        %v607 = vpop.trf.xlu0
        %v608 = vpop.trf.xlu0
        %v609 = vpop.trf.xlu0
        %v610 = vpop.trf.xlu0
        %611 = vxpose.xlu0.c.b16.start [1/8] %v504, 128
        %612 = vxpose.xlu0.c.b16.cont [2/8] 0, 128
        %613 = vxpose.xlu0.c.b16.cont [3/8] 0, 128
        %614 = vxpose.xlu0.c.b16.cont [4/8] 0, 128
        %615 = vxpose.xlu0.c.b16.cont [5/8] 0, 128
        %616 = vxpose.xlu0.c.b16.cont [6/8] 0, 128
        %617 = vxpose.xlu0.c.b16.cont [7/8] 0, 128
        %618 = vxpose.xlu0.c.b16.end [8/8] 0, 128
        %v619 = vpop.trf.xlu0
        %v620 = vpop.trf.xlu0
        %v621 = vpop.trf.xlu0
        %v622 = vpop.trf.xlu0
        %v623 = vpop.trf.xlu0
        %v624 = vpop.trf.xlu0
        %v625 = vpop.trf.xlu0
        %v626 = vpop.trf.xlu0
        %627 = vxpose.xlu0.c.b16.start [1/8] %v505, 128
        %628 = vxpose.xlu0.c.b16.cont [2/8] 0, 128
        %629 = vxpose.xlu0.c.b16.cont [3/8] 0, 128
        %630 = vxpose.xlu0.c.b16.cont [4/8] 0, 128
        %631 = vxpose.xlu0.c.b16.cont [5/8] 0, 128
        %632 = vxpose.xlu0.c.b16.cont [6/8] 0, 128
        %633 = vxpose.xlu0.c.b16.cont [7/8] 0, 128
        %634 = vxpose.xlu0.c.b16.end [8/8] 0, 128
        %v635 = vpop.trf.xlu0
        %v636 = vpop.trf.xlu0
        %v637 = vpop.trf.xlu0
        %v638 = vpop.trf.xlu0
        %v639 = vpop.trf.xlu0
        %v640 = vpop.trf.xlu0
        %v641 = vpop.trf.xlu0
        %v642 = vpop.trf.xlu0
        %643 = vxpose.xlu0.c.b16.start [1/8] %v506, 128
        %644 = vxpose.xlu0.c.b16.cont [2/8] 0, 128
        %645 = vxpose.xlu0.c.b16.cont [3/8] 0, 128
        %646 = vxpose.xlu0.c.b16.cont [4/8] 0, 128
        %647 = vxpose.xlu0.c.b16.cont [5/8] 0, 128
        %648 = vxpose.xlu0.c.b16.cont [6/8] 0, 128
        %649 = vxpose.xlu0.c.b16.cont [7/8] 0, 128
        %650 = vxpose.xlu0.c.b16.end [8/8] 0, 128
        %v651 = vpop.trf.xlu0
        %v652 = vpop.trf.xlu0
        %v653 = vpop.trf.xlu0
        %v654 = vpop.trf.xlu0
        %v655 = vpop.trf.xlu0
        %v656 = vpop.trf.xlu0
        %v657 = vpop.trf.xlu0
        %v658 = vpop.trf.xlu0
        %659 = vxpose.xlu0.c.b16.start [1/8] %v507, 128
        %660 = vxpose.xlu0.c.b16.cont [2/8] 0, 128
        %661 = vxpose.xlu0.c.b16.cont [3/8] 0, 128
        %662 = vxpose.xlu0.c.b16.cont [4/8] 0, 128
        %663 = vxpose.xlu0.c.b16.cont [5/8] 0, 128
        %664 = vxpose.xlu0.c.b16.cont [6/8] 0, 128
        %665 = vxpose.xlu0.c.b16.cont [7/8] 0, 128
        %666 = vxpose.xlu0.c.b16.end [8/8] 0, 128
        %v667 = vpop.trf.xlu0
        %v668 = vpop.trf.xlu0
        %v669 = vpop.trf.xlu0
        %v670 = vpop.trf.xlu0
        %v671 = vpop.trf.xlu0
        %v672 = vpop.trf.xlu0
        %v673 = vpop.trf.xlu0
        %v674 = vpop.trf.xlu0
        %675 = vxpose.xlu0.c.b16.start [1/8] %v508, 128
        %676 = vxpose.xlu0.c.b16.cont [2/8] 0, 128
        %677 = vxpose.xlu0.c.b16.cont [3/8] 0, 128
        %678 = vxpose.xlu0.c.b16.cont [4/8] 0, 128
        %679 = vxpose.xlu0.c.b16.cont [5/8] 0, 128
        %680 = vxpose.xlu0.c.b16.cont [6/8] 0, 128
        %681 = vxpose.xlu0.c.b16.cont [7/8] 0, 128
        %682 = vxpose.xlu0.c.b16.end [8/8] 0, 128
        %v683 = vpop.trf.xlu0
        %v684 = vpop.trf.xlu0
        %v685 = vpop.trf.xlu0
        %v686 = vpop.trf.xlu0
        %v687 = vpop.trf.xlu0
        %v688 = vpop.trf.xlu0
        %v689 = vpop.trf.xlu0
        %v690 = vpop.trf.xlu0
        %691 = vxpose.xlu0.c.b16.start [1/8] %v509, 128
        %692 = vxpose.xlu0.c.b16.cont [2/8] 0, 128
        %693 = vxpose.xlu0.c.b16.cont [3/8] 0, 128
        %694 = vxpose.xlu0.c.b16.cont [4/8] 0, 128
        %695 = vxpose.xlu0.c.b16.cont [5/8] 0, 128
        %696 = vxpose.xlu0.c.b16.cont [6/8] 0, 128
        %697 = vxpose.xlu0.c.b16.cont [7/8] 0, 128
        %698 = vxpose.xlu0.c.b16.end [8/8] 0, 128
        %v699 = vpop.trf.xlu0
        %v700 = vpop.trf.xlu0
        %v701 = vpop.trf.xlu0
        %v702 = vpop.trf.xlu0
        %v703 = vpop.trf.xlu0
        %v704 = vpop.trf.xlu0
        %v705 = vpop.trf.xlu0
        %v706 = vpop.trf.xlu0
        %v707 = vcombine.low %v587, %v651
        %v709 = vunpack.c.l.s4 1983009808
        %v710 = vunpack.c.0.s8 %v709
        %v711 = vlaneseq
        %v712 = vshrl.u32 %v711, 7
        %v713 = vsub.s32 %v710, %v712
        %v714 = vrot.slane %v707, %v713
        %v715 = vcombine.low %v619, %v683
        %v717 = vunpack.c.l.s4 1983009808
        %v718 = vunpack.c.0.s8 %v717
        %v719 = vlaneseq
        %v720 = vshrl.u32 %v719, 7
        %v721 = vsub.s32 %v718, %v720
        %v722 = vrot.slane %v715, %v721
        %v723 = vcombine.low %v714, %v722
        %v724 = vcombine.high %v714, %v722
        %v726 = vunpack.c.l.s4 1934713408
        %v727 = vunpack.c.0.s8 %v726
        %v728 = vlaneseq
        %v729 = vshrl.u32 %v728, 7
        %v730 = vsub.s32 %v727, %v729
        %v731 = vrot.slane %v723, %v730
        %v733 = vunpack.c.l.s4 1934713408
        %v734 = vunpack.c.0.s8 %v733
        %v735 = vlaneseq
        %v736 = vshrl.u32 %v735, 7
        %v737 = vsub.s32 %v734, %v736
        %v738 = vrot.slane %v724, %v737
        %v739 = vcombine.high %v731, 0
        %v740 = vcombine.high %v738, 0
        %v741 = vcombine.low %v603, %v667
        %v743 = vunpack.c.l.s4 1983009808
        %v744 = vunpack.c.0.s8 %v743
        %v745 = vlaneseq
        %v746 = vshrl.u32 %v745, 7
        %v747 = vsub.s32 %v744, %v746
        %v748 = vrot.slane %v741, %v747
        %v749 = vcombine.low %v635, %v699
        %v751 = vunpack.c.l.s4 1983009808
        %v752 = vunpack.c.0.s8 %v751
        %v753 = vlaneseq
        %v754 = vshrl.u32 %v753, 7
        %v755 = vsub.s32 %v752, %v754
        %v756 = vrot.slane %v749, %v755
        %v757 = vcombine.low %v748, %v756
        %v758 = vcombine.high %v748, %v756
        %v760 = vunpack.c.l.s4 1934713408
        %v761 = vunpack.c.0.s8 %v760
        %v762 = vlaneseq
        %v763 = vshrl.u32 %v762, 7
        %v764 = vsub.s32 %v761, %v763
        %v765 = vrot.slane %v757, %v764
        %v767 = vunpack.c.l.s4 1934713408
        %v768 = vunpack.c.0.s8 %v767
        %v769 = vlaneseq
        %v770 = vshrl.u32 %v769, 7
        %v771 = vsub.s32 %v768, %v770
        %v772 = vrot.slane %v758, %v771
        %v773 = vcombine.high %v765, 0
        %v774 = vcombine.high %v772, 0
        %v777 = vpack.i.b16 %v765, %v731
        %v779 = vshrl.u32 %v731, 16
        %v780 = vshrl.u32 %v765, 16
        %v781 = vpack.i.b16 %v780, %v779
        %v785 = vpack.i.b16 %v773, %v739
        %v787 = vshrl.u32 %v739, 16
        %v788 = vshrl.u32 %v773, 16
        %v789 = vpack.i.b16 %v788, %v787
        %v793 = vpack.i.b16 %v772, %v738
        %v795 = vshrl.u32 %v738, 16
        %v796 = vshrl.u32 %v772, 16
        %v797 = vpack.i.b16 %v796, %v795
        %v801 = vpack.i.b16 %v774, %v740
        %v803 = vshrl.u32 %v740, 16
        %v804 = vshrl.u32 %v774, 16
        %v805 = vpack.i.b16 %v804, %v803
        %807 = vxpose.xlu0.c.b16.start [1/8] %v777, 128
        %808 = vxpose.xlu0.c.b16.cont [2/8] 0, 128
        %809 = vxpose.xlu0.c.b16.cont [3/8] 0, 128
        %810 = vxpose.xlu0.c.b16.cont [4/8] 0, 128
        %811 = vxpose.xlu0.c.b16.cont [5/8] 0, 128
        %812 = vxpose.xlu0.c.b16.cont [6/8] 0, 128
        %813 = vxpose.xlu0.c.b16.cont [7/8] 0, 128
        %814 = vxpose.xlu0.c.b16.end [8/8] 0, 128
        %v815 = vpop.trf.xlu0
        %v816 = vpop.trf.xlu0
        %v817 = vpop.trf.xlu0
        %v818 = vpop.trf.xlu0
        %v819 = vpop.trf.xlu0
        %v820 = vpop.trf.xlu0
        %v821 = vpop.trf.xlu0
        %v822 = vpop.trf.xlu0
        %823 = vxpose.xlu0.c.b16.start [1/8] %v781, 128
        %824 = vxpose.xlu0.c.b16.cont [2/8] 0, 128
        %825 = vxpose.xlu0.c.b16.cont [3/8] 0, 128
        %826 = vxpose.xlu0.c.b16.cont [4/8] 0, 128
        %827 = vxpose.xlu0.c.b16.cont [5/8] 0, 128
        %828 = vxpose.xlu0.c.b16.cont [6/8] 0, 128
        %829 = vxpose.xlu0.c.b16.cont [7/8] 0, 128
        %830 = vxpose.xlu0.c.b16.end [8/8] 0, 128
        %v831 = vpop.trf.xlu0
        %v832 = vpop.trf.xlu0
        %v833 = vpop.trf.xlu0
        %v834 = vpop.trf.xlu0
        %v835 = vpop.trf.xlu0
        %v836 = vpop.trf.xlu0
        %v837 = vpop.trf.xlu0
        %v838 = vpop.trf.xlu0
        %839 = vxpose.xlu0.c.b16.start [1/8] %v785, 128
        %840 = vxpose.xlu0.c.b16.cont [2/8] 0, 128
        %841 = vxpose.xlu0.c.b16.cont [3/8] 0, 128
        %842 = vxpose.xlu0.c.b16.cont [4/8] 0, 128
        %843 = vxpose.xlu0.c.b16.cont [5/8] 0, 128
        %844 = vxpose.xlu0.c.b16.cont [6/8] 0, 128
        %845 = vxpose.xlu0.c.b16.cont [7/8] 0, 128
        %846 = vxpose.xlu0.c.b16.end [8/8] 0, 128
        %v847 = vpop.trf.xlu0
        %v848 = vpop.trf.xlu0
        %v849 = vpop.trf.xlu0
        %v850 = vpop.trf.xlu0
        %v851 = vpop.trf.xlu0
        %v852 = vpop.trf.xlu0
        %v853 = vpop.trf.xlu0
        %v854 = vpop.trf.xlu0
        %855 = vxpose.xlu0.c.b16.start [1/8] %v789, 128
        %856 = vxpose.xlu0.c.b16.cont [2/8] 0, 128
        %857 = vxpose.xlu0.c.b16.cont [3/8] 0, 128
        %858 = vxpose.xlu0.c.b16.cont [4/8] 0, 128
        %859 = vxpose.xlu0.c.b16.cont [5/8] 0, 128
        %860 = vxpose.xlu0.c.b16.cont [6/8] 0, 128
        %861 = vxpose.xlu0.c.b16.cont [7/8] 0, 128
        %862 = vxpose.xlu0.c.b16.end [8/8] 0, 128
        %v863 = vpop.trf.xlu0
        %v864 = vpop.trf.xlu0
        %v865 = vpop.trf.xlu0
        %v866 = vpop.trf.xlu0
        %v867 = vpop.trf.xlu0
        %v868 = vpop.trf.xlu0
        %v869 = vpop.trf.xlu0
        %v870 = vpop.trf.xlu0
        %871 = vxpose.xlu0.c.b16.start [1/8] %v793, 128
        %872 = vxpose.xlu0.c.b16.cont [2/8] 0, 128
        %873 = vxpose.xlu0.c.b16.cont [3/8] 0, 128
        %874 = vxpose.xlu0.c.b16.cont [4/8] 0, 128
        %875 = vxpose.xlu0.c.b16.cont [5/8] 0, 128
        %876 = vxpose.xlu0.c.b16.cont [6/8] 0, 128
        %877 = vxpose.xlu0.c.b16.cont [7/8] 0, 128
        %878 = vxpose.xlu0.c.b16.end [8/8] 0, 128
        %v879 = vpop.trf.xlu0
        %v880 = vpop.trf.xlu0
        %v881 = vpop.trf.xlu0
        %v882 = vpop.trf.xlu0
        %v883 = vpop.trf.xlu0
        %v884 = vpop.trf.xlu0
        %v885 = vpop.trf.xlu0
        %v886 = vpop.trf.xlu0
        %887 = vxpose.xlu0.c.b16.start [1/8] %v797, 128
        %888 = vxpose.xlu0.c.b16.cont [2/8] 0, 128
        %889 = vxpose.xlu0.c.b16.cont [3/8] 0, 128
        %890 = vxpose.xlu0.c.b16.cont [4/8] 0, 128
        %891 = vxpose.xlu0.c.b16.cont [5/8] 0, 128
        %892 = vxpose.xlu0.c.b16.cont [6/8] 0, 128
        %893 = vxpose.xlu0.c.b16.cont [7/8] 0, 128
        %894 = vxpose.xlu0.c.b16.end [8/8] 0, 128
        %v895 = vpop.trf.xlu0
        %v896 = vpop.trf.xlu0
        %v897 = vpop.trf.xlu0
        %v898 = vpop.trf.xlu0
        %v899 = vpop.trf.xlu0
        %v900 = vpop.trf.xlu0
        %v901 = vpop.trf.xlu0
        %v902 = vpop.trf.xlu0
        %903 = vxpose.xlu0.c.b16.start [1/8] %v801, 128
        %904 = vxpose.xlu0.c.b16.cont [2/8] 0, 128
        %905 = vxpose.xlu0.c.b16.cont [3/8] 0, 128
        %906 = vxpose.xlu0.c.b16.cont [4/8] 0, 128
        %907 = vxpose.xlu0.c.b16.cont [5/8] 0, 128
        %908 = vxpose.xlu0.c.b16.cont [6/8] 0, 128
        %909 = vxpose.xlu0.c.b16.cont [7/8] 0, 128
        %910 = vxpose.xlu0.c.b16.end [8/8] 0, 128
        %v911 = vpop.trf.xlu0
        %v912 = vpop.trf.xlu0
        %v913 = vpop.trf.xlu0
        %v914 = vpop.trf.xlu0
        %v915 = vpop.trf.xlu0
        %v916 = vpop.trf.xlu0
        %v917 = vpop.trf.xlu0
        %v918 = vpop.trf.xlu0
        %919 = vxpose.xlu0.c.b16.start [1/8] %v805, 128
        %920 = vxpose.xlu0.c.b16.cont [2/8] 0, 128
        %921 = vxpose.xlu0.c.b16.cont [3/8] 0, 128
        %922 = vxpose.xlu0.c.b16.cont [4/8] 0, 128
        %923 = vxpose.xlu0.c.b16.cont [5/8] 0, 128
        %924 = vxpose.xlu0.c.b16.cont [6/8] 0, 128
        %925 = vxpose.xlu0.c.b16.cont [7/8] 0, 128
        %926 = vxpose.xlu0.c.b16.end [8/8] 0, 128
        %v927 = vpop.trf.xlu0
        %v928 = vpop.trf.xlu0
        %v929 = vpop.trf.xlu0
        %v930 = vpop.trf.xlu0
        %v931 = vpop.trf.xlu0
        %v932 = vpop.trf.xlu0
        %v933 = vpop.trf.xlu0
        %v934 = vpop.trf.xlu0
        %v935 = vcombine.low %v815, %v879
        %v937 = vunpack.c.l.s4 1983009808
        %v938 = vunpack.c.0.s8 %v937
        %v939 = vlaneseq
        %v940 = vshrl.u32 %v939, 7
        %v941 = vsub.s32 %v938, %v940
        %v942 = vrot.slane %v935, %v941
        %v943 = vcombine.low %v847, %v911
        %v945 = vunpack.c.l.s4 1983009808
        %v946 = vunpack.c.0.s8 %v945
        %v947 = vlaneseq
        %v948 = vshrl.u32 %v947, 7
        %v949 = vsub.s32 %v946, %v948
        %v950 = vrot.slane %v943, %v949
        %v951 = vcombine.low %v942, %v950
        %v953 = vunpack.c.l.s4 1934713408
        %v954 = vunpack.c.0.s8 %v953
        %v955 = vlaneseq
        %v956 = vshrl.u32 %v955, 7
        %v957 = vsub.s32 %v954, %v956
        %v958 = vrot.slane %v951, %v957
        %v959 = vcombine.high %v958, 0
        %v960 = vcombine.low %v831, %v895
        %v962 = vunpack.c.l.s4 1983009808
        %v963 = vunpack.c.0.s8 %v962
        %v964 = vlaneseq
        %v965 = vshrl.u32 %v964, 7
        %v966 = vsub.s32 %v963, %v965
        %v967 = vrot.slane %v960, %v966
        %v968 = vcombine.low %v863, %v927
        %v970 = vunpack.c.l.s4 1983009808
        %v971 = vunpack.c.0.s8 %v970
        %v972 = vlaneseq
        %v973 = vshrl.u32 %v972, 7
        %v974 = vsub.s32 %v971, %v973
        %v975 = vrot.slane %v968, %v974
        %v976 = vcombine.low %v967, %v975
        %v978 = vunpack.c.l.s4 1934713408
        %v979 = vunpack.c.0.s8 %v978
        %v980 = vlaneseq
        %v981 = vshrl.u32 %v980, 7
        %v982 = vsub.s32 %v979, %v981
        %v983 = vrot.slane %v976, %v982
        %v984 = vcombine.high %v983, 0
        %v987 = vpack.i.b16 %v983, %v958
        %v988 = vshrl.u32 %v958, 16
        %v989 = vshrl.u32 %v983, 16
        %v990 = vpack.i.b16 %v989, %v988
        %v993 = vpack.i.b16 %v984, %v959
        %v994 = vshrl.u32 %v959, 16
        %v995 = vshrl.u32 %v984, 16
        %v996 = vpack.i.b16 %v995, %v994
        %v997 = vcombine.low %v557, %v569
        %v999 = vunpack.c.l.s4 1983009808
        %v1000 = vunpack.c.0.s8 %v999
        %v1001 = vlaneseq
        %v1002 = vshrl.u32 %v1001, 7
        %v1003 = vsub.s32 %v1000, %v1002
        %v1004 = vrot.slane %v997, %v1003
        %vm1005 = vcmask 64512
        %v1007 = vsel %vm1005, %v1004, 0
        %vm1009 = vcmask 1043456
        %v1011 = vsel %vm1009, %v987, 0
        %1013 = vmatprep.subr.bf16.mxu0 0
        %1014 = vmatpush1.bf16.msra.mxu0 %v1011
        %1015 = vmatprep.subr.bf16.mxu0 0
        %1016 = vmatpush1.bf16.msra.mxu0 0
        %1017 = vmatprep.subr.bf16.mxu0 0
        %1018 = vmatpush1.bf16.msra.mxu0 0
        %1019 = vmatprep.subr.bf16.mxu0 0
        %1020 = vmatpush1.bf16.msra.mxu0 0
        %1021 = vmatprep.subr.bf16.mxu0 0
        %1022 = vmatpush1.bf16.msra.mxu0 0
        %1023 = vmatprep.subr.bf16.mxu0 0
        %1024 = vmatpush1.bf16.msra.mxu0 0
        %1025 = vmatprep.subr.bf16.mxu0 0
        %1026 = vmatpush1.bf16.msra.mxu0 0
        %1027 = vmatprep.subr.bf16.mxu0 0
        %1028 = vmatpush1.bf16.msra.mxu0 0
        %1029 = vmatprep.subr.bf16.mxu0 0
        %1030 = vmatpush1.bf16.msra.mxu0 0
        %1031 = vmatprep.subr.bf16.mxu0 0
        %1032 = vmatpush1.bf16.msra.mxu0 0
        %1033 = vmatprep.subr.bf16.mxu0 0
        %1034 = vmatpush1.bf16.msra.mxu0 0
        %1035 = vmatprep.subr.bf16.mxu0 0
        %1036 = vmatpush1.bf16.msra.mxu0 0
        %1037 = vmatprep.subr.bf16.mxu0 0
        %1038 = vmatpush1.bf16.msra.mxu0 0
        %1039 = vmatprep.subr.bf16.mxu0 0
        %1040 = vmatpush1.bf16.msra.mxu0 0
        %1041 = vmatprep.subr.bf16.mxu0 0
        %1042 = vmatpush1.bf16.msra.mxu0 0
        %1043 = vmatprep.subr.bf16.mxu0 0
        %1044 = vmatpush1.bf16.msra.mxu0 0
        %1045 = vmatprep.mubr.bf16.mxu0 0
        %1046 = vmatmul.mubr.bf16.gmra.mrb[0].mxu0 %v1007
        %v1047 = vpop.f32.mrb[0].mxu0
        %v1048 = vadd.f32 0.0, %v1047
        %v1049 = vpop.f32.mrb[0].mxu0
        %v1050 = vpop.f32.mrb[0].mxu0
        %v1051 = vpop.f32.mrb[0].mxu0
        %1052 = vdwg.mxu0
        %v1053 = vcombine.low %v560, %v572
        %v1055 = vunpack.c.l.s4 1983009808
        %v1056 = vunpack.c.0.s8 %v1055
        %v1057 = vlaneseq
        %v1058 = vshrl.u32 %v1057, 7
        %v1059 = vsub.s32 %v1056, %v1058
        %v1060 = vrot.slane %v1053, %v1059
        %v1062 = vsel %vm1005, %v1060, 0
        %v1065 = vsel %vm1009, %v990, 0
        %1067 = vmatprep.subr.bf16.mxu0 0
        %1068 = vmatpush1.bf16.msra.mxu0 %v1065
        %1069 = vmatprep.subr.bf16.mxu0 0
        %1070 = vmatpush1.bf16.msra.mxu0 0
        %1071 = vmatprep.subr.bf16.mxu0 0
        %1072 = vmatpush1.bf16.msra.mxu0 0
        %1073 = vmatprep.subr.bf16.mxu0 0
        %1074 = vmatpush1.bf16.msra.mxu0 0
        %1075 = vmatprep.subr.bf16.mxu0 0
        %1076 = vmatpush1.bf16.msra.mxu0 0
        %1077 = vmatprep.subr.bf16.mxu0 0
        %1078 = vmatpush1.bf16.msra.mxu0 0
        %1079 = vmatprep.subr.bf16.mxu0 0
        %1080 = vmatpush1.bf16.msra.mxu0 0
        %1081 = vmatprep.subr.bf16.mxu0 0
        %1082 = vmatpush1.bf16.msra.mxu0 0
        %1083 = vmatprep.subr.bf16.mxu0 0
        %1084 = vmatpush1.bf16.msra.mxu0 0
        %1085 = vmatprep.subr.bf16.mxu0 0
        %1086 = vmatpush1.bf16.msra.mxu0 0
        %1087 = vmatprep.subr.bf16.mxu0 0
        %1088 = vmatpush1.bf16.msra.mxu0 0
        %1089 = vmatprep.subr.bf16.mxu0 0
        %1090 = vmatpush1.bf16.msra.mxu0 0
        %1091 = vmatprep.subr.bf16.mxu0 0
        %1092 = vmatpush1.bf16.msra.mxu0 0
        %1093 = vmatprep.subr.bf16.mxu0 0
        %1094 = vmatpush1.bf16.msra.mxu0 0
        %1095 = vmatprep.subr.bf16.mxu0 0
        %1096 = vmatpush1.bf16.msra.mxu0 0
        %1097 = vmatprep.subr.bf16.mxu0 0
        %1098 = vmatpush1.bf16.msra.mxu0 0
        %1099 = vmatprep.mubr.bf16.mxu0 0
        %1100 = vmatmul.mubr.bf16.gmra.mrb[0].mxu0 %v1062
        %v1101 = vpop.f32.mrb[0].mxu0
        %v1102 = vadd.f32 0.0, %v1101
        %v1103 = vpop.f32.mrb[0].mxu0
        %v1104 = vpop.f32.mrb[0].mxu0
        %v1105 = vpop.f32.mrb[0].mxu0
        %1106 = vdwg.mxu0
        %v1107 = vcombine.low %v563, %v575
        %v1109 = vunpack.c.l.s4 1983009808
        %v1110 = vunpack.c.0.s8 %v1109
        %v1111 = vlaneseq
        %v1112 = vshrl.u32 %v1111, 7
        %v1113 = vsub.s32 %v1110, %v1112
        %v1114 = vrot.slane %v1107, %v1113
        %v1116 = vsel %vm1005, %v1114, 0
        %v1119 = vsel %vm1009, %v993, 0
        %1121 = vmatprep.subr.bf16.mxu0 0
        %1122 = vmatpush1.bf16.msra.mxu0 %v1119
        %1123 = vmatprep.subr.bf16.mxu0 0
        %1124 = vmatpush1.bf16.msra.mxu0 0
        %1125 = vmatprep.subr.bf16.mxu0 0
        %1126 = vmatpush1.bf16.msra.mxu0 0
        %1127 = vmatprep.subr.bf16.mxu0 0
        %1128 = vmatpush1.bf16.msra.mxu0 0
        %1129 = vmatprep.subr.bf16.mxu0 0
        %1130 = vmatpush1.bf16.msra.mxu0 0
        %1131 = vmatprep.subr.bf16.mxu0 0
        %1132 = vmatpush1.bf16.msra.mxu0 0
        %1133 = vmatprep.subr.bf16.mxu0 0
        %1134 = vmatpush1.bf16.msra.mxu0 0
        %1135 = vmatprep.subr.bf16.mxu0 0
        %1136 = vmatpush1.bf16.msra.mxu0 0
        %1137 = vmatprep.subr.bf16.mxu0 0
        %1138 = vmatpush1.bf16.msra.mxu0 0
        %1139 = vmatprep.subr.bf16.mxu0 0
        %1140 = vmatpush1.bf16.msra.mxu0 0
        %1141 = vmatprep.subr.bf16.mxu0 0
        %1142 = vmatpush1.bf16.msra.mxu0 0
        %1143 = vmatprep.subr.bf16.mxu0 0
        %1144 = vmatpush1.bf16.msra.mxu0 0
        %1145 = vmatprep.subr.bf16.mxu0 0
        %1146 = vmatpush1.bf16.msra.mxu0 0
        %1147 = vmatprep.subr.bf16.mxu0 0
        %1148 = vmatpush1.bf16.msra.mxu0 0
        %1149 = vmatprep.subr.bf16.mxu0 0
        %1150 = vmatpush1.bf16.msra.mxu0 0
        %1151 = vmatprep.subr.bf16.mxu0 0
        %1152 = vmatpush1.bf16.msra.mxu0 0
        %1153 = vmatprep.mubr.bf16.mxu0 0
        %1154 = vmatmul.mubr.bf16.gmra.mrb[0].mxu0 %v1116
        %v1155 = vpop.f32.mrb[0].mxu0
        %v1156 = vadd.f32 0.0, %v1155
        %v1157 = vpop.f32.mrb[0].mxu0
        %v1158 = vpop.f32.mrb[0].mxu0
        %v1159 = vpop.f32.mrb[0].mxu0
        %1160 = vdwg.mxu0
        %v1161 = vcombine.low %v566, %v578
        %v1163 = vunpack.c.l.s4 1983009808
        %v1164 = vunpack.c.0.s8 %v1163
        %v1165 = vlaneseq
        %v1166 = vshrl.u32 %v1165, 7
        %v1167 = vsub.s32 %v1164, %v1166
        %v1168 = vrot.slane %v1161, %v1167
        %v1170 = vsel %vm1005, %v1168, 0
        %v1173 = vsel %vm1009, %v996, 0
        %1175 = vmatprep.subr.bf16.mxu0 0
        %1176 = vmatpush1.bf16.msra.mxu0 %v1173
        %1177 = vmatprep.subr.bf16.mxu0 0
        %1178 = vmatpush1.bf16.msra.mxu0 0
        %1179 = vmatprep.subr.bf16.mxu0 0
        %1180 = vmatpush1.bf16.msra.mxu0 0
        %1181 = vmatprep.subr.bf16.mxu0 0
        %1182 = vmatpush1.bf16.msra.mxu0 0
        %1183 = vmatprep.subr.bf16.mxu0 0
        %1184 = vmatpush1.bf16.msra.mxu0 0
        %1185 = vmatprep.subr.bf16.mxu0 0
        %1186 = vmatpush1.bf16.msra.mxu0 0
        %1187 = vmatprep.subr.bf16.mxu0 0
        %1188 = vmatpush1.bf16.msra.mxu0 0
        %1189 = vmatprep.subr.bf16.mxu0 0
        %1190 = vmatpush1.bf16.msra.mxu0 0
        %1191 = vmatprep.subr.bf16.mxu0 0
        %1192 = vmatpush1.bf16.msra.mxu0 0
        %1193 = vmatprep.subr.bf16.mxu0 0
        %1194 = vmatpush1.bf16.msra.mxu0 0
        %1195 = vmatprep.subr.bf16.mxu0 0
        %1196 = vmatpush1.bf16.msra.mxu0 0
        %1197 = vmatprep.subr.bf16.mxu0 0
        %1198 = vmatpush1.bf16.msra.mxu0 0
        %1199 = vmatprep.subr.bf16.mxu0 0
        %1200 = vmatpush1.bf16.msra.mxu0 0
        %1201 = vmatprep.subr.bf16.mxu0 0
        %1202 = vmatpush1.bf16.msra.mxu0 0
        %1203 = vmatprep.subr.bf16.mxu0 0
        %1204 = vmatpush1.bf16.msra.mxu0 0
        %1205 = vmatprep.subr.bf16.mxu0 0
        %1206 = vmatpush1.bf16.msra.mxu0 0
        %1207 = vmatprep.mubr.bf16.mxu0 0
        %1208 = vmatmul.mubr.bf16.gmra.mrb[0].mxu0 %v1170
        %v1209 = vpop.f32.mrb[0].mxu0
        %v1210 = vadd.f32 0.0, %v1209
        %v1211 = vpop.f32.mrb[0].mxu0
        %v1212 = vpop.f32.mrb[0].mxu0
        %v1213 = vpop.f32.mrb[0].mxu0
        %1214 = vdwg.mxu0
        %v1215 = vmul.f32 %v1048, 0.35355338
        %v1216 = vmul.f32 %v1102, 0.35355338
        %v1217 = vmul.f32 %v1156, 0.35355338
        %v1218 = vmul.f32 %v1210, 0.35355338
        %v1220 = vlaneseq
        %v1221 = vshrl.u32 %v1220, 7
        %v1222 = vsub.s32 0, %v1221
        %v1223 = vrot.slane %v518, %v1222
        %v1225 = vadd.f32 %v1215, %v1223
        %v1226 = vadd.f32 %v1216, %v1223
        %v1227 = vadd.f32 %v1217, %v1223
        %v1228 = vadd.f32 %v1218, %v1223
        %v1229 = vsel %vm1005, %v1225, -inf
        %1230 = vmax.xlane.f32.xlu0 %v1229
        %v1231 = vpop.xlane.xlu0 %1230
        %v1232 = vsel %vm1005, %v1226, -inf
        %1233 = vmax.xlane.f32.xlu0 %v1232
        %v1234 = vpop.xlane.xlu0 %1233
        %v1235 = vsel %vm1005, %v1227, -inf
        %1236 = vmax.xlane.f32.xlu0 %v1235
        %v1237 = vpop.xlane.xlu0 %1236
        %v1238 = vsel %vm1005, %v1228, -inf
        %1239 = vmax.xlane.f32.xlu0 %v1238
        %v1240 = vpop.xlane.xlu0 %1239
        %v1241 = vsub.f32 %v1225, %v1231
        %v1242 = vsub.f32 %v1226, %v1234
        %v1243 = vsub.f32 %v1227, %v1237
        %v1244 = vsub.f32 %v1228, %v1240
        %v1245 = vmul.f32 %v1241, 1.442695
        %v1246 = vpow.pop %v1245
        %v1247 = vmul.f32 %v1242, 1.442695
        %v1248 = vpow.pop %v1247
        %v1249 = vmul.f32 %v1243, 1.442695
        %v1250 = vpow.pop %v1249
        %v1251 = vmul.f32 %v1244, 1.442695
        %v1252 = vpow.pop %v1251
        %v1253 = vsel %vm1005, %v1246, 0.0
        %1254 = vadd.xlane.f32.xlu0 %v1253
        %v1255 = vpop.xlane.xlu0 %1254
        %v1256 = vsel %vm1005, %v1248, 0.0
        %1257 = vadd.xlane.f32.xlu0 %v1256
        %v1258 = vpop.xlane.xlu0 %1257
        %v1259 = vsel %vm1005, %v1250, 0.0
        %1260 = vadd.xlane.f32.xlu0 %v1259
        %v1261 = vpop.xlane.xlu0 %1260
        %v1262 = vsel %vm1005, %v1252, 0.0
        %1263 = vadd.xlane.f32.xlu0 %v1262
        %v1264 = vpop.xlane.xlu0 %1263
        %v1265 = vrcp.pop %v1255
        %v1266 = vrcp.pop %v1258
        %v1267 = vrcp.pop %v1261
        %v1268 = vrcp.pop %v1264
        %v1269 = vmul.f32 %v1246, %v1265
        %v1270 = vmul.f32 %v1248, %v1266
        %v1271 = vmul.f32 %v1250, %v1267
        %v1272 = vmul.f32 %v1252, %v1268
        %v1273 = vpack.c.bf16 %v1269, %v1269
        %v1274 = vpack.c.bf16 %v1270, %v1270
        %v1275 = vpack.c.bf16 %v1271, %v1271
        %v1276 = vpack.c.bf16 %v1272, %v1272
        %1277 = vxpose.xlu0.c.b16.start [1/8] %v510, 128
        %1278 = vxpose.xlu0.c.b16.cont [2/8] 0, 128
        %1279 = vxpose.xlu0.c.b16.cont [3/8] 0, 128
        %1280 = vxpose.xlu0.c.b16.cont [4/8] 0, 128
        %1281 = vxpose.xlu0.c.b16.cont [5/8] 0, 128
        %1282 = vxpose.xlu0.c.b16.cont [6/8] 0, 128
        %1283 = vxpose.xlu0.c.b16.cont [7/8] 0, 128
        %1284 = vxpose.xlu0.c.b16.end [8/8] 0, 128
        %v1285 = vpop.trf.xlu0
        %v1286 = vpop.trf.xlu0
        %v1287 = vpop.trf.xlu0
        %v1288 = vpop.trf.xlu0
        %v1289 = vpop.trf.xlu0
        %v1290 = vpop.trf.xlu0
        %v1291 = vpop.trf.xlu0
        %v1292 = vpop.trf.xlu0
        %1293 = vxpose.xlu0.c.b16.start [1/8] %v511, 128
        %1294 = vxpose.xlu0.c.b16.cont [2/8] 0, 128
        %1295 = vxpose.xlu0.c.b16.cont [3/8] 0, 128
        %1296 = vxpose.xlu0.c.b16.cont [4/8] 0, 128
        %1297 = vxpose.xlu0.c.b16.cont [5/8] 0, 128
        %1298 = vxpose.xlu0.c.b16.cont [6/8] 0, 128
        %1299 = vxpose.xlu0.c.b16.cont [7/8] 0, 128
        %1300 = vxpose.xlu0.c.b16.end [8/8] 0, 128
        %v1301 = vpop.trf.xlu0
        %v1302 = vpop.trf.xlu0
        %v1303 = vpop.trf.xlu0
        %v1304 = vpop.trf.xlu0
        %v1305 = vpop.trf.xlu0
        %v1306 = vpop.trf.xlu0
        %v1307 = vpop.trf.xlu0
        %v1308 = vpop.trf.xlu0
        %1309 = vxpose.xlu0.c.b16.start [1/8] %v512, 128
        %1310 = vxpose.xlu0.c.b16.cont [2/8] 0, 128
        %1311 = vxpose.xlu0.c.b16.cont [3/8] 0, 128
        %1312 = vxpose.xlu0.c.b16.cont [4/8] 0, 128
        %1313 = vxpose.xlu0.c.b16.cont [5/8] 0, 128
        %1314 = vxpose.xlu0.c.b16.cont [6/8] 0, 128
        %1315 = vxpose.xlu0.c.b16.cont [7/8] 0, 128
        %1316 = vxpose.xlu0.c.b16.end [8/8] 0, 128
        %v1317 = vpop.trf.xlu0
        %v1318 = vpop.trf.xlu0
        %v1319 = vpop.trf.xlu0
        %v1320 = vpop.trf.xlu0
        %v1321 = vpop.trf.xlu0
        %v1322 = vpop.trf.xlu0
        %v1323 = vpop.trf.xlu0
        %v1324 = vpop.trf.xlu0
        %1325 = vxpose.xlu0.c.b16.start [1/8] %v513, 128
        %1326 = vxpose.xlu0.c.b16.cont [2/8] 0, 128
        %1327 = vxpose.xlu0.c.b16.cont [3/8] 0, 128
        %1328 = vxpose.xlu0.c.b16.cont [4/8] 0, 128
        %1329 = vxpose.xlu0.c.b16.cont [5/8] 0, 128
        %1330 = vxpose.xlu0.c.b16.cont [6/8] 0, 128
        %1331 = vxpose.xlu0.c.b16.cont [7/8] 0, 128
        %1332 = vxpose.xlu0.c.b16.end [8/8] 0, 128
        %v1333 = vpop.trf.xlu0
        %v1334 = vpop.trf.xlu0
        %v1335 = vpop.trf.xlu0
        %v1336 = vpop.trf.xlu0
        %v1337 = vpop.trf.xlu0
        %v1338 = vpop.trf.xlu0
        %v1339 = vpop.trf.xlu0
        %v1340 = vpop.trf.xlu0
        %1341 = vxpose.xlu0.c.b16.start [1/8] %v514, 128
        %1342 = vxpose.xlu0.c.b16.cont [2/8] 0, 128
        %1343 = vxpose.xlu0.c.b16.cont [3/8] 0, 128
        %1344 = vxpose.xlu0.c.b16.cont [4/8] 0, 128
        %1345 = vxpose.xlu0.c.b16.cont [5/8] 0, 128
        %1346 = vxpose.xlu0.c.b16.cont [6/8] 0, 128
        %1347 = vxpose.xlu0.c.b16.cont [7/8] 0, 128
        %1348 = vxpose.xlu0.c.b16.end [8/8] 0, 128
        %v1349 = vpop.trf.xlu0
        %v1350 = vpop.trf.xlu0
        %v1351 = vpop.trf.xlu0
        %v1352 = vpop.trf.xlu0
        %v1353 = vpop.trf.xlu0
        %v1354 = vpop.trf.xlu0
        %v1355 = vpop.trf.xlu0
        %v1356 = vpop.trf.xlu0
        %1357 = vxpose.xlu0.c.b16.start [1/8] %v515, 128
        %1358 = vxpose.xlu0.c.b16.cont [2/8] 0, 128
        %1359 = vxpose.xlu0.c.b16.cont [3/8] 0, 128
        %1360 = vxpose.xlu0.c.b16.cont [4/8] 0, 128
        %1361 = vxpose.xlu0.c.b16.cont [5/8] 0, 128
        %1362 = vxpose.xlu0.c.b16.cont [6/8] 0, 128
        %1363 = vxpose.xlu0.c.b16.cont [7/8] 0, 128
        %1364 = vxpose.xlu0.c.b16.end [8/8] 0, 128
        %v1365 = vpop.trf.xlu0
        %v1366 = vpop.trf.xlu0
        %v1367 = vpop.trf.xlu0
        %v1368 = vpop.trf.xlu0
        %v1369 = vpop.trf.xlu0
        %v1370 = vpop.trf.xlu0
        %v1371 = vpop.trf.xlu0
        %v1372 = vpop.trf.xlu0
        %1373 = vxpose.xlu0.c.b16.start [1/8] %v516, 128
        %1374 = vxpose.xlu0.c.b16.cont [2/8] 0, 128
        %1375 = vxpose.xlu0.c.b16.cont [3/8] 0, 128
        %1376 = vxpose.xlu0.c.b16.cont [4/8] 0, 128
        %1377 = vxpose.xlu0.c.b16.cont [5/8] 0, 128
        %1378 = vxpose.xlu0.c.b16.cont [6/8] 0, 128
        %1379 = vxpose.xlu0.c.b16.cont [7/8] 0, 128
        %1380 = vxpose.xlu0.c.b16.end [8/8] 0, 128
        %v1381 = vpop.trf.xlu0
        %v1382 = vpop.trf.xlu0
        %v1383 = vpop.trf.xlu0
        %v1384 = vpop.trf.xlu0
        %v1385 = vpop.trf.xlu0
        %v1386 = vpop.trf.xlu0
        %v1387 = vpop.trf.xlu0
        %v1388 = vpop.trf.xlu0
        %1389 = vxpose.xlu0.c.b16.start [1/8] %v517, 128
        %1390 = vxpose.xlu0.c.b16.cont [2/8] 0, 128
        %1391 = vxpose.xlu0.c.b16.cont [3/8] 0, 128
        %1392 = vxpose.xlu0.c.b16.cont [4/8] 0, 128
        %1393 = vxpose.xlu0.c.b16.cont [5/8] 0, 128
        %1394 = vxpose.xlu0.c.b16.cont [6/8] 0, 128
        %1395 = vxpose.xlu0.c.b16.cont [7/8] 0, 128
        %1396 = vxpose.xlu0.c.b16.end [8/8] 0, 128
        %v1397 = vpop.trf.xlu0
        %v1398 = vpop.trf.xlu0
        %v1399 = vpop.trf.xlu0
        %v1400 = vpop.trf.xlu0
        %v1401 = vpop.trf.xlu0
        %v1402 = vpop.trf.xlu0
        %v1403 = vpop.trf.xlu0
        %v1404 = vpop.trf.xlu0
        %v1405 = vcombine.low %v1285, %v1349
        %v1407 = vunpack.c.l.s4 1983009808
        %v1408 = vunpack.c.0.s8 %v1407
        %v1409 = vlaneseq
        %v1410 = vshrl.u32 %v1409, 7
        %v1411 = vsub.s32 %v1408, %v1410
        %v1412 = vrot.slane %v1405, %v1411
        %v1413 = vcombine.low %v1317, %v1381
        %v1415 = vunpack.c.l.s4 1983009808
        %v1416 = vunpack.c.0.s8 %v1415
        %v1417 = vlaneseq
        %v1418 = vshrl.u32 %v1417, 7
        %v1419 = vsub.s32 %v1416, %v1418
        %v1420 = vrot.slane %v1413, %v1419
        %v1421 = vcombine.low %v1412, %v1420
        %v1422 = vcombine.high %v1412, %v1420
        %v1424 = vunpack.c.l.s4 1934713408
        %v1425 = vunpack.c.0.s8 %v1424
        %v1426 = vlaneseq
        %v1427 = vshrl.u32 %v1426, 7
        %v1428 = vsub.s32 %v1425, %v1427
        %v1429 = vrot.slane %v1421, %v1428
        %v1431 = vunpack.c.l.s4 1934713408
        %v1432 = vunpack.c.0.s8 %v1431
        %v1433 = vlaneseq
        %v1434 = vshrl.u32 %v1433, 7
        %v1435 = vsub.s32 %v1432, %v1434
        %v1436 = vrot.slane %v1422, %v1435
        %v1437 = vcombine.high %v1429, 0
        %v1438 = vcombine.high %v1436, 0
        %v1439 = vcombine.low %v1301, %v1365
        %v1441 = vunpack.c.l.s4 1983009808
        %v1442 = vunpack.c.0.s8 %v1441
        %v1443 = vlaneseq
        %v1444 = vshrl.u32 %v1443, 7
        %v1445 = vsub.s32 %v1442, %v1444
        %v1446 = vrot.slane %v1439, %v1445
        %v1447 = vcombine.low %v1333, %v1397
        %v1449 = vunpack.c.l.s4 1983009808
        %v1450 = vunpack.c.0.s8 %v1449
        %v1451 = vlaneseq
        %v1452 = vshrl.u32 %v1451, 7
        %v1453 = vsub.s32 %v1450, %v1452
        %v1454 = vrot.slane %v1447, %v1453
        %v1455 = vcombine.low %v1446, %v1454
        %v1456 = vcombine.high %v1446, %v1454
        %v1458 = vunpack.c.l.s4 1934713408
        %v1459 = vunpack.c.0.s8 %v1458
        %v1460 = vlaneseq
        %v1461 = vshrl.u32 %v1460, 7
        %v1462 = vsub.s32 %v1459, %v1461
        %v1463 = vrot.slane %v1455, %v1462
        %v1465 = vunpack.c.l.s4 1934713408
        %v1466 = vunpack.c.0.s8 %v1465
        %v1467 = vlaneseq
        %v1468 = vshrl.u32 %v1467, 7
        %v1469 = vsub.s32 %v1466, %v1468
        %v1470 = vrot.slane %v1456, %v1469
        %v1471 = vcombine.high %v1463, 0
        %v1472 = vcombine.high %v1470, 0
        %v1475 = vpack.i.b16 %v1463, %v1429
        %v1477 = vshrl.u32 %v1429, 16
        %v1478 = vshrl.u32 %v1463, 16
        %v1479 = vpack.i.b16 %v1478, %v1477
        %v1483 = vpack.i.b16 %v1471, %v1437
        %v1485 = vshrl.u32 %v1437, 16
        %v1486 = vshrl.u32 %v1471, 16
        %v1487 = vpack.i.b16 %v1486, %v1485
        %v1491 = vpack.i.b16 %v1470, %v1436
        %v1493 = vshrl.u32 %v1436, 16
        %v1494 = vshrl.u32 %v1470, 16
        %v1495 = vpack.i.b16 %v1494, %v1493
        %v1499 = vpack.i.b16 %v1472, %v1438
        %v1501 = vshrl.u32 %v1438, 16
        %v1502 = vshrl.u32 %v1472, 16
        %v1503 = vpack.i.b16 %v1502, %v1501
        %1505 = vxpose.xlu0.c.b16.start [1/8] %v1475, 128
        %1506 = vxpose.xlu0.c.b16.cont [2/8] 0, 128
        %1507 = vxpose.xlu0.c.b16.cont [3/8] 0, 128
        %1508 = vxpose.xlu0.c.b16.cont [4/8] 0, 128
        %1509 = vxpose.xlu0.c.b16.cont [5/8] 0, 128
        %1510 = vxpose.xlu0.c.b16.cont [6/8] 0, 128
        %1511 = vxpose.xlu0.c.b16.cont [7/8] 0, 128
        %1512 = vxpose.xlu0.c.b16.end [8/8] 0, 128
        %v1513 = vpop.trf.xlu0
        %v1514 = vpop.trf.xlu0
        %v1515 = vpop.trf.xlu0
        %v1516 = vpop.trf.xlu0
        %v1517 = vpop.trf.xlu0
        %v1518 = vpop.trf.xlu0
        %v1519 = vpop.trf.xlu0
        %v1520 = vpop.trf.xlu0
        %1521 = vxpose.xlu0.c.b16.start [1/8] %v1479, 128
        %1522 = vxpose.xlu0.c.b16.cont [2/8] 0, 128
        %1523 = vxpose.xlu0.c.b16.cont [3/8] 0, 128
        %1524 = vxpose.xlu0.c.b16.cont [4/8] 0, 128
        %1525 = vxpose.xlu0.c.b16.cont [5/8] 0, 128
        %1526 = vxpose.xlu0.c.b16.cont [6/8] 0, 128
        %1527 = vxpose.xlu0.c.b16.cont [7/8] 0, 128
        %1528 = vxpose.xlu0.c.b16.end [8/8] 0, 128
        %v1529 = vpop.trf.xlu0
        %v1530 = vpop.trf.xlu0
        %v1531 = vpop.trf.xlu0
        %v1532 = vpop.trf.xlu0
        %v1533 = vpop.trf.xlu0
        %v1534 = vpop.trf.xlu0
        %v1535 = vpop.trf.xlu0
        %v1536 = vpop.trf.xlu0
        %1537 = vxpose.xlu0.c.b16.start [1/8] %v1483, 128
        %1538 = vxpose.xlu0.c.b16.cont [2/8] 0, 128
        %1539 = vxpose.xlu0.c.b16.cont [3/8] 0, 128
        %1540 = vxpose.xlu0.c.b16.cont [4/8] 0, 128
        %1541 = vxpose.xlu0.c.b16.cont [5/8] 0, 128
        %1542 = vxpose.xlu0.c.b16.cont [6/8] 0, 128
        %1543 = vxpose.xlu0.c.b16.cont [7/8] 0, 128
        %1544 = vxpose.xlu0.c.b16.end [8/8] 0, 128
        %v1545 = vpop.trf.xlu0
        %v1546 = vpop.trf.xlu0
        %v1547 = vpop.trf.xlu0
        %v1548 = vpop.trf.xlu0
        %v1549 = vpop.trf.xlu0
        %v1550 = vpop.trf.xlu0
        %v1551 = vpop.trf.xlu0
        %v1552 = vpop.trf.xlu0
        %1553 = vxpose.xlu0.c.b16.start [1/8] %v1487, 128
        %1554 = vxpose.xlu0.c.b16.cont [2/8] 0, 128
        %1555 = vxpose.xlu0.c.b16.cont [3/8] 0, 128
        %1556 = vxpose.xlu0.c.b16.cont [4/8] 0, 128
        %1557 = vxpose.xlu0.c.b16.cont [5/8] 0, 128
        %1558 = vxpose.xlu0.c.b16.cont [6/8] 0, 128
        %1559 = vxpose.xlu0.c.b16.cont [7/8] 0, 128
        %1560 = vxpose.xlu0.c.b16.end [8/8] 0, 128
        %v1561 = vpop.trf.xlu0
        %v1562 = vpop.trf.xlu0
        %v1563 = vpop.trf.xlu0
        %v1564 = vpop.trf.xlu0
        %v1565 = vpop.trf.xlu0
        %v1566 = vpop.trf.xlu0
        %v1567 = vpop.trf.xlu0
        %v1568 = vpop.trf.xlu0
        %1569 = vxpose.xlu0.c.b16.start [1/8] %v1491, 128
        %1570 = vxpose.xlu0.c.b16.cont [2/8] 0, 128
        %1571 = vxpose.xlu0.c.b16.cont [3/8] 0, 128
        %1572 = vxpose.xlu0.c.b16.cont [4/8] 0, 128
        %1573 = vxpose.xlu0.c.b16.cont [5/8] 0, 128
        %1574 = vxpose.xlu0.c.b16.cont [6/8] 0, 128
        %1575 = vxpose.xlu0.c.b16.cont [7/8] 0, 128
        %1576 = vxpose.xlu0.c.b16.end [8/8] 0, 128
        %v1577 = vpop.trf.xlu0
        %v1578 = vpop.trf.xlu0
        %v1579 = vpop.trf.xlu0
        %v1580 = vpop.trf.xlu0
        %v1581 = vpop.trf.xlu0
        %v1582 = vpop.trf.xlu0
        %v1583 = vpop.trf.xlu0
        %v1584 = vpop.trf.xlu0
        %1585 = vxpose.xlu0.c.b16.start [1/8] %v1495, 128
        %1586 = vxpose.xlu0.c.b16.cont [2/8] 0, 128
        %1587 = vxpose.xlu0.c.b16.cont [3/8] 0, 128
        %1588 = vxpose.xlu0.c.b16.cont [4/8] 0, 128
        %1589 = vxpose.xlu0.c.b16.cont [5/8] 0, 128
        %1590 = vxpose.xlu0.c.b16.cont [6/8] 0, 128
        %1591 = vxpose.xlu0.c.b16.cont [7/8] 0, 128
        %1592 = vxpose.xlu0.c.b16.end [8/8] 0, 128
        %v1593 = vpop.trf.xlu0
        %v1594 = vpop.trf.xlu0
        %v1595 = vpop.trf.xlu0
        %v1596 = vpop.trf.xlu0
        %v1597 = vpop.trf.xlu0
        %v1598 = vpop.trf.xlu0
        %v1599 = vpop.trf.xlu0
        %v1600 = vpop.trf.xlu0
        %1601 = vxpose.xlu0.c.b16.start [1/8] %v1499, 128
        %1602 = vxpose.xlu0.c.b16.cont [2/8] 0, 128
        %1603 = vxpose.xlu0.c.b16.cont [3/8] 0, 128
        %1604 = vxpose.xlu0.c.b16.cont [4/8] 0, 128
        %1605 = vxpose.xlu0.c.b16.cont [5/8] 0, 128
        %1606 = vxpose.xlu0.c.b16.cont [6/8] 0, 128
        %1607 = vxpose.xlu0.c.b16.cont [7/8] 0, 128
        %1608 = vxpose.xlu0.c.b16.end [8/8] 0, 128
        %v1609 = vpop.trf.xlu0
        %v1610 = vpop.trf.xlu0
        %v1611 = vpop.trf.xlu0
        %v1612 = vpop.trf.xlu0
        %v1613 = vpop.trf.xlu0
        %v1614 = vpop.trf.xlu0
        %v1615 = vpop.trf.xlu0
        %v1616 = vpop.trf.xlu0
        %1617 = vxpose.xlu0.c.b16.start [1/8] %v1503, 128
        %1618 = vxpose.xlu0.c.b16.cont [2/8] 0, 128
        %1619 = vxpose.xlu0.c.b16.cont [3/8] 0, 128
        %1620 = vxpose.xlu0.c.b16.cont [4/8] 0, 128
        %1621 = vxpose.xlu0.c.b16.cont [5/8] 0, 128
        %1622 = vxpose.xlu0.c.b16.cont [6/8] 0, 128
        %1623 = vxpose.xlu0.c.b16.cont [7/8] 0, 128
        %1624 = vxpose.xlu0.c.b16.end [8/8] 0, 128
        %v1625 = vpop.trf.xlu0
        %v1626 = vpop.trf.xlu0
        %v1627 = vpop.trf.xlu0
        %v1628 = vpop.trf.xlu0
        %v1629 = vpop.trf.xlu0
        %v1630 = vpop.trf.xlu0
        %v1631 = vpop.trf.xlu0
        %v1632 = vpop.trf.xlu0
        %v1633 = vcombine.low %v1513, %v1577
        %v1635 = vunpack.c.l.s4 1983009808
        %v1636 = vunpack.c.0.s8 %v1635
        %v1637 = vlaneseq
        %v1638 = vshrl.u32 %v1637, 7
        %v1639 = vsub.s32 %v1636, %v1638
        %v1640 = vrot.slane %v1633, %v1639
        %v1641 = vcombine.low %v1545, %v1609
        %v1643 = vunpack.c.l.s4 1983009808
        %v1644 = vunpack.c.0.s8 %v1643
        %v1645 = vlaneseq
        %v1646 = vshrl.u32 %v1645, 7
        %v1647 = vsub.s32 %v1644, %v1646
        %v1648 = vrot.slane %v1641, %v1647
        %v1649 = vcombine.low %v1640, %v1648
        %v1651 = vunpack.c.l.s4 1934713408
        %v1652 = vunpack.c.0.s8 %v1651
        %v1653 = vlaneseq
        %v1654 = vshrl.u32 %v1653, 7
        %v1655 = vsub.s32 %v1652, %v1654
        %v1656 = vrot.slane %v1649, %v1655
        %v1657 = vcombine.high %v1656, 0
        %v1658 = vcombine.low %v1529, %v1593
        %v1660 = vunpack.c.l.s4 1983009808
        %v1661 = vunpack.c.0.s8 %v1660
        %v1662 = vlaneseq
        %v1663 = vshrl.u32 %v1662, 7
        %v1664 = vsub.s32 %v1661, %v1663
        %v1665 = vrot.slane %v1658, %v1664
        %v1666 = vcombine.low %v1561, %v1625
        %v1668 = vunpack.c.l.s4 1983009808
        %v1669 = vunpack.c.0.s8 %v1668
        %v1670 = vlaneseq
        %v1671 = vshrl.u32 %v1670, 7
        %v1672 = vsub.s32 %v1669, %v1671
        %v1673 = vrot.slane %v1666, %v1672
        %v1674 = vcombine.low %v1665, %v1673
        %v1676 = vunpack.c.l.s4 1934713408
        %v1677 = vunpack.c.0.s8 %v1676
        %v1678 = vlaneseq
        %v1679 = vshrl.u32 %v1678, 7
        %v1680 = vsub.s32 %v1677, %v1679
        %v1681 = vrot.slane %v1674, %v1680
        %v1682 = vcombine.high %v1681, 0
        %v1685 = vpack.i.b16 %v1681, %v1656
        %v1686 = vshrl.u32 %v1656, 16
        %v1687 = vshrl.u32 %v1681, 16
        %v1688 = vpack.i.b16 %v1687, %v1686
        %v1691 = vpack.i.b16 %v1682, %v1657
        %v1692 = vshrl.u32 %v1657, 16
        %v1693 = vshrl.u32 %v1682, 16
        %v1694 = vpack.i.b16 %v1693, %v1692
        %v1696 = vsel %vm1005, %v1685, 0
        %v1699 = vsel %vm1005, %v1273, 0
        %1701 = vmatprep.subr.bf16.mxu0 0
        %1702 = vmatpush1.bf16.xpose.msra.mxu0 %v1699
        %1703 = vmatprep.subr.bf16.mxu0 0
        %1704 = vmatpush1.bf16.xpose.msra.mxu0 0
        %1705 = vmatprep.subr.bf16.mxu0 0
        %1706 = vmatpush1.bf16.xpose.msra.mxu0 0
        %1707 = vmatprep.subr.bf16.mxu0 0
        %1708 = vmatpush1.bf16.xpose.msra.mxu0 0
        %1709 = vmatprep.subr.bf16.mxu0 0
        %1710 = vmatpush1.bf16.xpose.msra.mxu0 0
        %1711 = vmatprep.subr.bf16.mxu0 0
        %1712 = vmatpush1.bf16.xpose.msra.mxu0 0
        %1713 = vmatprep.subr.bf16.mxu0 0
        %1714 = vmatpush1.bf16.xpose.msra.mxu0 0
        %1715 = vmatprep.subr.bf16.mxu0 0
        %1716 = vmatpush1.bf16.xpose.msra.mxu0 0
        %1717 = vmatprep.subr.bf16.mxu0 0
        %1718 = vmatpush1.bf16.xpose.msra.mxu0 0
        %1719 = vmatprep.subr.bf16.mxu0 0
        %1720 = vmatpush1.bf16.xpose.msra.mxu0 0
        %1721 = vmatprep.subr.bf16.mxu0 0
        %1722 = vmatpush1.bf16.xpose.msra.mxu0 0
        %1723 = vmatprep.subr.bf16.mxu0 0
        %1724 = vmatpush1.bf16.xpose.msra.mxu0 0
        %1725 = vmatprep.subr.bf16.mxu0 0
        %1726 = vmatpush1.bf16.xpose.msra.mxu0 0
        %1727 = vmatprep.subr.bf16.mxu0 0
        %1728 = vmatpush1.bf16.xpose.msra.mxu0 0
        %1729 = vmatprep.subr.bf16.mxu0 0
        %1730 = vmatpush1.bf16.xpose.msra.mxu0 0
        %1731 = vmatprep.subr.bf16.mxu0 0
        %1732 = vmatpush1.bf16.xpose.msra.mxu0 0
        %1733 = vmatprep.mubr.bf16.mxu0 0
        %1734 = vmatmul.mubr.bf16.gmra.mrb[0].mxu0 %v1696
        %v1735 = vpop.f32.mrb[0].mxu0
        %v1736 = vadd.f32 0.0, %v1735
        %v1737 = vpop.f32.mrb[0].mxu0
        %v1738 = vpop.f32.mrb[0].mxu0
        %v1739 = vpop.f32.mrb[0].mxu0
        %1740 = vdwg.mxu0
        %v1742 = vsel %vm1005, %v1688, 0
        %v1745 = vsel %vm1005, %v1274, 0
        %1747 = vmatprep.subr.bf16.mxu0 0
        %1748 = vmatpush1.bf16.xpose.msra.mxu0 %v1745
        %1749 = vmatprep.subr.bf16.mxu0 0
        %1750 = vmatpush1.bf16.xpose.msra.mxu0 0
        %1751 = vmatprep.subr.bf16.mxu0 0
        %1752 = vmatpush1.bf16.xpose.msra.mxu0 0
        %1753 = vmatprep.subr.bf16.mxu0 0
        %1754 = vmatpush1.bf16.xpose.msra.mxu0 0
        %1755 = vmatprep.subr.bf16.mxu0 0
        %1756 = vmatpush1.bf16.xpose.msra.mxu0 0
        %1757 = vmatprep.subr.bf16.mxu0 0
        %1758 = vmatpush1.bf16.xpose.msra.mxu0 0
        %1759 = vmatprep.subr.bf16.mxu0 0
        %1760 = vmatpush1.bf16.xpose.msra.mxu0 0
        %1761 = vmatprep.subr.bf16.mxu0 0
        %1762 = vmatpush1.bf16.xpose.msra.mxu0 0
        %1763 = vmatprep.subr.bf16.mxu0 0
        %1764 = vmatpush1.bf16.xpose.msra.mxu0 0
        %1765 = vmatprep.subr.bf16.mxu0 0
        %1766 = vmatpush1.bf16.xpose.msra.mxu0 0
        %1767 = vmatprep.subr.bf16.mxu0 0
        %1768 = vmatpush1.bf16.xpose.msra.mxu0 0
        %1769 = vmatprep.subr.bf16.mxu0 0
        %1770 = vmatpush1.bf16.xpose.msra.mxu0 0
        %1771 = vmatprep.subr.bf16.mxu0 0
        %1772 = vmatpush1.bf16.xpose.msra.mxu0 0
        %1773 = vmatprep.subr.bf16.mxu0 0
        %1774 = vmatpush1.bf16.xpose.msra.mxu0 0
        %1775 = vmatprep.subr.bf16.mxu0 0
        %1776 = vmatpush1.bf16.xpose.msra.mxu0 0
        %1777 = vmatprep.subr.bf16.mxu0 0
        %1778 = vmatpush1.bf16.xpose.msra.mxu0 0
        %1779 = vmatprep.mubr.bf16.mxu0 0
        %1780 = vmatmul.mubr.bf16.gmra.mrb[0].mxu0 %v1742
        %v1781 = vpop.f32.mrb[0].mxu0
        %v1782 = vadd.f32 0.0, %v1781
        %v1783 = vpop.f32.mrb[0].mxu0
        %v1784 = vpop.f32.mrb[0].mxu0
        %v1785 = vpop.f32.mrb[0].mxu0
        %1786 = vdwg.mxu0
        %v1788 = vsel %vm1005, %v1691, 0
        %v1791 = vsel %vm1005, %v1275, 0
        %1793 = vmatprep.subr.bf16.mxu0 0
        %1794 = vmatpush1.bf16.xpose.msra.mxu0 %v1791
        %1795 = vmatprep.subr.bf16.mxu0 0
        %1796 = vmatpush1.bf16.xpose.msra.mxu0 0
        %1797 = vmatprep.subr.bf16.mxu0 0
        %1798 = vmatpush1.bf16.xpose.msra.mxu0 0
        %1799 = vmatprep.subr.bf16.mxu0 0
        %1800 = vmatpush1.bf16.xpose.msra.mxu0 0
        %1801 = vmatprep.subr.bf16.mxu0 0
        %1802 = vmatpush1.bf16.xpose.msra.mxu0 0
        %1803 = vmatprep.subr.bf16.mxu0 0
        %1804 = vmatpush1.bf16.xpose.msra.mxu0 0
        %1805 = vmatprep.subr.bf16.mxu0 0
        %1806 = vmatpush1.bf16.xpose.msra.mxu0 0
        %1807 = vmatprep.subr.bf16.mxu0 0
        %1808 = vmatpush1.bf16.xpose.msra.mxu0 0
        %1809 = vmatprep.subr.bf16.mxu0 0
        %1810 = vmatpush1.bf16.xpose.msra.mxu0 0
        %1811 = vmatprep.subr.bf16.mxu0 0
        %1812 = vmatpush1.bf16.xpose.msra.mxu0 0
        %1813 = vmatprep.subr.bf16.mxu0 0
        %1814 = vmatpush1.bf16.xpose.msra.mxu0 0
        %1815 = vmatprep.subr.bf16.mxu0 0
        %1816 = vmatpush1.bf16.xpose.msra.mxu0 0
        %1817 = vmatprep.subr.bf16.mxu0 0
        %1818 = vmatpush1.bf16.xpose.msra.mxu0 0
        %1819 = vmatprep.subr.bf16.mxu0 0
        %1820 = vmatpush1.bf16.xpose.msra.mxu0 0
        %1821 = vmatprep.subr.bf16.mxu0 0
        %1822 = vmatpush1.bf16.xpose.msra.mxu0 0
        %1823 = vmatprep.subr.bf16.mxu0 0
        %1824 = vmatpush1.bf16.xpose.msra.mxu0 0
        %1825 = vmatprep.mubr.bf16.mxu0 0
        %1826 = vmatmul.mubr.bf16.gmra.mrb[0].mxu0 %v1788
        %v1827 = vpop.f32.mrb[0].mxu0
        %v1828 = vadd.f32 0.0, %v1827
        %v1829 = vpop.f32.mrb[0].mxu0
        %v1830 = vpop.f32.mrb[0].mxu0
        %v1831 = vpop.f32.mrb[0].mxu0
        %1832 = vdwg.mxu0
        %v1834 = vsel %vm1005, %v1694, 0
        %v1837 = vsel %vm1005, %v1276, 0
        %1839 = vmatprep.subr.bf16.mxu0 0
        %1840 = vmatpush1.bf16.xpose.msra.mxu0 %v1837
        %1841 = vmatprep.subr.bf16.mxu0 0
        %1842 = vmatpush1.bf16.xpose.msra.mxu0 0
        %1843 = vmatprep.subr.bf16.mxu0 0
        %1844 = vmatpush1.bf16.xpose.msra.mxu0 0
        %1845 = vmatprep.subr.bf16.mxu0 0
        %1846 = vmatpush1.bf16.xpose.msra.mxu0 0
        %1847 = vmatprep.subr.bf16.mxu0 0
        %1848 = vmatpush1.bf16.xpose.msra.mxu0 0
        %1849 = vmatprep.subr.bf16.mxu0 0
        %1850 = vmatpush1.bf16.xpose.msra.mxu0 0
        %1851 = vmatprep.subr.bf16.mxu0 0
        %1852 = vmatpush1.bf16.xpose.msra.mxu0 0
        %1853 = vmatprep.subr.bf16.mxu0 0
        %1854 = vmatpush1.bf16.xpose.msra.mxu0 0
        %1855 = vmatprep.subr.bf16.mxu0 0
        %1856 = vmatpush1.bf16.xpose.msra.mxu0 0
        %1857 = vmatprep.subr.bf16.mxu0 0
        %1858 = vmatpush1.bf16.xpose.msra.mxu0 0
        %1859 = vmatprep.subr.bf16.mxu0 0
        %1860 = vmatpush1.bf16.xpose.msra.mxu0 0
        %1861 = vmatprep.subr.bf16.mxu0 0
        %1862 = vmatpush1.bf16.xpose.msra.mxu0 0
        %1863 = vmatprep.subr.bf16.mxu0 0
        %1864 = vmatpush1.bf16.xpose.msra.mxu0 0
        %1865 = vmatprep.subr.bf16.mxu0 0
        %1866 = vmatpush1.bf16.xpose.msra.mxu0 0
        %1867 = vmatprep.subr.bf16.mxu0 0
        %1868 = vmatpush1.bf16.xpose.msra.mxu0 0
        %1869 = vmatprep.subr.bf16.mxu0 0
        %1870 = vmatpush1.bf16.xpose.msra.mxu0 0
        %1871 = vmatprep.mubr.bf16.mxu0 0
        %1872 = vmatmul.mubr.bf16.gmra.mrb[0].mxu0 %v1834
        %v1873 = vpop.f32.mrb[0].mxu0
        %v1874 = vadd.f32 0.0, %v1873
        %v1875 = vpop.f32.mrb[0].mxu0
        %v1876 = vpop.f32.mrb[0].mxu0
        %v1877 = vpop.f32.mrb[0].mxu0
        %1878 = vdwg.mxu0
        %1879 = vxpose.xlu0.b32.start [1/16] %v1736, 128
        %1880 = vxpose.xlu0.b32.cont [2/16] 0.0, 128
        %1881 = vxpose.xlu0.b32.cont [3/16] 0.0, 128
        %1882 = vxpose.xlu0.b32.cont [4/16] 0.0, 128
        %1883 = vxpose.xlu0.b32.cont [5/16] 0.0, 128
        %1884 = vxpose.xlu0.b32.cont [6/16] 0.0, 128
        %1885 = vxpose.xlu0.b32.cont [7/16] 0.0, 128
        %1886 = vxpose.xlu0.b32.cont [8/16] 0.0, 128
        %1887 = vxpose.xlu0.b32.cont [9/16] 0.0, 128
        %1888 = vxpose.xlu0.b32.cont [10/16] 0.0, 128
        %1889 = vxpose.xlu0.b32.cont [11/16] 0.0, 128
        %1890 = vxpose.xlu0.b32.cont [12/16] 0.0, 128
        %1891 = vxpose.xlu0.b32.cont [13/16] 0.0, 128
        %1892 = vxpose.xlu0.b32.cont [14/16] 0.0, 128
        %1893 = vxpose.xlu0.b32.cont [15/16] 0.0, 128
        %1894 = vxpose.xlu0.b32.end [16/16] 0.0, 128
        %v1895 = vpop.trf.xlu0
        %v1896 = vpop.trf.xlu0
        %v1897 = vpop.trf.xlu0
        %v1898 = vpop.trf.xlu0
        %v1899 = vpop.trf.xlu0
        %v1900 = vpop.trf.xlu0
        %v1901 = vpop.trf.xlu0
        %v1902 = vpop.trf.xlu0
        %v1903 = vpop.trf.xlu0
        %v1904 = vpop.trf.xlu0
        %v1905 = vpop.trf.xlu0
        %v1906 = vpop.trf.xlu0
        %v1907 = vpop.trf.xlu0
        %v1908 = vpop.trf.xlu0
        %v1909 = vpop.trf.xlu0
        %v1910 = vpop.trf.xlu0
        %1911 = vxpose.xlu0.b32.start [1/16] %v1782, 128
        %1912 = vxpose.xlu0.b32.cont [2/16] 0.0, 128
        %1913 = vxpose.xlu0.b32.cont [3/16] 0.0, 128
        %1914 = vxpose.xlu0.b32.cont [4/16] 0.0, 128
        %1915 = vxpose.xlu0.b32.cont [5/16] 0.0, 128
        %1916 = vxpose.xlu0.b32.cont [6/16] 0.0, 128
        %1917 = vxpose.xlu0.b32.cont [7/16] 0.0, 128
        %1918 = vxpose.xlu0.b32.cont [8/16] 0.0, 128
        %1919 = vxpose.xlu0.b32.cont [9/16] 0.0, 128
        %1920 = vxpose.xlu0.b32.cont [10/16] 0.0, 128
        %1921 = vxpose.xlu0.b32.cont [11/16] 0.0, 128
        %1922 = vxpose.xlu0.b32.cont [12/16] 0.0, 128
        %1923 = vxpose.xlu0.b32.cont [13/16] 0.0, 128
        %1924 = vxpose.xlu0.b32.cont [14/16] 0.0, 128
        %1925 = vxpose.xlu0.b32.cont [15/16] 0.0, 128
        %1926 = vxpose.xlu0.b32.end [16/16] 0.0, 128
        %v1927 = vpop.trf.xlu0
        %v1928 = vpop.trf.xlu0
        %v1929 = vpop.trf.xlu0
        %v1930 = vpop.trf.xlu0
        %v1931 = vpop.trf.xlu0
        %v1932 = vpop.trf.xlu0
        %v1933 = vpop.trf.xlu0
        %v1934 = vpop.trf.xlu0
        %v1935 = vpop.trf.xlu0
        %v1936 = vpop.trf.xlu0
        %v1937 = vpop.trf.xlu0
        %v1938 = vpop.trf.xlu0
        %v1939 = vpop.trf.xlu0
        %v1940 = vpop.trf.xlu0
        %v1941 = vpop.trf.xlu0
        %v1942 = vpop.trf.xlu0
        %1943 = vxpose.xlu0.b32.start [1/16] %v1828, 128
        %1944 = vxpose.xlu0.b32.cont [2/16] 0.0, 128
        %1945 = vxpose.xlu0.b32.cont [3/16] 0.0, 128
        %1946 = vxpose.xlu0.b32.cont [4/16] 0.0, 128
        %1947 = vxpose.xlu0.b32.cont [5/16] 0.0, 128
        %1948 = vxpose.xlu0.b32.cont [6/16] 0.0, 128
        %1949 = vxpose.xlu0.b32.cont [7/16] 0.0, 128
        %1950 = vxpose.xlu0.b32.cont [8/16] 0.0, 128
        %1951 = vxpose.xlu0.b32.cont [9/16] 0.0, 128
        %1952 = vxpose.xlu0.b32.cont [10/16] 0.0, 128
        %1953 = vxpose.xlu0.b32.cont [11/16] 0.0, 128
        %1954 = vxpose.xlu0.b32.cont [12/16] 0.0, 128
        %1955 = vxpose.xlu0.b32.cont [13/16] 0.0, 128
        %1956 = vxpose.xlu0.b32.cont [14/16] 0.0, 128
        %1957 = vxpose.xlu0.b32.cont [15/16] 0.0, 128
        %1958 = vxpose.xlu0.b32.end [16/16] 0.0, 128
        %v1959 = vpop.trf.xlu0
        %v1960 = vpop.trf.xlu0
        %v1961 = vpop.trf.xlu0
        %v1962 = vpop.trf.xlu0
        %v1963 = vpop.trf.xlu0
        %v1964 = vpop.trf.xlu0
        %v1965 = vpop.trf.xlu0
        %v1966 = vpop.trf.xlu0
        %v1967 = vpop.trf.xlu0
        %v1968 = vpop.trf.xlu0
        %v1969 = vpop.trf.xlu0
        %v1970 = vpop.trf.xlu0
        %v1971 = vpop.trf.xlu0
        %v1972 = vpop.trf.xlu0
        %v1973 = vpop.trf.xlu0
        %v1974 = vpop.trf.xlu0
        %1975 = vxpose.xlu0.b32.start [1/16] %v1874, 128
        %1976 = vxpose.xlu0.b32.cont [2/16] 0.0, 128
        %1977 = vxpose.xlu0.b32.cont [3/16] 0.0, 128
        %1978 = vxpose.xlu0.b32.cont [4/16] 0.0, 128
        %1979 = vxpose.xlu0.b32.cont [5/16] 0.0, 128
        %1980 = vxpose.xlu0.b32.cont [6/16] 0.0, 128
        %1981 = vxpose.xlu0.b32.cont [7/16] 0.0, 128
        %1982 = vxpose.xlu0.b32.cont [8/16] 0.0, 128
        %1983 = vxpose.xlu0.b32.cont [9/16] 0.0, 128
        %1984 = vxpose.xlu0.b32.cont [10/16] 0.0, 128
        %1985 = vxpose.xlu0.b32.cont [11/16] 0.0, 128
        %1986 = vxpose.xlu0.b32.cont [12/16] 0.0, 128
        %1987 = vxpose.xlu0.b32.cont [13/16] 0.0, 128
        %1988 = vxpose.xlu0.b32.cont [14/16] 0.0, 128
        %1989 = vxpose.xlu0.b32.cont [15/16] 0.0, 128
        %1990 = vxpose.xlu0.b32.end [16/16] 0.0, 128
        %v1991 = vpop.trf.xlu0
        %v1992 = vpop.trf.xlu0
        %v1993 = vpop.trf.xlu0
        %v1994 = vpop.trf.xlu0
        %v1995 = vpop.trf.xlu0
        %v1996 = vpop.trf.xlu0
        %v1997 = vpop.trf.xlu0
        %v1998 = vpop.trf.xlu0
        %v1999 = vpop.trf.xlu0
        %v2000 = vpop.trf.xlu0
        %v2001 = vpop.trf.xlu0
        %v2002 = vpop.trf.xlu0
        %v2003 = vpop.trf.xlu0
        %v2004 = vpop.trf.xlu0
        %v2005 = vpop.trf.xlu0
        %v2006 = vpop.trf.xlu0
        %v2007 = vcombine.low %v1895, %v1959
        %v2008 = vcombine.high %v1895, %v1959
        %v2010 = vunpack.c.l.s4 1983009808
        %v2011 = vunpack.c.0.s8 %v2010
        %v2012 = vlaneseq
        %v2013 = vshrl.u32 %v2012, 7
        %v2014 = vsub.s32 %v2011, %v2013
        %v2015 = vrot.slane %v2007, %v2014
        %v2017 = vunpack.c.l.s4 1983009808
        %v2018 = vunpack.c.0.s8 %v2017
        %v2019 = vlaneseq
        %v2020 = vshrl.u32 %v2019, 7
        %v2021 = vsub.s32 %v2018, %v2020
        %v2022 = vrot.slane %v2008, %v2021
        %v2023 = vcombine.low %v1927, %v1991
        %v2024 = vcombine.high %v1927, %v1991
        %v2026 = vunpack.c.l.s4 1983009808
        %v2027 = vunpack.c.0.s8 %v2026
        %v2028 = vlaneseq
        %v2029 = vshrl.u32 %v2028, 7
        %v2030 = vsub.s32 %v2027, %v2029
        %v2031 = vrot.slane %v2023, %v2030
        %v2033 = vunpack.c.l.s4 1983009808
        %v2034 = vunpack.c.0.s8 %v2033
        %v2035 = vlaneseq
        %v2036 = vshrl.u32 %v2035, 7
        %v2037 = vsub.s32 %v2034, %v2036
        %v2038 = vrot.slane %v2024, %v2037
        %v2039 = vcombine.low %v2015, %v2031
        %v2040 = vcombine.high %v2015, %v2031
        %v2042 = vunpack.c.l.s4 1934713408
        %v2043 = vunpack.c.0.s8 %v2042
        %v2044 = vlaneseq
        %v2045 = vshrl.u32 %v2044, 7
        %v2046 = vsub.s32 %v2043, %v2045
        %v2047 = vrot.slane %v2039, %v2046
        %v2049 = vunpack.c.l.s4 1934713408
        %v2050 = vunpack.c.0.s8 %v2049
        %v2051 = vlaneseq
        %v2052 = vshrl.u32 %v2051, 7
        %v2053 = vsub.s32 %v2050, %v2052
        %v2054 = vrot.slane %v2040, %v2053
        %v2055 = vcombine.low %v2022, %v2038
        %v2056 = vcombine.high %v2022, %v2038
        %v2058 = vunpack.c.l.s4 1934713408
        %v2059 = vunpack.c.0.s8 %v2058
        %v2060 = vlaneseq
        %v2061 = vshrl.u32 %v2060, 7
        %v2062 = vsub.s32 %v2059, %v2061
        %v2063 = vrot.slane %v2055, %v2062
        %v2065 = vunpack.c.l.s4 1934713408
        %v2066 = vunpack.c.0.s8 %v2065
        %v2067 = vlaneseq
        %v2068 = vshrl.u32 %v2067, 7
        %v2069 = vsub.s32 %v2066, %v2068
        %v2070 = vrot.slane %v2056, %v2069
        %v2071 = vcombine.high %v2047, 0.0
        %v2072 = vcombine.high %v2054, 0.0
        %v2073 = vcombine.high %v2063, 0.0
        %v2074 = vcombine.high %v2070, 0.0
        %v2075 = vpack.c.bf16 %v2047, %v2047
        %v2076 = vpack.c.bf16 %v2071, %v2071
        %v2077 = vpack.c.bf16 %v2054, %v2054
        %v2078 = vpack.c.bf16 %v2072, %v2072
        %v2079 = vpack.c.bf16 %v2063, %v2063
        %v2080 = vpack.c.bf16 %v2073, %v2073
        %v2081 = vpack.c.bf16 %v2070, %v2070
        %v2082 = vpack.c.bf16 %v2074, %v2074
        %vm2083 = vcmask 58368
        %2084 = vst.msk [vmem:[%s491] sm:$0x3] %vm2083, %v2075
        %2085 = vst.msk [vmem:[%s491 + $0x2] sm:$0x3] %vm2083, %v2076
        %2086 = vst.msk [vmem:[%s491 + $0x4] sm:$0x3] %vm2083, %v2077
        %2087 = vst.msk [vmem:[%s491 + $0x6] sm:$0x3] %vm2083, %v2078
        %2088 = vst.msk [vmem:[%s491 + $0x8] sm:$0x3] %vm2083, %v2079
        %2089 = vst.msk [vmem:[%s491 + $0xa] sm:$0x3] %vm2083, %v2080
        %2090 = vst.msk [vmem:[%s491 + $0xc] sm:$0x3] %vm2083, %v2081
        %2091 = vst.msk [vmem:[%s491 + $0xe] sm:$0x3] %vm2083, %v2082
        %s2092 = smul.u32 8, %s20
        %p2093 = scmp.lt.s32.totalorder %s19, 1
        %s2094 = scalar_select %p2093, %s19, 1
        %p2095 = scmp.lt.s32.totalorder %s2092, 7
        %s2096 = scalar_select %p2095, %s2092, 7
        %s2097 = smul.addr %s2094, 8
        %s2098 = sadd.s32 %s2096, %s2097
        %s2099 = smul.addr %s2098, 2
        %s2100 = scalar_lea.vmem %s4, %s2099
        // Predicated region
        $region160: #{encode_layer_forward.6} parent=146 // pred_check
          %p2101 = pneg %p153
        $region161: #{encode_layer_forward.6} parent=146 // pred_check_branch
          %2103 = sbr.rel (%p2101) target = $region163
        $region162: #{encode_layer_forward.6} parent=146 // pred_region
          %s2104 = smul.u32 8, %s20
        $region163: #{encode_layer_forward.6} parent=146 // pred_fallthru
          _
      $region147: #{encode_layer_forward.6} parent=5 // pred_fallthru
        _
      %p2105 = scmp.le.s32.totalorder 2, %s10
      // Predicated region
      $region164: #{encode_layer_forward.6} parent=5 // pred_check
        %p2106 = pneg %p2105
      $region165: #{encode_layer_forward.6} parent=5 // pred_check_branch
        %2108 = sbr.rel (%p2106) target = $region167
      $region166: #{encode_layer_forward.6} parent=5 // pred_region
        %s2109 = ssub.s32 %s10, 2
        // Predicated region
        $region168: #{encode_layer_forward.6} parent=166 // pred_check
          %p2110 = pneg %p159
        $region169: #{encode_layer_forward.6} parent=166 // pred_check_branch
          %2112 = sbr.rel (%p2110) target = $region171
        $region170: #{encode_layer_forward.6} parent=166 // pred_region
          %s2113 = smul.u32 8, %s22
          %p2114 = scmp.lt.s32.totalorder %s21, 1
          %s2115 = scalar_select %p2114, %s21, 1
          %p2116 = scmp.lt.s32.totalorder %s2113, 7
          %s2117 = scalar_select %p2116, %s2113, 7
          %s2118 = smul.addr %s2115, 8
          %s2119 = sadd.s32 %s2117, %s2118
          %s2120 = smul.addr %s2119, 2
          %s2121 = scalar_lea.vmem %s4, %s2120
        $region171: #{encode_layer_forward.6} parent=166 // pred_fallthru
          _
      $region167: #{encode_layer_forward.6} parent=5 // pred_fallthru
        _
    $region6: #{encode_layer_forward.6} parent=1 // loop_footer
      %s14 = sadd.s32 1, %s10
    $region7: #{encode_layer_forward.6} parent=1 // loop_footer_branch
      %9 = sbr.rel target = $region3
    $region8: #{encode_layer_forward.6} parent=1 // loop_exit
      _

// kernel: encode_layer_forward.9
$region0: #{encode_layer_forward.9}
  #allocation0 [shape = 'u32[]', space=smem, size = 0x4, offset = 0x4, fixed_abs, tag = 'smem constant byte address 0x4 - core index']
  #allocation1 [shape = 'u32[144,128]{1,0:T(1,128)}', space=vmem, size = 0x12000, scoped, tag = 'internal scratch']
  #allocation2 [shape = 'f32[16,32]{1,0:T(8,128)}', space=vmem, size = 0x2000, scoped, tag = 'scratch operand']
  %s0 = inlined_call_operand.vmem [shape: bf16[16,64], index: 0, kind: input, shape index: {}]
  %s1 = inlined_call_operand.vmem [shape: bf16[64,32], index: 1, kind: input, shape index: {}]
  %s2 = inlined_call_operand.vmem [shape: f32[1,32], index: 2, kind: input, shape index: {}]
  %s3 = inlined_call_operand.vmem [shape: f32[16,32], index: 3, kind: input, shape index: {}]
  %s4 = inlined_call_operand.hbm [shape: f32[16,32], index: 4, kind: output, shape index: {}]
  %s5 = sld [smem:[#allocation0]]
  $region34: #{encode_layer_forward.9} parent=0
    _
  %s7 = ssub.s32 1, %s5
  %s8 = scalar_select 0, %s7, %s5
  $region1: #{encode_layer_forward.9} parent=0
    #allocation3 [shape = 'u8[8192]{0}', space=vmem, size = 0x2000, scoped, tag = 'output window, operand 0, single buffered']
    #allocation4 [shape = 's32[1]{0}', space=sflag, size = 0x4, scoped, tag = 'scoped memory for encode_layer_forward.9']
    %9 = vsyncpa [#allocation4], 0
    // Predicated region
    $region2: #{encode_layer_forward.9} parent=1 // pred_check
      _
    $region3: #{encode_layer_forward.9} parent=1 // pred_check_branch
      %11 = sbr.rel (0) target = $region5
    $region4: #{encode_layer_forward.9} parent=1 // pred_region
      _
    $region5: #{encode_layer_forward.9} parent=1 // pred_fallthru
      _
    // Predicated region
    $region6: #{encode_layer_forward.9} parent=1 // pred_check
      _
    $region7: #{encode_layer_forward.9} parent=1 // pred_check_branch
      %13 = sbr.rel (0) target = $region9
    $region8: #{encode_layer_forward.9} parent=1 // pred_region
      _
    $region9: #{encode_layer_forward.9} parent=1 // pred_fallthru
      _
    // Predicated region
    $region10: #{encode_layer_forward.9} parent=1 // pred_check
      _
    $region11: #{encode_layer_forward.9} parent=1 // pred_check_branch
      %15 = sbr.rel (0) target = $region13
    $region12: #{encode_layer_forward.9} parent=1 // pred_region
      _
    $region13: #{encode_layer_forward.9} parent=1 // pred_fallthru
      _
    // Predicated region
    $region14: #{encode_layer_forward.9} parent=1 // pred_check
      _
    $region15: #{encode_layer_forward.9} parent=1 // pred_check_branch
      %17 = sbr.rel (0) target = $region17
    $region16: #{encode_layer_forward.9} parent=1 // pred_region
      _
    $region17: #{encode_layer_forward.9} parent=1 // pred_fallthru
      _
    %p19 = scmp.eq.s32.totalorder 0, 0
    // Predicated region
    $region18: #{encode_layer_forward.9} parent=1 // pred_check
      %p20 = pneg %p19
    $region19: #{encode_layer_forward.9} parent=1 // pred_check_branch
      %22 = sbr.rel (%p20) target = $region21
    $region20: #{encode_layer_forward.9} parent=1 // pred_region
      %vm23 = vcmask 261120
      %24 = vst.msk [vmem:[#allocation2] sm:$0xff] %vm23, 0.0
      %25 = vst.msk [vmem:[#allocation2 + $0x8] sm:$0xff] %vm23, 0.0
    $region21: #{encode_layer_forward.9} parent=1 // pred_fallthru
      _
    %v26 = vld [vmem:[#allocation2] sm:$0xff]
    %v27 = vld [vmem:[#allocation2 + $0x8] sm:$0xff]
    %v28 = vld [vmem:[%s0] sm:$0xf]
    %v29 = vld [vmem:[%s0 + $0x4] sm:$0xf]
    %v30 = vld [vmem:[%s1] sm:$0xf]
    %v31 = vld [vmem:[%s1 + $0x4] sm:$0xf]
    %v32 = vld [vmem:[%s1 + $0x8] sm:$0xf]
    %v33 = vld [vmem:[%s1 + $0xc] sm:$0xf]
    %v34 = vld [vmem:[%s1 + $0x10] sm:$0xf]
    %v35 = vld [vmem:[%s1 + $0x14] sm:$0xf]
    %v36 = vld [vmem:[%s1 + $0x18] sm:$0xf]
    %v37 = vld [vmem:[%s1 + $0x1c] sm:$0xf]
    %v40 = vunpack.c.l.b16 %v28
    %v41 = vunpack.c.l.b16 %v29
    %v42 = vpack.c.b16 %v41, %v40
    %v51 = vunpack.c.l.b16 %v30
    %v52 = vunpack.c.l.b16 %v31
    %v53 = vunpack.c.l.b16 %v32
    %v54 = vunpack.c.l.b16 %v33
    %v55 = vunpack.c.l.b16 %v34
    %v56 = vunpack.c.l.b16 %v35
    %v57 = vunpack.c.l.b16 %v36
    %v58 = vunpack.c.l.b16 %v37
    %v59 = vpack.c.b16 %v52, %v51
    %v60 = vpack.c.b16 %v54, %v53
    %v61 = vpack.c.b16 %v56, %v55
    %v62 = vpack.c.b16 %v58, %v57
    %vm67 = vcmask 523264
    %v69 = vsel %vm67, %v42, 0
    %71 = vmatprep.subr.bf16.mxu0 0
    %72 = vmatpush1.bf16.msra.mxu0 %v59
    %73 = vmatprep.subr.bf16.mxu0 0
    %74 = vmatpush1.bf16.msra.mxu0 %v60
    %75 = vmatprep.subr.bf16.mxu0 0
    %76 = vmatpush1.bf16.msra.mxu0 %v61
    %77 = vmatprep.subr.bf16.mxu0 0
    %78 = vmatpush1.bf16.msra.mxu0 %v62
    %79 = vmatprep.subr.bf16.mxu0 0
    %80 = vmatpush1.bf16.msra.mxu0 0
    %81 = vmatprep.subr.bf16.mxu0 0
    %82 = vmatpush1.bf16.msra.mxu0 0
    %83 = vmatprep.subr.bf16.mxu0 0
    %84 = vmatpush1.bf16.msra.mxu0 0
    %85 = vmatprep.subr.bf16.mxu0 0
    %86 = vmatpush1.bf16.msra.mxu0 0
    %87 = vmatprep.subr.bf16.mxu0 0
    %88 = vmatpush1.bf16.msra.mxu0 0
    %89 = vmatprep.subr.bf16.mxu0 0
    %90 = vmatpush1.bf16.msra.mxu0 0
    %91 = vmatprep.subr.bf16.mxu0 0
    %92 = vmatpush1.bf16.msra.mxu0 0
    %93 = vmatprep.subr.bf16.mxu0 0
    %94 = vmatpush1.bf16.msra.mxu0 0
    %95 = vmatprep.subr.bf16.mxu0 0
    %96 = vmatpush1.bf16.msra.mxu0 0
    %97 = vmatprep.subr.bf16.mxu0 0
    %98 = vmatpush1.bf16.msra.mxu0 0
    %99 = vmatprep.subr.bf16.mxu0 0
    %100 = vmatpush1.bf16.msra.mxu0 0
    %101 = vmatprep.subr.bf16.mxu0 0
    %102 = vmatpush1.bf16.msra.mxu0 0
    %103 = vmatprep.mubr.bf16.mxu0 0
    %104 = vmatmul.mubr.bf16.gmra.mrb[0].mxu0 %v69
    %v105 = vpop.f32.mrb[0].mxu0
    %v106 = vadd.f32 0.0, %v105
    %v107 = vpop.f32.mrb[0].mxu0
    %v108 = vpop.f32.mrb[0].mxu0
    %v109 = vadd.f32 0.0, %v108
    %v110 = vpop.f32.mrb[0].mxu0
    %111 = vdwg.mxu0
    %v112 = vadd.f32 %v26, %v106
    %v113 = vadd.f32 %v27, %v109
    %vm114 = vcmask 261120
    %115 = vst.msk [vmem:[#allocation2] sm:$0xff] %vm114, %v112
    %116 = vst.msk [vmem:[#allocation2 + $0x8] sm:$0xff] %vm114, %v113
    // Predicated region
    $region22: #{encode_layer_forward.9} parent=1 // pred_check
      %p117 = pneg %p19
    $region23: #{encode_layer_forward.9} parent=1 // pred_check_branch
      %119 = sbr.rel (%p117) target = $region25
    $region24: #{encode_layer_forward.9} parent=1 // pred_region
      %v120 = vld [vmem:[#allocation2] sm:$0xff]
      %v121 = vld [vmem:[#allocation2 + $0x8] sm:$0xff]
      %v122 = vld [vmem:[%s2] sm:$0x1]
      %v124 = vlaneseq
      %v125 = vshrl.u32 %v124, 7
      %v126 = vsub.s32 0, %v125
      %v127 = vrot.slane %v122, %v126
      %v129 = vadd.f32 %v120, %v127
      %v130 = vadd.f32 %v121, %v127
      %v131 = vld [vmem:[%s3] sm:$0xff]
      %v132 = vld [vmem:[%s3 + $0x8] sm:$0xff]
      %v133 = vadd.f32 %v129, %v131
      %v134 = vadd.f32 %v130, %v132
      %135 = vst.msk [vmem:[#allocation3] sm:$0xff] %vm114, %v133
      %136 = vst.msk [vmem:[#allocation3 + $0x8] sm:$0xff] %vm114, %v134
    $region25: #{encode_layer_forward.9} parent=1 // pred_fallthru
      _
    // Predicated region
    $region26: #{encode_layer_forward.9} parent=1 // pred_check
      _
    $region27: #{encode_layer_forward.9} parent=1 // pred_check_branch
      %138 = sbr.rel (0) target = $region29
    $region28: #{encode_layer_forward.9} parent=1 // pred_region
      %s140 = ssub.s32 256, 256
      %141 = vsyncadd [#allocation4], %s140
      %s142 = sshll.u32 [#allocation3], 4
      %s143 = int_to_ptr.vmem [resolvable:$true] %s142
      %148 = dma.vmem_to_hbm [thread:$0]  %s143, 256, %s4, [#allocation4], 128, 128, 8
    $region29: #{encode_layer_forward.9} parent=1 // pred_fallthru
      _
    // Predicated region
    $region30: #{encode_layer_forward.9} parent=1 // pred_check
      _
    $region31: #{encode_layer_forward.9} parent=1 // pred_check_branch
      %150 = sbr.rel (0) target = $region33
    $region32: #{encode_layer_forward.9} parent=1 // pred_region
      %151 = dma.done [#allocation4], 256
    $region33: #{encode_layer_forward.9} parent=1 // pred_fallthru
      _
    %152 = vsyncpa [#allocation4], 1

</llo_original>
